<compile_context>
chip_gen: v6e
topology: v6e:2x2x1
jax: 0.10.0
libtpu: 0.0.40
codegen_flags: <defaults>
</compile_context>

<pallas_src>
import functools

import jax
import jax.numpy as jnp
from jax.experimental import pallas as pl
from jax.experimental.pallas import tpu as pltpu

# ----------------------------------------------------------------------------- config
BOT_CHANNELS = [512, 256, 196, 128, 96, 64, 32, 1]
CHANNELS = [16, 64, 128]
DILATIONS = [[1], [1, 1, 1, 1, 1, 1], [1, 2, 4, 8, 16, 2, 4, 8, 16]]
UP_CHANNELS = [64, 16, 3]
# flatten_bottleneck=False, compress_bottleneck=False (module defaults) -> bottleneck/bridge
# are empty Sequentials, i.e. identity.

# ----------------------------------------------------------------------------- Pallas kernels


def _apply_act(y, activation):
    if activation == "relu":
        return jnp.maximum(y, 0.0)
    if activation == "tanh":
        return jnp.tanh(y)
    return y


def gemm_kernel(p_ref, w_ref, scale_ref, shift_ref, o_ref, *, activation):
    """out = act((patches @ W) * scale + shift); bias + folded BN live in scale/shift."""
    acc = jnp.dot(p_ref[...], w_ref[...], preferred_element_type=jnp.float32)
    o_ref[...] = _apply_act(acc * scale_ref[...] + shift_ref[...], activation)


def gemm_add_kernel(p_ref, w_ref, scale_ref, shift_ref, add_ref, o_ref, *, activation, add_mode):
    """Same GEMM with a fused extra tensor:
       add_mode == "pre"  : (acc + add) * scale + shift   (downsampler: pooled half of the concat,
                                                           BN applies to the concatenated tensor)
       add_mode == "post" : acc * scale + shift + add     (residual skip, before the final ReLU)
    """
    acc = jnp.dot(p_ref[...], w_ref[...], preferred_element_type=jnp.float32)
    if add_mode == "pre":
        acc = acc + add_ref[...]
    y = acc * scale_ref[...] + shift_ref[...]
    if add_mode == "post":
        y = y + add_ref[...]
    o_ref[...] = _apply_act(y, activation)


# ----------------------------------------------------------------------------- Pallas wrapper


def _round_up(x, m):
    return ((x + m - 1) // m) * m


def fused_gemm(patches, wf, scale, shift, activation, add=None, add_mode=None):
    """act((patches @ wf) * scale + shift [+ add]) with bf16 MXU inputs and f32 accumulation.

    Rows padded only to the 8-sublane granule; cout padded to a multiple of 128 so stores are
    lane-dense (padding sliced off by the caller, fused under jit)."""
    m, k = patches.shape
    cout = wf.shape[1]
    cp = _round_up(cout, 128)

    # Row tile: >= 2 grid tiles for the large layers so both v7x TensorCores get work,
    # a single full block for the tiny inner stages (M = 8 / 32).
    if m >= 256:
        tm = 128
    elif m >= 128:
        tm = 64
    else:
        tm = _round_up(max(m, 1), 8)
    mp = _round_up(m, tm)

    p = patches.astype(jnp.bfloat16)
    if mp != m:
        p = jnp.pad(p, ((0, mp - m), (0, 0)))
    w = wf.astype(jnp.bfloat16)
    if cp != cout:
        w = jnp.pad(w, ((0, 0), (0, cp - cout)))
    sc = jnp.pad(scale.astype(jnp.float32), (0, cp - cout)).reshape(1, cp)
    sh = jnp.pad(shift.astype(jnp.float32), (0, cp - cout)).reshape(1, cp)

    in_specs = [
        pl.BlockSpec((tm, k), lambda i: (i, 0)),
        pl.BlockSpec((k, cp), lambda i: (0, 0)),
        pl.BlockSpec((1, cp), lambda i: (0, 0)),
        pl.BlockSpec((1, cp), lambda i: (0, 0)),
    ]
    args = [p, w, sc, sh]

    if add is not None:
        a = add.astype(jnp.float32)
        a = jnp.pad(a, ((0, mp - m), (0, cp - a.shape[1])))
        in_specs.append(pl.BlockSpec((tm, cp), lambda i: (i, 0)))
        args.append(a)
        kern = functools.partial(gemm_add_kernel, activation=activation, add_mode=add_mode)
    else:
        kern = functools.partial(gemm_kernel, activation=activation)

    out = pl.pallas_call(
        kern,
        out_shape=jax.ShapeDtypeStruct((mp, cp), jnp.float32),
        grid=(mp // tm,),
        in_specs=in_specs,
        out_specs=pl.BlockSpec((tm, cp), lambda i: (i, 0)),
        compiler_params=pltpu.CompilerParams(dimension_semantics=("parallel",)),
    )(*args)
    return out[:m, :cout]


# ----------------------------------------------------------------------------- conv glue (jit-fused)


def im2col(x, kh, kw, stride, padding, dilation):
    """x: NHWC -> (N*Ho*Wo, kh*kw*C); channel-last inner order matches the weight reshape."""
    n, h, w, c = x.shape
    ph, pw = padding
    dh, dw = dilation
    xp = jnp.pad(x, ((0, 0), (ph, ph), (pw, pw), (0, 0)))
    hp, wp = h + 2 * ph, w + 2 * pw
    ho = (hp - (dh * (kh - 1) + 1)) // stride + 1
    wo = (wp - (dw * (kw - 1) + 1)) // stride + 1
    cols = []
    for i in range(kh):
        for j in range(kw):
            sl = xp[
                :,
                i * dh : i * dh + (ho - 1) * stride + 1 : stride,
                j * dw : j * dw + (wo - 1) * stride + 1 : stride,
                :,
            ]
            cols.append(sl)
    patches = jnp.concatenate(cols, axis=-1)
    return patches.reshape(n * ho * wo, kh * kw * c), (n, ho, wo)


def conv_gemm(x, p, kh, kw, stride, padding, dilation, activation, add=None, add_mode=None):
    """Conv (PyTorch zero-pad semantics) + fused bias/BN/activation [+ fused add]."""
    patches, (n, ho, wo) = im2col(x, kh, kw, stride, padding, dilation)
    cout = p["scale"].shape[0]
    add2 = None
    if add is not None:
        add2 = add.reshape(n * ho * wo, add.shape[-1])
    out = fused_gemm(patches, p["wf"], p["scale"], p["shift"], activation, add2, add_mode)
    return out.reshape(n, ho, wo, cout)


def maxpool2x2(x):
    n, h, w, c = x.shape
    return x.reshape(n, h // 2, 2, w // 2, 2, c).max(axis=(2, 4))


def upsample_nearest(x, factor):
    return jnp.repeat(jnp.repeat(x, factor, axis=1), factor, axis=2)


# ----------------------------------------------------------------------------- blocks


def downsampler(x, p):
    """ERFNet DownsamplerBlock: cat(conv3x3 s2, maxpool2x2) -> BN -> ReLU, fully fused.

    The folded weight has zero columns for the pooled channels; the pooled tensor is placed at
    lanes [conv_c:cout] of the 'pre' add, so one GEMM kernel covers concat + BN + ReLU."""
    cin = x.shape[-1]
    cout = p["scale"].shape[0]
    conv_c = cout - cin
    pool = maxpool2x2(x)
    add = jnp.pad(pool, ((0, 0), (0, 0), (0, 0), (conv_c, 0)))
    return conv_gemm(x, p, 3, 3, 2, (1, 1), (1, 1), "relu", add=add, add_mode="pre")


def res_block(x, p, d):
    """ERFNet non-bottleneck-1D block (inference, dropout = id); skip-add fused into conv4."""
    y = conv_gemm(x, p["c1"], 3, 1, 1, (1, 0), (1, 1), "relu")
    y = conv_gemm(y, p["c2"], 1, 3, 1, (0, 1), (1, 1), "relu")
    y = conv_gemm(y, p["c3"], 3, 1, 1, (d, 0), (d, 1), "relu")
    # conv4 -> BN -> (+skip) -> ReLU, all in one kernel
    y = conv_gemm(y, p["c4"], 1, 3, 1, (0, d), (1, d), "relu", add=x, add_mode="post")
    return y


def conv_block(x, p, activation, upsample_factor=2):
    """ConvBlock(k=3,s=1,p=1) with nearest upsample / folded BN / activation."""
    if upsample_factor and upsample_factor > 1:
        x = upsample_nearest(x, upsample_factor)
    return conv_gemm(x, p, 3, 3, 1, (1, 1), (1, 1), activation)


# ----------------------------------------------------------------------------- params


class ParamGen:
    def __init__(self, key):
        self.key = key

    def _take(self):
        self.key, sub = jax.random.split(self.key)
        return sub

    def conv(self, kh, kw, cin, cout):
        w = 0.05 * jax.random.normal(self._take(), (kh, kw, cin, cout), jnp.float32)
        b = 0.01 * jax.random.normal(self._take(), (cout,), jnp.float32)
        return w, b

    def bn(self, c, eps=1e-3):
        gamma = 1.0 + 0.1 * jax.random.normal(self._take(), (c,), jnp.float32)
        beta = 0.05 * jax.random.normal(self._take(), (c,), jnp.float32)
        mean = 0.05 * jax.random.normal(self._take(), (c,), jnp.float32)
        var = 1.0 + 0.1 * jnp.abs(jax.random.normal(self._take(), (c,), jnp.float32))
        return (gamma, beta, mean, var, eps)


def _fold(w, b, bn=None, pool_pad=0):
    """Fold conv weight + bias (+ inference BN) into {wf: (K, cout) bf16, scale, shift: (cout,) f32}.

    pool_pad > 0 appends zero weight columns for the downsampler's pooled channels; BN then
    covers the full concatenated width."""
    kh, kw, cin, cc = w.shape
    wf = w.reshape(kh * kw * cin, cc)
    if pool_pad:
        wf = jnp.pad(wf, ((0, 0), (0, pool_pad)))
    cout = cc + pool_pad
    if bn is not None:
        gamma, beta, mean, var, eps = bn
        scale = gamma / jnp.sqrt(var + eps)
        bias_full = jnp.pad(b, (0, pool_pad)) if pool_pad else b
        shift = (bias_full - mean) * scale + beta
    else:
        scale = jnp.ones((cout,), jnp.float32)
        shift = b
    return {
        "wf": wf.astype(jnp.bfloat16),
        "scale": scale.astype(jnp.float32),
        "shift": shift.astype(jnp.float32),
    }


def make_resblock_params(pg, c):
    w1, b1 = pg.conv(3, 1, c, c)
    w2, b2 = pg.conv(1, 3, c, c)
    w3, b3 = pg.conv(3, 1, c, c)
    w4, b4 = pg.conv(1, 3, c, c)
    return {
        "c1": _fold(w1, b1),
        "c2": _fold(w2, b2, pg.bn(c)),
        "c3": _fold(w3, b3),
        "c4": _fold(w4, b4, pg.bn(c)),
    }


def build_params(pg, input_channels=3):
    """Array-only pytree (safe to pass straight into jit); static structure comes from the
    module-level CHANNELS / DILATIONS / UP_CHANNELS constants."""
    params = {"encoder": [], "decoder": []}

    # ---- encoder: per stage, first "dilation slot" is the downsampler, rest are res blocks
    in_ch = input_channels
    for stage_idx, out_ch in enumerate(CHANNELS):
        w, b = pg.conv(3, 3, in_ch, out_ch - in_ch)
        stage = {
            "down": _fold(w, b, pg.bn(out_ch), pool_pad=in_ch),
            "blocks": [make_resblock_params(pg, out_ch) for _ in DILATIONS[stage_idx][1:]],
        }
        params["encoder"].append(stage)
        in_ch = out_ch

    # ---- decoder: dilations reversed per stage then reversed overall (as in ERFNetDecoder)
    dec_dilations = [list(reversed(d)) for d in DILATIONS][::-1]
    in_ch = 128
    for i, out_ch in enumerate(UP_CHANNELS):
        ds = dec_dilations[i]
        stage = {"blocks": [], "up": None}
        for j, _ in enumerate(ds):
            if j == len(ds) - 1:
                oc = 3 if i == 2 else out_ch
                use_bn = i != 2
                w, b = pg.conv(3, 3, in_ch, oc)
                stage["up"] = _fold(w, b, pg.bn(oc, eps=1e-5) if use_bn else None)
                in_ch = out_ch
            else:
                stage["blocks"].append(make_resblock_params(pg, in_ch))
        params["decoder"].append(stage)
    return params


# ----------------------------------------------------------------------------- forward


def erfnet_ae_forward(x_nchw, params):
    x = jnp.transpose(x_nchw, (0, 2, 3, 1)).astype(jnp.float32)  # -> NHWC

    # encoder (downsample x8: 16x16 -> 2x2)
    for stage_idx, stage in enumerate(params["encoder"]):
        x = downsampler(x, stage["down"])
        for blk, d in zip(stage["blocks"], DILATIONS[stage_idx][1:]):
            x = res_block(x, blk, d)

    # bottleneck / bridge: identity (flatten_bottleneck=False, compress_bottleneck=False)

    # decoder (upsample x8: 2x2 -> 16x16), final Tanh fused into the last conv
    dec_dilations = [list(reversed(d)) for d in DILATIONS][::-1]
    n_dec = len(params["decoder"])
    for i, stage in enumerate(params["decoder"]):
        for blk, d in zip(stage["blocks"], dec_dilations[i][:-1]):
            x = res_block(x, blk, d)
        act = "relu" if i < n_dec - 1 else "tanh"
        x = conv_block(x, stage["up"], act, upsample_factor=2)

    return jnp.transpose(x, (0, 3, 1, 2))  # -> NCHW


# ----------------------------------------------------------------------------- main

if __name__ == "__main__":
    key = jax.random.PRNGKey(0)
    pg = ParamGen(key)
    params = build_params(pg, input_channels=3)

    x = jax.random.normal(jax.random.fold_in(key, 123), (2, 3, 16, 16), jnp.float32)

    forward = jax.jit(erfnet_ae_forward)
    y = forward(x, params)
    y = jax.block_until_ready(y)

    assert y.shape == (2, 3, 16, 16), y.shape
    assert bool(jnp.all(jnp.isfinite(y)))
    assert bool(jnp.all(jnp.abs(y) <= 1.0 + 1e-6))  # tanh output range
    print("KERNEL_OK")
</pallas_src>

<mosaic_0001>
module attributes {stable_mosaic.version = 11 : i64} {
  func.func @gemm_add_kernel(%arg0: i32, %arg1: memref<64x27xbf16, #tpu.memory_space<vmem>>, %arg2: memref<27x128xbf16, #tpu.memory_space<vmem>>, %arg3: memref<1x128xf32, #tpu.memory_space<vmem>>, %arg4: memref<1x128xf32, #tpu.memory_space<vmem>>, %arg5: memref<64x128xf32, #tpu.memory_space<vmem>>, %arg6: memref<64x128xf32, #tpu.memory_space<vmem>>) attributes {dimension_semantics = [#tpu.dimension_semantics<parallel>], iteration_bounds = array<i64: 2>, scalar_prefetch = 0 : i64, scratch_operands = 0 : i64, tpu.core_type = #tpu.core_type<tc>, window_params = [{transform_indices = @transform_0, window_bounds = array<i64: 64, 27>}, {pipeline_mode = #tpu.pipeline_mode<synchronous>, transform_indices = @transform_1, window_bounds = array<i64: 27, 128>}, {pipeline_mode = #tpu.pipeline_mode<synchronous>, transform_indices = @transform_2, window_bounds = array<i64: 1, 128>}, {pipeline_mode = #tpu.pipeline_mode<synchronous>, transform_indices = @transform_3, window_bounds = array<i64: 1, 128>}, {transform_indices = @transform_4, window_bounds = array<i64: 64, 128>}, {transform_indices = @transform_5, window_bounds = array<i64: 64, 128>}]} {
    %c0 = arith.constant 0 : index
    %c0_0 = arith.constant 0 : index
    %0 = vector.load %arg1[%c0, %c0_0] : memref<64x27xbf16, #tpu.memory_space<vmem>>, vector<64x27xbf16>
    %c0_1 = arith.constant 0 : index
    %c0_2 = arith.constant 0 : index
    %1 = vector.load %arg2[%c0_1, %c0_2] : memref<27x128xbf16, #tpu.memory_space<vmem>>, vector<27x128xbf16>
    %cst = arith.constant dense<0.000000e+00> : vector<64x128xf32>
    %2 = tpu.matmul %0, %1, %cst {dimension_numbers = #tpu.dot_dimension_numbers<[1], [0], [0], [1], [0, 0, 1, 1], [], []>} : vector<64x27xbf16>, vector<27x128xbf16>, vector<64x128xf32> -> vector<64x128xf32>
    %c0_3 = arith.constant 0 : index
    %c0_4 = arith.constant 0 : index
    %3 = vector.load %arg5[%c0_3, %c0_4] : memref<64x128xf32, #tpu.memory_space<vmem>>, vector<64x128xf32>
    %4 = arith.addf %2, %3 : vector<64x128xf32>
    %c0_5 = arith.constant 0 : index
    %c0_6 = arith.constant 0 : index
    %5 = vector.load %arg3[%c0_5, %c0_6] : memref<1x128xf32, #tpu.memory_space<vmem>>, vector<1x128xf32>
    %6 = vector.broadcast %5 : vector<1x128xf32> to vector<64x128xf32>
    %7 = arith.mulf %4, %6 : vector<64x128xf32>
    %c0_7 = arith.constant 0 : index
    %c0_8 = arith.constant 0 : index
    %8 = vector.load %arg4[%c0_7, %c0_8] : memref<1x128xf32, #tpu.memory_space<vmem>>, vector<1x128xf32>
    %9 = vector.broadcast %8 : vector<1x128xf32> to vector<64x128xf32>
    %10 = arith.addf %7, %9 : vector<64x128xf32>
    %cst_9 = arith.constant 0.000000e+00 : f32
    %11 = vector.broadcast %cst_9 : f32 to vector<64x128xf32>
    %12 = arith.maximumf %10, %11 : vector<64x128xf32>
    %c0_10 = arith.constant 0 : index
    %c0_11 = arith.constant 0 : index
    %13 = vector.load %arg6[%c0_10, %c0_11] : memref<64x128xf32, #tpu.memory_space<vmem>>, vector<64x128xf32>
    tpu.vector_store %arg6[%c0_10, %c0_11], %12 {strides = array<i32>} : memref<64x128xf32, #tpu.memory_space<vmem>>, vector<64x128xf32>,
    return
  }
  func.func @transform_0(%arg0: i32) -> (i32, i32) {
    %c0_i32 = arith.constant 0 : i32
    %c0_i32_0 = arith.constant 0 : i32
    return %arg0, %c0_i32 : i32, i32
  }
  func.func @transform_1(%arg0: i32) -> (i32, i32) {
    %c0_i32 = arith.constant 0 : i32
    %c0_i32_0 = arith.constant 0 : i32
    %c0_i32_1 = arith.constant 0 : i32
    return %c0_i32, %c0_i32_0 : i32, i32
  }
  func.func @transform_2(%arg0: i32) -> (i32, i32) {
    %c0_i32 = arith.constant 0 : i32
    %c0_i32_0 = arith.constant 0 : i32
    %c0_i32_1 = arith.constant 0 : i32
    return %c0_i32, %c0_i32_0 : i32, i32
  }
  func.func @transform_3(%arg0: i32) -> (i32, i32) {
    %c0_i32 = arith.constant 0 : i32
    %c0_i32_0 = arith.constant 0 : i32
    %c0_i32_1 = arith.constant 0 : i32
    return %c0_i32, %c0_i32_0 : i32, i32
  }
  func.func @transform_4(%arg0: i32) -> (i32, i32) {
    %c0_i32 = arith.constant 0 : i32
    %c0_i32_0 = arith.constant 0 : i32
    return %arg0, %c0_i32 : i32, i32
  }
  func.func @transform_5(%arg0: i32) -> (i32, i32) {
    %c0_i32 = arith.constant 0 : i32
    %c0_i32_0 = arith.constant 0 : i32
    return %arg0, %c0_i32 : i32, i32
  }
}

module attributes {stable_mosaic.version = 11 : i64} {
  func.func @gemm_add_kernel(%arg0: i32, %arg1: memref<32x144xbf16, #tpu.memory_space<vmem>>, %arg2: memref<144x128xbf16, #tpu.memory_space<vmem>>, %arg3: memref<1x128xf32, #tpu.memory_space<vmem>>, %arg4: memref<1x128xf32, #tpu.memory_space<vmem>>, %arg5: memref<32x128xf32, #tpu.memory_space<vmem>>, %arg6: memref<32x128xf32, #tpu.memory_space<vmem>>) attributes {dimension_semantics = [#tpu.dimension_semantics<parallel>], iteration_bounds = array<i64: 1>, scalar_prefetch = 0 : i64, scratch_operands = 0 : i64, tpu.core_type = #tpu.core_type<tc>, window_params = [{transform_indices = @transform_0, window_bounds = array<i64: 32, 144>}, {pipeline_mode = #tpu.pipeline_mode<synchronous>, transform_indices = @transform_1, window_bounds = array<i64: 144, 128>}, {pipeline_mode = #tpu.pipeline_mode<synchronous>, transform_indices = @transform_2, window_bounds = array<i64: 1, 128>}, {pipeline_mode = #tpu.pipeline_mode<synchronous>, transform_indices = @transform_3, window_bounds = array<i64: 1, 128>}, {transform_indices = @transform_4, window_bounds = array<i64: 32, 128>}, {transform_indices = @transform_5, window_bounds = array<i64: 32, 128>}]} {
    %c0 = arith.constant 0 : index
    %c0_0 = arith.constant 0 : index
    %0 = vector.load %arg1[%c0, %c0_0] : memref<32x144xbf16, #tpu.memory_space<vmem>>, vector<32x144xbf16>
    %c0_1 = arith.constant 0 : index
    %c0_2 = arith.constant 0 : index
    %1 = vector.load %arg2[%c0_1, %c0_2] : memref<144x128xbf16, #tpu.memory_space<vmem>>, vector<144x128xbf16>
    %cst = arith.constant dense<0.000000e+00> : vector<32x128xf32>
    %2 = tpu.matmul %0, %1, %cst {dimension_numbers = #tpu.dot_dimension_numbers<[1], [0], [0], [1], [0, 0, 1, 1], [], []>} : vector<32x144xbf16>, vector<144x128xbf16>, vector<32x128xf32> -> vector<32x128xf32>
    %c0_3 = arith.constant 0 : index
    %c0_4 = arith.constant 0 : index
    %3 = vector.load %arg5[%c0_3, %c0_4] : memref<32x128xf32, #tpu.memory_space<vmem>>, vector<32x128xf32>
    %4 = arith.addf %2, %3 : vector<32x128xf32>
    %c0_5 = arith.constant 0 : index
    %c0_6 = arith.constant 0 : index
    %5 = vector.load %arg3[%c0_5, %c0_6] : memref<1x128xf32, #tpu.memory_space<vmem>>, vector<1x128xf32>
    %6 = vector.broadcast %5 : vector<1x128xf32> to vector<32x128xf32>
    %7 = arith.mulf %4, %6 : vector<32x128xf32>
    %c0_7 = arith.constant 0 : index
    %c0_8 = arith.constant 0 : index
    %8 = vector.load %arg4[%c0_7, %c0_8] : memref<1x128xf32, #tpu.memory_space<vmem>>, vector<1x128xf32>
    %9 = vector.broadcast %8 : vector<1x128xf32> to vector<32x128xf32>
    %10 = arith.addf %7, %9 : vector<32x128xf32>
    %cst_9 = arith.constant 0.000000e+00 : f32
    %11 = vector.broadcast %cst_9 : f32 to vector<32x128xf32>
    %12 = arith.maximumf %10, %11 : vector<32x128xf32>
    %c0_10 = arith.constant 0 : index
    %c0_11 = arith.constant 0 : index
    %13 = vector.load %arg6[%c0_10, %c0_11] : memref<32x128xf32, #tpu.memory_space<vmem>>, vector<32x128xf32>
    tpu.vector_store %arg6[%c0_10, %c0_11], %12 {strides = array<i32>} : memref<32x128xf32, #tpu.memory_space<vmem>>, vector<32x128xf32>,
    return
  }
  func.func @transform_0(%arg0: i32) -> (i32, i32) {
    %c0_i32 = arith.constant 0 : i32
    %c0_i32_0 = arith.constant 0 : i32
    return %arg0, %c0_i32 : i32, i32
  }
  func.func @transform_1(%arg0: i32) -> (i32, i32) {
    %c0_i32 = arith.constant 0 : i32
    %c0_i32_0 = arith.constant 0 : i32
    %c0_i32_1 = arith.constant 0 : i32
    return %c0_i32, %c0_i32_0 : i32, i32
  }
  func.func @transform_2(%arg0: i32) -> (i32, i32) {
    %c0_i32 = arith.constant 0 : i32
    %c0_i32_0 = arith.constant 0 : i32
    %c0_i32_1 = arith.constant 0 : i32
    return %c0_i32, %c0_i32_0 : i32, i32
  }
  func.func @transform_3(%arg0: i32) -> (i32, i32) {
    %c0_i32 = arith.constant 0 : i32
    %c0_i32_0 = arith.constant 0 : i32
    %c0_i32_1 = arith.constant 0 : i32
    return %c0_i32, %c0_i32_0 : i32, i32
  }
  func.func @transform_4(%arg0: i32) -> (i32, i32) {
    %c0_i32 = arith.constant 0 : i32
    %c0_i32_0 = arith.constant 0 : i32
    return %arg0, %c0_i32 : i32, i32
  }
  func.func @transform_5(%arg0: i32) -> (i32, i32) {
    %c0_i32 = arith.constant 0 : i32
    %c0_i32_0 = arith.constant 0 : i32
    return %arg0, %c0_i32 : i32, i32
  }
}

module attributes {stable_mosaic.version = 11 : i64} {
  func.func @gemm_kernel(%arg0: i32, %arg1: memref<32x192xbf16, #tpu.memory_space<vmem>>, %arg2: memref<192x128xbf16, #tpu.memory_space<vmem>>, %arg3: memref<1x128xf32, #tpu.memory_space<vmem>>, %arg4: memref<1x128xf32, #tpu.memory_space<vmem>>, %arg5: memref<32x128xf32, #tpu.memory_space<vmem>>) attributes {dimension_semantics = [#tpu.dimension_semantics<parallel>], iteration_bounds = array<i64: 1>, scalar_prefetch = 0 : i64, scratch_operands = 0 : i64, tpu.core_type = #tpu.core_type<tc>, window_params = [{transform_indices = @transform_0, window_bounds = array<i64: 32, 192>}, {pipeline_mode = #tpu.pipeline_mode<synchronous>, transform_indices = @transform_1, window_bounds = array<i64: 192, 128>}, {pipeline_mode = #tpu.pipeline_mode<synchronous>, transform_indices = @transform_2, window_bounds = array<i64: 1, 128>}, {pipeline_mode = #tpu.pipeline_mode<synchronous>, transform_indices = @transform_3, window_bounds = array<i64: 1, 128>}, {transform_indices = @transform_4, window_bounds = array<i64: 32, 128>}]} {
    %c0 = arith.constant 0 : index
    %c0_0 = arith.constant 0 : index
    %0 = vector.load %arg1[%c0, %c0_0] : memref<32x192xbf16, #tpu.memory_space<vmem>>, vector<32x192xbf16>
    %c0_1 = arith.constant 0 : index
    %c0_2 = arith.constant 0 : index
    %1 = vector.load %arg2[%c0_1, %c0_2] : memref<192x128xbf16, #tpu.memory_space<vmem>>, vector<192x128xbf16>
    %cst = arith.constant dense<0.000000e+00> : vector<32x128xf32>
    %2 = tpu.matmul %0, %1, %cst {dimension_numbers = #tpu.dot_dimension_numbers<[1], [0], [0], [1], [0, 0, 1, 1], [], []>} : vector<32x192xbf16>, vector<192x128xbf16>, vector<32x128xf32> -> vector<32x128xf32>
    %c0_3 = arith.constant 0 : index
    %c0_4 = arith.constant 0 : index
    %3 = vector.load %arg3[%c0_3, %c0_4] : memref<1x128xf32, #tpu.memory_space<vmem>>, vector<1x128xf32>
    %4 = vector.broadcast %3 : vector<1x128xf32> to vector<32x128xf32>
    %5 = arith.mulf %2, %4 : vector<32x128xf32>
    %c0_5 = arith.constant 0 : index
    %c0_6 = arith.constant 0 : index
    %6 = vector.load %arg4[%c0_5, %c0_6] : memref<1x128xf32, #tpu.memory_space<vmem>>, vector<1x128xf32>
    %7 = vector.broadcast %6 : vector<1x128xf32> to vector<32x128xf32>
    %8 = arith.addf %5, %7 : vector<32x128xf32>
    %cst_7 = arith.constant 0.000000e+00 : f32
    %9 = vector.broadcast %cst_7 : f32 to vector<32x128xf32>
    %10 = arith.maximumf %8, %9 : vector<32x128xf32>
    %c0_8 = arith.constant 0 : index
    %c0_9 = arith.constant 0 : index
    %11 = vector.load %arg5[%c0_8, %c0_9] : memref<32x128xf32, #tpu.memory_space<vmem>>, vector<32x128xf32>
    tpu.vector_store %arg5[%c0_8, %c0_9], %10 {strides = array<i32>} : memref<32x128xf32, #tpu.memory_space<vmem>>, vector<32x128xf32>,
    return
  }
  func.func @transform_0(%arg0: i32) -> (i32, i32) {
    %c0_i32 = arith.constant 0 : i32
    %c0_i32_0 = arith.constant 0 : i32
    return %arg0, %c0_i32 : i32, i32
  }
  func.func @transform_1(%arg0: i32) -> (i32, i32) {
    %c0_i32 = arith.constant 0 : i32
    %c0_i32_0 = arith.constant 0 : i32
    %c0_i32_1 = arith.constant 0 : i32
    return %c0_i32, %c0_i32_0 : i32, i32
  }
  func.func @transform_2(%arg0: i32) -> (i32, i32) {
    %c0_i32 = arith.constant 0 : i32
    %c0_i32_0 = arith.constant 0 : i32
    %c0_i32_1 = arith.constant 0 : i32
    return %c0_i32, %c0_i32_0 : i32, i32
  }
  func.func @transform_3(%arg0: i32) -> (i32, i32) {
    %c0_i32 = arith.constant 0 : i32
    %c0_i32_0 = arith.constant 0 : i32
    %c0_i32_1 = arith.constant 0 : i32
    return %c0_i32, %c0_i32_0 : i32, i32
  }
  func.func @transform_4(%arg0: i32) -> (i32, i32) {
    %c0_i32 = arith.constant 0 : i32
    %c0_i32_0 = arith.constant 0 : i32
    return %arg0, %c0_i32 : i32, i32
  }
}

module attributes {stable_mosaic.version = 11 : i64} {
  func.func @gemm_add_kernel(%arg0: i32, %arg1: memref<32x192xbf16, #tpu.memory_space<vmem>>, %arg2: memref<192x128xbf16, #tpu.memory_space<vmem>>, %arg3: memref<1x128xf32, #tpu.memory_space<vmem>>, %arg4: memref<1x128xf32, #tpu.memory_space<vmem>>, %arg5: memref<32x128xf32, #tpu.memory_space<vmem>>, %arg6: memref<32x128xf32, #tpu.memory_space<vmem>>) attributes {dimension_semantics = [#tpu.dimension_semantics<parallel>], iteration_bounds = array<i64: 1>, scalar_prefetch = 0 : i64, scratch_operands = 0 : i64, tpu.core_type = #tpu.core_type<tc>, window_params = [{transform_indices = @transform_0, window_bounds = array<i64: 32, 192>}, {pipeline_mode = #tpu.pipeline_mode<synchronous>, transform_indices = @transform_1, window_bounds = array<i64: 192, 128>}, {pipeline_mode = #tpu.pipeline_mode<synchronous>, transform_indices = @transform_2, window_bounds = array<i64: 1, 128>}, {pipeline_mode = #tpu.pipeline_mode<synchronous>, transform_indices = @transform_3, window_bounds = array<i64: 1, 128>}, {transform_indices = @transform_4, window_bounds = array<i64: 32, 128>}, {transform_indices = @transform_5, window_bounds = array<i64: 32, 128>}]} {
    %c0 = arith.constant 0 : index
    %c0_0 = arith.constant 0 : index
    %0 = vector.load %arg1[%c0, %c0_0] : memref<32x192xbf16, #tpu.memory_space<vmem>>, vector<32x192xbf16>
    %c0_1 = arith.constant 0 : index
    %c0_2 = arith.constant 0 : index
    %1 = vector.load %arg2[%c0_1, %c0_2] : memref<192x128xbf16, #tpu.memory_space<vmem>>, vector<192x128xbf16>
    %cst = arith.constant dense<0.000000e+00> : vector<32x128xf32>
    %2 = tpu.matmul %0, %1, %cst {dimension_numbers = #tpu.dot_dimension_numbers<[1], [0], [0], [1], [0, 0, 1, 1], [], []>} : vector<32x192xbf16>, vector<192x128xbf16>, vector<32x128xf32> -> vector<32x128xf32>
    %c0_3 = arith.constant 0 : index
    %c0_4 = arith.constant 0 : index
    %3 = vector.load %arg3[%c0_3, %c0_4] : memref<1x128xf32, #tpu.memory_space<vmem>>, vector<1x128xf32>
    %4 = vector.broadcast %3 : vector<1x128xf32> to vector<32x128xf32>
    %5 = arith.mulf %2, %4 : vector<32x128xf32>
    %c0_5 = arith.constant 0 : index
    %c0_6 = arith.constant 0 : index
    %6 = vector.load %arg4[%c0_5, %c0_6] : memref<1x128xf32, #tpu.memory_space<vmem>>, vector<1x128xf32>
    %7 = vector.broadcast %6 : vector<1x128xf32> to vector<32x128xf32>
    %8 = arith.addf %5, %7 : vector<32x128xf32>
    %c0_7 = arith.constant 0 : index
    %c0_8 = arith.constant 0 : index
    %9 = vector.load %arg5[%c0_7, %c0_8] : memref<32x128xf32, #tpu.memory_space<vmem>>, vector<32x128xf32>
    %10 = arith.addf %8, %9 : vector<32x128xf32>
    %cst_9 = arith.constant 0.000000e+00 : f32
    %11 = vector.broadcast %cst_9 : f32 to vector<32x128xf32>
    %12 = arith.maximumf %10, %11 : vector<32x128xf32>
    %c0_10 = arith.constant 0 : index
    %c0_11 = arith.constant 0 : index
    %13 = vector.load %arg6[%c0_10, %c0_11] : memref<32x128xf32, #tpu.memory_space<vmem>>, vector<32x128xf32>
    tpu.vector_store %arg6[%c0_10, %c0_11], %12 {strides = array<i32>} : memref<32x128xf32, #tpu.memory_space<vmem>>, vector<32x128xf32>,
    return
  }
  func.func @transform_0(%arg0: i32) -> (i32, i32) {
    %c0_i32 = arith.constant 0 : i32
    %c0_i32_0 = arith.constant 0 : i32
    return %arg0, %c0_i32 : i32, i32
  }
  func.func @transform_1(%arg0: i32) -> (i32, i32) {
    %c0_i32 = arith.constant 0 : i32
    %c0_i32_0 = arith.constant 0 : i32
    %c0_i32_1 = arith.constant 0 : i32
    return %c0_i32, %c0_i32_0 : i32, i32
  }
  func.func @transform_2(%arg0: i32) -> (i32, i32) {
    %c0_i32 = arith.constant 0 : i32
    %c0_i32_0 = arith.constant 0 : i32
    %c0_i32_1 = arith.constant 0 : i32
    return %c0_i32, %c0_i32_0 : i32, i32
  }
  func.func @transform_3(%arg0: i32) -> (i32, i32) {
    %c0_i32 = arith.constant 0 : i32
    %c0_i32_0 = arith.constant 0 : i32
    %c0_i32_1 = arith.constant 0 : i32
    return %c0_i32, %c0_i32_0 : i32, i32
  }
  func.func @transform_4(%arg0: i32) -> (i32, i32) {
    %c0_i32 = arith.constant 0 : i32
    %c0_i32_0 = arith.constant 0 : i32
    return %arg0, %c0_i32 : i32, i32
  }
  func.func @transform_5(%arg0: i32) -> (i32, i32) {
    %c0_i32 = arith.constant 0 : i32
    %c0_i32_0 = arith.constant 0 : i32
    return %arg0, %c0_i32 : i32, i32
  }
}

module attributes {stable_mosaic.version = 11 : i64} {
  func.func @gemm_add_kernel(%arg0: i32, %arg1: memref<8x576xbf16, #tpu.memory_space<vmem>>, %arg2: memref<576x128xbf16, #tpu.memory_space<vmem>>, %arg3: memref<1x128xf32, #tpu.memory_space<vmem>>, %arg4: memref<1x128xf32, #tpu.memory_space<vmem>>, %arg5: memref<8x128xf32, #tpu.memory_space<vmem>>, %arg6: memref<8x128xf32, #tpu.memory_space<vmem>>) attributes {dimension_semantics = [#tpu.dimension_semantics<parallel>], iteration_bounds = array<i64: 1>, scalar_prefetch = 0 : i64, scratch_operands = 0 : i64, tpu.core_type = #tpu.core_type<tc>, window_params = [{transform_indices = @transform_0, window_bounds = array<i64: 8, 576>}, {pipeline_mode = #tpu.pipeline_mode<synchronous>, transform_indices = @transform_1, window_bounds = array<i64: 576, 128>}, {pipeline_mode = #tpu.pipeline_mode<synchronous>, transform_indices = @transform_2, window_bounds = array<i64: 1, 128>}, {pipeline_mode = #tpu.pipeline_mode<synchronous>, transform_indices = @transform_3, window_bounds = array<i64: 1, 128>}, {transform_indices = @transform_4, window_bounds = array<i64: 8, 128>}, {transform_indices = @transform_5, window_bounds = array<i64: 8, 128>}]} {
    %c0 = arith.constant 0 : index
    %c0_0 = arith.constant 0 : index
    %0 = vector.load %arg1[%c0, %c0_0] : memref<8x576xbf16, #tpu.memory_space<vmem>>, vector<8x576xbf16>
    %c0_1 = arith.constant 0 : index
    %c0_2 = arith.constant 0 : index
    %1 = vector.load %arg2[%c0_1, %c0_2] : memref<576x128xbf16, #tpu.memory_space<vmem>>, vector<576x128xbf16>
    %cst = arith.constant dense<0.000000e+00> : vector<8x128xf32>
    %2 = tpu.matmul %0, %1, %cst {dimension_numbers = #tpu.dot_dimension_numbers<[1], [0], [0], [1], [0, 0, 1, 1], [], []>} : vector<8x576xbf16>, vector<576x128xbf16>, vector<8x128xf32> -> vector<8x128xf32>
    %c0_3 = arith.constant 0 : index
    %c0_4 = arith.constant 0 : index
    %3 = vector.load %arg5[%c0_3, %c0_4] : memref<8x128xf32, #tpu.memory_space<vmem>>, vector<8x128xf32>
    %4 = arith.addf %2, %3 : vector<8x128xf32>
    %c0_5 = arith.constant 0 : index
    %c0_6 = arith.constant 0 : index
    %5 = vector.load %arg3[%c0_5, %c0_6] : memref<1x128xf32, #tpu.memory_space<vmem>>, vector<1x128xf32>
    %6 = vector.broadcast %5 : vector<1x128xf32> to vector<8x128xf32>
    %7 = arith.mulf %4, %6 : vector<8x128xf32>
    %c0_7 = arith.constant 0 : index
    %c0_8 = arith.constant 0 : index
    %8 = vector.load %arg4[%c0_7, %c0_8] : memref<1x128xf32, #tpu.memory_space<vmem>>, vector<1x128xf32>
    %9 = vector.broadcast %8 : vector<1x128xf32> to vector<8x128xf32>
    %10 = arith.addf %7, %9 : vector<8x128xf32>
    %cst_9 = arith.constant 0.000000e+00 : f32
    %11 = vector.broadcast %cst_9 : f32 to vector<8x128xf32>
    %12 = arith.maximumf %10, %11 : vector<8x128xf32>
    %c0_10 = arith.constant 0 : index
    %c0_11 = arith.constant 0 : index
    %13 = vector.load %arg6[%c0_10, %c0_11] : memref<8x128xf32, #tpu.memory_space<vmem>>, vector<8x128xf32>
    tpu.vector_store %arg6[%c0_10, %c0_11], %12 {strides = array<i32>} : memref<8x128xf32, #tpu.memory_space<vmem>>, vector<8x128xf32>,
    return
  }
  func.func @transform_0(%arg0: i32) -> (i32, i32) {
    %c0_i32 = arith.constant 0 : i32
    %c0_i32_0 = arith.constant 0 : i32
    return %arg0, %c0_i32 : i32, i32
  }
  func.func @transform_1(%arg0: i32) -> (i32, i32) {
    %c0_i32 = arith.constant 0 : i32
    %c0_i32_0 = arith.constant 0 : i32
    %c0_i32_1 = arith.constant 0 : i32
    return %c0_i32, %c0_i32_0 : i32, i32
  }
  func.func @transform_2(%arg0: i32) -> (i32, i32) {
    %c0_i32 = arith.constant 0 : i32
    %c0_i32_0 = arith.constant 0 : i32
    %c0_i32_1 = arith.constant 0 : i32
    return %c0_i32, %c0_i32_0 : i32, i32
  }
  func.func @transform_3(%arg0: i32) -> (i32, i32) {
    %c0_i32 = arith.constant 0 : i32
    %c0_i32_0 = arith.constant 0 : i32
    %c0_i32_1 = arith.constant 0 : i32
    return %c0_i32, %c0_i32_0 : i32, i32
  }
  func.func @transform_4(%arg0: i32) -> (i32, i32) {
    %c0_i32 = arith.constant 0 : i32
    %c0_i32_0 = arith.constant 0 : i32
    return %arg0, %c0_i32 : i32, i32
  }
  func.func @transform_5(%arg0: i32) -> (i32, i32) {
    %c0_i32 = arith.constant 0 : i32
    %c0_i32_0 = arith.constant 0 : i32
    return %arg0, %c0_i32 : i32, i32
  }
}

module attributes {stable_mosaic.version = 11 : i64} {
  func.func @gemm_kernel(%arg0: i32, %arg1: memref<8x384xbf16, #tpu.memory_space<vmem>>, %arg2: memref<384x128xbf16, #tpu.memory_space<vmem>>, %arg3: memref<1x128xf32, #tpu.memory_space<vmem>>, %arg4: memref<1x128xf32, #tpu.memory_space<vmem>>, %arg5: memref<8x128xf32, #tpu.memory_space<vmem>>) attributes {dimension_semantics = [#tpu.dimension_semantics<parallel>], iteration_bounds = array<i64: 1>, scalar_prefetch = 0 : i64, scratch_operands = 0 : i64, tpu.core_type = #tpu.core_type<tc>, window_params = [{transform_indices = @transform_0, window_bounds = array<i64: 8, 384>}, {pipeline_mode = #tpu.pipeline_mode<synchronous>, transform_indices = @transform_1, window_bounds = array<i64: 384, 128>}, {pipeline_mode = #tpu.pipeline_mode<synchronous>, transform_indices = @transform_2, window_bounds = array<i64: 1, 128>}, {pipeline_mode = #tpu.pipeline_mode<synchronous>, transform_indices = @transform_3, window_bounds = array<i64: 1, 128>}, {transform_indices = @transform_4, window_bounds = array<i64: 8, 128>}]} {
    %c0 = arith.constant 0 : index
    %c0_0 = arith.constant 0 : index
    %0 = vector.load %arg1[%c0, %c0_0] : memref<8x384xbf16, #tpu.memory_space<vmem>>, vector<8x384xbf16>
    %c0_1 = arith.constant 0 : index
    %c0_2 = arith.constant 0 : index
    %1 = vector.load %arg2[%c0_1, %c0_2] : memref<384x128xbf16, #tpu.memory_space<vmem>>, vector<384x128xbf16>
    %cst = arith.constant dense<0.000000e+00> : vector<8x128xf32>
    %2 = tpu.matmul %0, %1, %cst {dimension_numbers = #tpu.dot_dimension_numbers<[1], [0], [0], [1], [0, 0, 1, 1], [], []>} : vector<8x384xbf16>, vector<384x128xbf16>, vector<8x128xf32> -> vector<8x128xf32>
    %c0_3 = arith.constant 0 : index
    %c0_4 = arith.constant 0 : index
    %3 = vector.load %arg3[%c0_3, %c0_4] : memref<1x128xf32, #tpu.memory_space<vmem>>, vector<1x128xf32>
    %4 = vector.broadcast %3 : vector<1x128xf32> to vector<8x128xf32>
    %5 = arith.mulf %2, %4 : vector<8x128xf32>
    %c0_5 = arith.constant 0 : index
    %c0_6 = arith.constant 0 : index
    %6 = vector.load %arg4[%c0_5, %c0_6] : memref<1x128xf32, #tpu.memory_space<vmem>>, vector<1x128xf32>
    %7 = vector.broadcast %6 : vector<1x128xf32> to vector<8x128xf32>
    %8 = arith.addf %5, %7 : vector<8x128xf32>
    %cst_7 = arith.constant 0.000000e+00 : f32
    %9 = vector.broadcast %cst_7 : f32 to vector<8x128xf32>
    %10 = arith.maximumf %8, %9 : vector<8x128xf32>
    %c0_8 = arith.constant 0 : index
    %c0_9 = arith.constant 0 : index
    %11 = vector.load %arg5[%c0_8, %c0_9] : memref<8x128xf32, #tpu.memory_space<vmem>>, vector<8x128xf32>
    tpu.vector_store %arg5[%c0_8, %c0_9], %10 {strides = array<i32>} : memref<8x128xf32, #tpu.memory_space<vmem>>, vector<8x128xf32>,
    return
  }
  func.func @transform_0(%arg0: i32) -> (i32, i32) {
    %c0_i32 = arith.constant 0 : i32
    %c0_i32_0 = arith.constant 0 : i32
    return %arg0, %c0_i32 : i32, i32
  }
  func.func @transform_1(%arg0: i32) -> (i32, i32) {
    %c0_i32 = arith.constant 0 : i32
    %c0_i32_0 = arith.constant 0 : i32
    %c0_i32_1 = arith.constant 0 : i32
    return %c0_i32, %c0_i32_0 : i32, i32
  }
  func.func @transform_2(%arg0: i32) -> (i32, i32) {
    %c0_i32 = arith.constant 0 : i32
    %c0_i32_0 = arith.constant 0 : i32
    %c0_i32_1 = arith.constant 0 : i32
    return %c0_i32, %c0_i32_0 : i32, i32
  }
  func.func @transform_3(%arg0: i32) -> (i32, i32) {
    %c0_i32 = arith.constant 0 : i32
    %c0_i32_0 = arith.constant 0 : i32
    %c0_i32_1 = arith.constant 0 : i32
    return %c0_i32, %c0_i32_0 : i32, i32
  }
  func.func @transform_4(%arg0: i32) -> (i32, i32) {
    %c0_i32 = arith.constant 0 : i32
    %c0_i32_0 = arith.constant 0 : i32
    return %arg0, %c0_i32 : i32, i32
  }
}

module attributes {stable_mosaic.version = 11 : i64} {
  func.func @gemm_add_kernel(%arg0: i32, %arg1: memref<8x384xbf16, #tpu.memory_space<vmem>>, %arg2: memref<384x128xbf16, #tpu.memory_space<vmem>>, %arg3: memref<1x128xf32, #tpu.memory_space<vmem>>, %arg4: memref<1x128xf32, #tpu.memory_space<vmem>>, %arg5: memref<8x128xf32, #tpu.memory_space<vmem>>, %arg6: memref<8x128xf32, #tpu.memory_space<vmem>>) attributes {dimension_semantics = [#tpu.dimension_semantics<parallel>], iteration_bounds = array<i64: 1>, scalar_prefetch = 0 : i64, scratch_operands = 0 : i64, tpu.core_type = #tpu.core_type<tc>, window_params = [{transform_indices = @transform_0, window_bounds = array<i64: 8, 384>}, {pipeline_mode = #tpu.pipeline_mode<synchronous>, transform_indices = @transform_1, window_bounds = array<i64: 384, 128>}, {pipeline_mode = #tpu.pipeline_mode<synchronous>, transform_indices = @transform_2, window_bounds = array<i64: 1, 128>}, {pipeline_mode = #tpu.pipeline_mode<synchronous>, transform_indices = @transform_3, window_bounds = array<i64: 1, 128>}, {transform_indices = @transform_4, window_bounds = array<i64: 8, 128>}, {transform_indices = @transform_5, window_bounds = array<i64: 8, 128>}]} {
    %c0 = arith.constant 0 : index
    %c0_0 = arith.constant 0 : index
    %0 = vector.load %arg1[%c0, %c0_0] : memref<8x384xbf16, #tpu.memory_space<vmem>>, vector<8x384xbf16>
    %c0_1 = arith.constant 0 : index
    %c0_2 = arith.constant 0 : index
    %1 = vector.load %arg2[%c0_1, %c0_2] : memref<384x128xbf16, #tpu.memory_space<vmem>>, vector<384x128xbf16>
    %cst = arith.constant dense<0.000000e+00> : vector<8x128xf32>
    %2 = tpu.matmul %0, %1, %cst {dimension_numbers = #tpu.dot_dimension_numbers<[1], [0], [0], [1], [0, 0, 1, 1], [], []>} : vector<8x384xbf16>, vector<384x128xbf16>, vector<8x128xf32> -> vector<8x128xf32>
    %c0_3 = arith.constant 0 : index
    %c0_4 = arith.constant 0 : index
    %3 = vector.load %arg3[%c0_3, %c0_4] : memref<1x128xf32, #tpu.memory_space<vmem>>, vector<1x128xf32>
    %4 = vector.broadcast %3 : vector<1x128xf32> to vector<8x128xf32>
    %5 = arith.mulf %2, %4 : vector<8x128xf32>
    %c0_5 = arith.constant 0 : index
    %c0_6 = arith.constant 0 : index
    %6 = vector.load %arg4[%c0_5, %c0_6] : memref<1x128xf32, #tpu.memory_space<vmem>>, vector<1x128xf32>
    %7 = vector.broadcast %6 : vector<1x128xf32> to vector<8x128xf32>
    %8 = arith.addf %5, %7 : vector<8x128xf32>
    %c0_7 = arith.constant 0 : index
    %c0_8 = arith.constant 0 : index
    %9 = vector.load %arg5[%c0_7, %c0_8] : memref<8x128xf32, #tpu.memory_space<vmem>>, vector<8x128xf32>
    %10 = arith.addf %8, %9 : vector<8x128xf32>
    %cst_9 = arith.constant 0.000000e+00 : f32
    %11 = vector.broadcast %cst_9 : f32 to vector<8x128xf32>
    %12 = arith.maximumf %10, %11 : vector<8x128xf32>
    %c0_10 = arith.constant 0 : index
    %c0_11 = arith.constant 0 : index
    %13 = vector.load %arg6[%c0_10, %c0_11] : memref<8x128xf32, #tpu.memory_space<vmem>>, vector<8x128xf32>
    tpu.vector_store %arg6[%c0_10, %c0_11], %12 {strides = array<i32>} : memref<8x128xf32, #tpu.memory_space<vmem>>, vector<8x128xf32>,
    return
  }
  func.func @transform_0(%arg0: i32) -> (i32, i32) {
    %c0_i32 = arith.constant 0 : i32
    %c0_i32_0 = arith.constant 0 : i32
    return %arg0, %c0_i32 : i32, i32
  }
  func.func @transform_1(%arg0: i32) -> (i32, i32) {
    %c0_i32 = arith.constant 0 : i32
    %c0_i32_0 = arith.constant 0 : i32
    %c0_i32_1 = arith.constant 0 : i32
    return %c0_i32, %c0_i32_0 : i32, i32
  }
  func.func @transform_2(%arg0: i32) -> (i32, i32) {
    %c0_i32 = arith.constant 0 : i32
    %c0_i32_0 = arith.constant 0 : i32
    %c0_i32_1 = arith.constant 0 : i32
    return %c0_i32, %c0_i32_0 : i32, i32
  }
  func.func @transform_3(%arg0: i32) -> (i32, i32) {
    %c0_i32 = arith.constant 0 : i32
    %c0_i32_0 = arith.constant 0 : i32
    %c0_i32_1 = arith.constant 0 : i32
    return %c0_i32, %c0_i32_0 : i32, i32
  }
  func.func @transform_4(%arg0: i32) -> (i32, i32) {
    %c0_i32 = arith.constant 0 : i32
    %c0_i32_0 = arith.constant 0 : i32
    return %arg0, %c0_i32 : i32, i32
  }
  func.func @transform_5(%arg0: i32) -> (i32, i32) {
    %c0_i32 = arith.constant 0 : i32
    %c0_i32_0 = arith.constant 0 : i32
    return %arg0, %c0_i32 : i32, i32
  }
}

module attributes {stable_mosaic.version = 11 : i64} {
  func.func @gemm_kernel(%arg0: i32, %arg1: memref<32x1152xbf16, #tpu.memory_space<vmem>>, %arg2: memref<1152x128xbf16, #tpu.memory_space<vmem>>, %arg3: memref<1x128xf32, #tpu.memory_space<vmem>>, %arg4: memref<1x128xf32, #tpu.memory_space<vmem>>, %arg5: memref<32x128xf32, #tpu.memory_space<vmem>>) attributes {dimension_semantics = [#tpu.dimension_semantics<parallel>], iteration_bounds = array<i64: 1>, scalar_prefetch = 0 : i64, scratch_operands = 0 : i64, tpu.core_type = #tpu.core_type<tc>, window_params = [{transform_indices = @transform_0, window_bounds = array<i64: 32, 1152>}, {pipeline_mode = #tpu.pipeline_mode<synchronous>, transform_indices = @transform_1, window_bounds = array<i64: 1152, 128>}, {pipeline_mode = #tpu.pipeline_mode<synchronous>, transform_indices = @transform_2, window_bounds = array<i64: 1, 128>}, {pipeline_mode = #tpu.pipeline_mode<synchronous>, transform_indices = @transform_3, window_bounds = array<i64: 1, 128>}, {transform_indices = @transform_4, window_bounds = array<i64: 32, 128>}]} {
    %c0 = arith.constant 0 : index
    %c0_0 = arith.constant 0 : index
    %0 = vector.load %arg1[%c0, %c0_0] : memref<32x1152xbf16, #tpu.memory_space<vmem>>, vector<32x1152xbf16>
    %c0_1 = arith.constant 0 : index
    %c0_2 = arith.constant 0 : index
    %1 = vector.load %arg2[%c0_1, %c0_2] : memref<1152x128xbf16, #tpu.memory_space<vmem>>, vector<1152x128xbf16>
    %cst = arith.constant dense<0.000000e+00> : vector<32x128xf32>
    %2 = tpu.matmul %0, %1, %cst {dimension_numbers = #tpu.dot_dimension_numbers<[1], [0], [0], [1], [0, 0, 1, 1], [], []>} : vector<32x1152xbf16>, vector<1152x128xbf16>, vector<32x128xf32> -> vector<32x128xf32>
    %c0_3 = arith.constant 0 : index
    %c0_4 = arith.constant 0 : index
    %3 = vector.load %arg3[%c0_3, %c0_4] : memref<1x128xf32, #tpu.memory_space<vmem>>, vector<1x128xf32>
    %4 = vector.broadcast %3 : vector<1x128xf32> to vector<32x128xf32>
    %5 = arith.mulf %2, %4 : vector<32x128xf32>
    %c0_5 = arith.constant 0 : index
    %c0_6 = arith.constant 0 : index
    %6 = vector.load %arg4[%c0_5, %c0_6] : memref<1x128xf32, #tpu.memory_space<vmem>>, vector<1x128xf32>
    %7 = vector.broadcast %6 : vector<1x128xf32> to vector<32x128xf32>
    %8 = arith.addf %5, %7 : vector<32x128xf32>
    %cst_7 = arith.constant 0.000000e+00 : f32
    %9 = vector.broadcast %cst_7 : f32 to vector<32x128xf32>
    %10 = arith.maximumf %8, %9 : vector<32x128xf32>
    %c0_8 = arith.constant 0 : index
    %c0_9 = arith.constant 0 : index
    %11 = vector.load %arg5[%c0_8, %c0_9] : memref<32x128xf32, #tpu.memory_space<vmem>>, vector<32x128xf32>
    tpu.vector_store %arg5[%c0_8, %c0_9], %10 {strides = array<i32>} : memref<32x128xf32, #tpu.memory_space<vmem>>, vector<32x128xf32>,
    return
  }
  func.func @transform_0(%arg0: i32) -> (i32, i32) {
    %c0_i32 = arith.constant 0 : i32
    %c0_i32_0 = arith.constant 0 : i32
    return %arg0, %c0_i32 : i32, i32
  }
  func.func @transform_1(%arg0: i32) -> (i32, i32) {
    %c0_i32 = arith.constant 0 : i32
    %c0_i32_0 = arith.constant 0 : i32
    %c0_i32_1 = arith.constant 0 : i32
    return %c0_i32, %c0_i32_0 : i32, i32
  }
  func.func @transform_2(%arg0: i32) -> (i32, i32) {
    %c0_i32 = arith.constant 0 : i32
    %c0_i32_0 = arith.constant 0 : i32
    %c0_i32_1 = arith.constant 0 : i32
    return %c0_i32, %c0_i32_0 : i32, i32
  }
  func.func @transform_3(%arg0: i32) -> (i32, i32) {
    %c0_i32 = arith.constant 0 : i32
    %c0_i32_0 = arith.constant 0 : i32
    %c0_i32_1 = arith.constant 0 : i32
    return %c0_i32, %c0_i32_0 : i32, i32
  }
  func.func @transform_4(%arg0: i32) -> (i32, i32) {
    %c0_i32 = arith.constant 0 : i32
    %c0_i32_0 = arith.constant 0 : i32
    return %arg0, %c0_i32 : i32, i32
  }
}

module attributes {stable_mosaic.version = 11 : i64} {
  func.func @gemm_kernel(%arg0: i32, %arg1: memref<64x576xbf16, #tpu.memory_space<vmem>>, %arg2: memref<576x128xbf16, #tpu.memory_space<vmem>>, %arg3: memref<1x128xf32, #tpu.memory_space<vmem>>, %arg4: memref<1x128xf32, #tpu.memory_space<vmem>>, %arg5: memref<64x128xf32, #tpu.memory_space<vmem>>) attributes {dimension_semantics = [#tpu.dimension_semantics<parallel>], iteration_bounds = array<i64: 2>, scalar_prefetch = 0 : i64, scratch_operands = 0 : i64, tpu.core_type = #tpu.core_type<tc>, window_params = [{transform_indices = @transform_0, window_bounds = array<i64: 64, 576>}, {pipeline_mode = #tpu.pipeline_mode<synchronous>, transform_indices = @transform_1, window_bounds = array<i64: 576, 128>}, {pipeline_mode = #tpu.pipeline_mode<synchronous>, transform_indices = @transform_2, window_bounds = array<i64: 1, 128>}, {pipeline_mode = #tpu.pipeline_mode<synchronous>, transform_indices = @transform_3, window_bounds = array<i64: 1, 128>}, {transform_indices = @transform_4, window_bounds = array<i64: 64, 128>}]} {
    %c0 = arith.constant 0 : index
    %c0_0 = arith.constant 0 : index
    %0 = vector.load %arg1[%c0, %c0_0] : memref<64x576xbf16, #tpu.memory_space<vmem>>, vector<64x576xbf16>
    %c0_1 = arith.constant 0 : index
    %c0_2 = arith.constant 0 : index
    %1 = vector.load %arg2[%c0_1, %c0_2] : memref<576x128xbf16, #tpu.memory_space<vmem>>, vector<576x128xbf16>
    %cst = arith.constant dense<0.000000e+00> : vector<64x128xf32>
    %2 = tpu.matmul %0, %1, %cst {dimension_numbers = #tpu.dot_dimension_numbers<[1], [0], [0], [1], [0, 0, 1, 1], [], []>} : vector<64x576xbf16>, vector<576x128xbf16>, vector<64x128xf32> -> vector<64x128xf32>
    %c0_3 = arith.constant 0 : index
    %c0_4 = arith.constant 0 : index
    %3 = vector.load %arg3[%c0_3, %c0_4] : memref<1x128xf32, #tpu.memory_space<vmem>>, vector<1x128xf32>
    %4 = vector.broadcast %3 : vector<1x128xf32> to vector<64x128xf32>
    %5 = arith.mulf %2, %4 : vector<64x128xf32>
    %c0_5 = arith.constant 0 : index
    %c0_6 = arith.constant 0 : index
    %6 = vector.load %arg4[%c0_5, %c0_6] : memref<1x128xf32, #tpu.memory_space<vmem>>, vector<1x128xf32>
    %7 = vector.broadcast %6 : vector<1x128xf32> to vector<64x128xf32>
    %8 = arith.addf %5, %7 : vector<64x128xf32>
    %cst_7 = arith.constant 0.000000e+00 : f32
    %9 = vector.broadcast %cst_7 : f32 to vector<64x128xf32>
    %10 = arith.maximumf %8, %9 : vector<64x128xf32>
    %c0_8 = arith.constant 0 : index
    %c0_9 = arith.constant 0 : index
    %11 = vector.load %arg5[%c0_8, %c0_9] : memref<64x128xf32, #tpu.memory_space<vmem>>, vector<64x128xf32>
    tpu.vector_store %arg5[%c0_8, %c0_9], %10 {strides = array<i32>} : memref<64x128xf32, #tpu.memory_space<vmem>>, vector<64x128xf32>,
    return
  }
  func.func @transform_0(%arg0: i32) -> (i32, i32) {
    %c0_i32 = arith.constant 0 : i32
    %c0_i32_0 = arith.constant 0 : i32
    return %arg0, %c0_i32 : i32, i32
  }
  func.func @transform_1(%arg0: i32) -> (i32, i32) {
    %c0_i32 = arith.constant 0 : i32
    %c0_i32_0 = arith.constant 0 : i32
    %c0_i32_1 = arith.constant 0 : i32
    return %c0_i32, %c0_i32_0 : i32, i32
  }
  func.func @transform_2(%arg0: i32) -> (i32, i32) {
    %c0_i32 = arith.constant 0 : i32
    %c0_i32_0 = arith.constant 0 : i32
    %c0_i32_1 = arith.constant 0 : i32
    return %c0_i32, %c0_i32_0 : i32, i32
  }
  func.func @transform_3(%arg0: i32) -> (i32, i32) {
    %c0_i32 = arith.constant 0 : i32
    %c0_i32_0 = arith.constant 0 : i32
    %c0_i32_1 = arith.constant 0 : i32
    return %c0_i32, %c0_i32_0 : i32, i32
  }
  func.func @transform_4(%arg0: i32) -> (i32, i32) {
    %c0_i32 = arith.constant 0 : i32
    %c0_i32_0 = arith.constant 0 : i32
    return %arg0, %c0_i32 : i32, i32
  }
}

module attributes {stable_mosaic.version = 11 : i64} {
  func.func @gemm_kernel(%arg0: i32, %arg1: memref<128x144xbf16, #tpu.memory_space<vmem>>, %arg2: memref<144x128xbf16, #tpu.memory_space<vmem>>, %arg3: memref<1x128xf32, #tpu.memory_space<vmem>>, %arg4: memref<1x128xf32, #tpu.memory_space<vmem>>, %arg5: memref<128x128xf32, #tpu.memory_space<vmem>>) attributes {dimension_semantics = [#tpu.dimension_semantics<parallel>], iteration_bounds = array<i64: 4>, scalar_prefetch = 0 : i64, scratch_operands = 0 : i64, tpu.core_type = #tpu.core_type<tc>, window_params = [{transform_indices = @transform_0, window_bounds = array<i64: 128, 144>}, {pipeline_mode = #tpu.pipeline_mode<synchronous>, transform_indices = @transform_1, window_bounds = array<i64: 144, 128>}, {pipeline_mode = #tpu.pipeline_mode<synchronous>, transform_indices = @transform_2, window_bounds = array<i64: 1, 128>}, {pipeline_mode = #tpu.pipeline_mode<synchronous>, transform_indices = @transform_3, window_bounds = array<i64: 1, 128>}, {transform_indices = @transform_4, window_bounds = array<i64: 128, 128>}]} {
    %c0 = arith.constant 0 : index
    %c0_0 = arith.constant 0 : index
    %0 = vector.load %arg1[%c0, %c0_0] : memref<128x144xbf16, #tpu.memory_space<vmem>>, vector<128x144xbf16>
    %c0_1 = arith.constant 0 : index
    %c0_2 = arith.constant 0 : index
    %1 = vector.load %arg2[%c0_1, %c0_2] : memref<144x128xbf16, #tpu.memory_space<vmem>>, vector<144x128xbf16>
    %cst = arith.constant dense<0.000000e+00> : vector<128x128xf32>
    %2 = tpu.matmul %0, %1, %cst {dimension_numbers = #tpu.dot_dimension_numbers<[1], [0], [0], [1], [0, 0, 1, 1], [], []>} : vector<128x144xbf16>, vector<144x128xbf16>, vector<128x128xf32> -> vector<128x128xf32>
    %c0_3 = arith.constant 0 : index
    %c0_4 = arith.constant 0 : index
    %3 = vector.load %arg3[%c0_3, %c0_4] : memref<1x128xf32, #tpu.memory_space<vmem>>, vector<1x128xf32>
    %4 = vector.broadcast %3 : vector<1x128xf32> to vector<128x128xf32>
    %5 = arith.mulf %2, %4 : vector<128x128xf32>
    %c0_5 = arith.constant 0 : index
    %c0_6 = arith.constant 0 : index
    %6 = vector.load %arg4[%c0_5, %c0_6] : memref<1x128xf32, #tpu.memory_space<vmem>>, vector<1x128xf32>
    %7 = vector.broadcast %6 : vector<1x128xf32> to vector<128x128xf32>
    %8 = arith.addf %5, %7 : vector<128x128xf32>
    %9 = math.tanh %8 : vector<128x128xf32>
    %c0_7 = arith.constant 0 : index
    %c0_8 = arith.constant 0 : index
    %10 = vector.load %arg5[%c0_7, %c0_8] : memref<128x128xf32, #tpu.memory_space<vmem>>, vector<128x128xf32>
    tpu.vector_store %arg5[%c0_7, %c0_8], %9 {strides = array<i32>} : memref<128x128xf32, #tpu.memory_space<vmem>>, vector<128x128xf32>,
    return
  }
  func.func @transform_0(%arg0: i32) -> (i32, i32) {
    %c0_i32 = arith.constant 0 : i32
    %c0_i32_0 = arith.constant 0 : i32
    return %arg0, %c0_i32 : i32, i32
  }
  func.func @transform_1(%arg0: i32) -> (i32, i32) {
    %c0_i32 = arith.constant 0 : i32
    %c0_i32_0 = arith.constant 0 : i32
    %c0_i32_1 = arith.constant 0 : i32
    return %c0_i32, %c0_i32_0 : i32, i32
  }
  func.func @transform_2(%arg0: i32) -> (i32, i32) {
    %c0_i32 = arith.constant 0 : i32
    %c0_i32_0 = arith.constant 0 : i32
    %c0_i32_1 = arith.constant 0 : i32
    return %c0_i32, %c0_i32_0 : i32, i32
  }
  func.func @transform_3(%arg0: i32) -> (i32, i32) {
    %c0_i32 = arith.constant 0 : i32
    %c0_i32_0 = arith.constant 0 : i32
    %c0_i32_1 = arith.constant 0 : i32
    return %c0_i32, %c0_i32_0 : i32, i32
  }
  func.func @transform_4(%arg0: i32) -> (i32, i32) {
    %c0_i32 = arith.constant 0 : i32
    %c0_i32_0 = arith.constant 0 : i32
    return %arg0, %c0_i32 : i32, i32
  }
}

</mosaic_0001>

<llo_original>
// kernel: erfnet_ae_forward.110
$region0: #{erfnet_ae_forward.110}
  #allocation0 [shape = 'u32[]', space=smem, size = 0x4, offset = 0x4, fixed_abs, tag = 'smem constant byte address 0x4 - core index']
  #allocation1 [shape = 'u32[144,128]{1,0:T(1,128)}', space=vmem, size = 0x12000, scoped, tag = 'internal scratch']
  %s0 = inlined_call_operand.vmem [shape: bf16[128,27], index: 0, kind: input, shape index: {}]
  %s1 = inlined_call_operand.vmem [shape: bf16[27,128], index: 1, kind: input, shape index: {}]
  %s2 = inlined_call_operand.vmem [shape: f32[1,128], index: 2, kind: input, shape index: {}]
  %s3 = inlined_call_operand.vmem [shape: f32[1,128], index: 3, kind: input, shape index: {}]
  %s4 = inlined_call_operand.vmem [shape: f32[128,128], index: 4, kind: input, shape index: {}]
  %s5 = inlined_call_operand.vmem [shape: f32[128,128], index: 5, kind: output, shape index: {}]
  %s6 = sld [smem:[#allocation0]]
  $region53: #{erfnet_ae_forward.110} parent=0
    _
  %s8 = ssub.s32 1, %s6
  %s9 = scalar_select 0, %s8, %s6
  loop: start=0, step=1, limit=4
  $region2: #{erfnet_ae_forward.110} parent=0 // loop_pre_header
    _
  $region3: #{erfnet_ae_forward.110} parent=0 // loop_header
    %s11 = sphi 0, %s15
    %p12 = scmp.ge.s32.totalorder %s11, 4
    %s21 = sphi 0, %s23
    %s24 = sphi 0, %s21
    %s25 = sphi 0, %s24
    %s41 = sphi 0, %s25
    %s45 = sphi 0, %s45
    %s47 = sphi 0, %s45
    %s48 = sphi 0, %s47
    %s62 = sphi 0, %s48
    %s66 = sphi 0, %s66
    %s68 = sphi 0, %s66
    %s69 = sphi 0, %s68
    %s83 = sphi 0, %s69
    %s87 = sphi 0, %s87
    %s89 = sphi 0, %s87
    %s90 = sphi 0, %s89
    %s104 = sphi 0, %s90
    %s110 = sphi 0, %s112
    %s113 = sphi 0, %s110
    %s114 = sphi 0, %s113
    %s130 = sphi 0, %s114
    %s136 = sphi 0, %s138
    %s139 = sphi 0, %s136
    %s140 = sphi 0, %s139
    %s156 = sphi 0, %s140
  $region4: #{erfnet_ae_forward.110} parent=0 // loop_header_branch
    %14 = sbr.rel (%p12) target = $region8
  $region5: #{erfnet_ae_forward.110} parent=0 // loop_body
    %s16 = ssub.s32 %s11, 1
    %s17 = ssub.s32 %s11, 2
    %s18 = sadd.s32 %s11, 1
    %s19 = ssub.s32 %s11, %s18
    %p20 = scmp.eq.s32.totalorder %s19, 0
    %s22 = sadd.s32 %s21, 1
    %s23 = scalar_select %p20, %s21, %s22
    %p26 = pneg %p20
    %p27 = scmp.eq.s32.totalorder %s11, 1
    %p28 = por %p26, %p27
    %p29 = scmp.ne.s32.totalorder %s21, %s24
    %p30 = scmp.eq.s32.totalorder %s11, 0
    %p31 = por %p29, %p30
    %p32 = scmp.ne.s32.totalorder %s21, %s24
    %p33 = scmp.eq.s32.totalorder %s16, 1
    %p34 = por %p32, %p33
    %p35 = scmp.ne.s32.totalorder %s24, %s25
    %p36 = scmp.eq.s32.totalorder %s16, 0
    %p37 = por %p35, %p36
    %p38 = scmp.ne.s32.totalorder %s24, %s25
    %p39 = scmp.eq.s32.totalorder %s17, 1
    %p40 = por %p38, %p39
    %p42 = scmp.ne.s32.totalorder %s25, %s41
    %p43 = scmp.eq.s32.totalorder %s17, 0
    %p44 = por %p42, %p43
    %s46 = sadd.s32 %s45, 1
    %p49 = scmp.eq.s32.totalorder %s11, 1
    %p50 = scmp.ne.s32.totalorder %s45, %s47
    %p51 = scmp.eq.s32.totalorder %s11, 0
    %p52 = por %p50, %p51
    %p53 = scmp.ne.s32.totalorder %s45, %s47
    %p54 = scmp.eq.s32.totalorder %s16, 1
    %p55 = por %p53, %p54
    %p56 = scmp.ne.s32.totalorder %s47, %s48
    %p57 = scmp.eq.s32.totalorder %s16, 0
    %p58 = por %p56, %p57
    %p59 = scmp.ne.s32.totalorder %s47, %s48
    %p60 = scmp.eq.s32.totalorder %s17, 1
    %p61 = por %p59, %p60
    %p63 = scmp.ne.s32.totalorder %s48, %s62
    %p64 = scmp.eq.s32.totalorder %s17, 0
    %p65 = por %p63, %p64
    %s67 = sadd.s32 %s66, 1
    %p70 = scmp.eq.s32.totalorder %s11, 1
    %p71 = scmp.ne.s32.totalorder %s66, %s68
    %p72 = scmp.eq.s32.totalorder %s11, 0
    %p73 = por %p71, %p72
    %p74 = scmp.ne.s32.totalorder %s66, %s68
    %p75 = scmp.eq.s32.totalorder %s16, 1
    %p76 = por %p74, %p75
    %p77 = scmp.ne.s32.totalorder %s68, %s69
    %p78 = scmp.eq.s32.totalorder %s16, 0
    %p79 = por %p77, %p78
    %p80 = scmp.ne.s32.totalorder %s68, %s69
    %p81 = scmp.eq.s32.totalorder %s17, 1
    %p82 = por %p80, %p81
    %p84 = scmp.ne.s32.totalorder %s69, %s83
    %p85 = scmp.eq.s32.totalorder %s17, 0
    %p86 = por %p84, %p85
    %s88 = sadd.s32 %s87, 1
    %p91 = scmp.eq.s32.totalorder %s11, 1
    %p92 = scmp.ne.s32.totalorder %s87, %s89
    %p93 = scmp.eq.s32.totalorder %s11, 0
    %p94 = por %p92, %p93
    %p95 = scmp.ne.s32.totalorder %s87, %s89
    %p96 = scmp.eq.s32.totalorder %s16, 1
    %p97 = por %p95, %p96
    %p98 = scmp.ne.s32.totalorder %s89, %s90
    %p99 = scmp.eq.s32.totalorder %s16, 0
    %p100 = por %p98, %p99
    %p101 = scmp.ne.s32.totalorder %s89, %s90
    %p102 = scmp.eq.s32.totalorder %s17, 1
    %p103 = por %p101, %p102
    %p105 = scmp.ne.s32.totalorder %s90, %s104
    %p106 = scmp.eq.s32.totalorder %s17, 0
    %p107 = por %p105, %p106
    %s108 = ssub.s32 %s11, %s18
    %p109 = scmp.eq.s32.totalorder %s108, 0
    %s111 = sadd.s32 %s110, 1
    %s112 = scalar_select %p109, %s110, %s111
    %p115 = pneg %p109
    %p116 = scmp.eq.s32.totalorder %s11, 1
    %p117 = por %p115, %p116
    %p118 = scmp.ne.s32.totalorder %s110, %s113
    %p119 = scmp.eq.s32.totalorder %s11, 0
    %p120 = por %p118, %p119
    %p121 = scmp.ne.s32.totalorder %s110, %s113
    %p122 = scmp.eq.s32.totalorder %s16, 1
    %p123 = por %p121, %p122
    %p124 = scmp.ne.s32.totalorder %s113, %s114
    %p125 = scmp.eq.s32.totalorder %s16, 0
    %p126 = por %p124, %p125
    %p127 = scmp.ne.s32.totalorder %s113, %s114
    %p128 = scmp.eq.s32.totalorder %s17, 1
    %p129 = por %p127, %p128
    %p131 = scmp.ne.s32.totalorder %s114, %s130
    %p132 = scmp.eq.s32.totalorder %s17, 0
    %p133 = por %p131, %p132
    %s134 = ssub.s32 %s11, %s18
    %p135 = scmp.eq.s32.totalorder %s134, 0
    %s137 = sadd.s32 %s136, 1
    %s138 = scalar_select %p135, %s136, %s137
    %p141 = pneg %p135
    %p142 = scmp.eq.s32.totalorder %s11, 1
    %p143 = por %p141, %p142
    %p144 = scmp.ne.s32.totalorder %s136, %s139
    %p145 = scmp.eq.s32.totalorder %s11, 0
    %p146 = por %p144, %p145
    %p147 = scmp.ne.s32.totalorder %s136, %s139
    %p148 = scmp.eq.s32.totalorder %s16, 1
    %p149 = por %p147, %p148
    %p150 = scmp.ne.s32.totalorder %s139, %s140
    %p151 = scmp.eq.s32.totalorder %s16, 0
    %p152 = por %p150, %p151
    %p153 = scmp.ne.s32.totalorder %s139, %s140
    %p154 = scmp.eq.s32.totalorder %s17, 1
    %p155 = por %p153, %p154
    %p157 = scmp.ne.s32.totalorder %s140, %s156
    %p158 = scmp.eq.s32.totalorder %s17, 0
    %p159 = por %p157, %p158
    %p160 = scmp.le.s32.totalorder 1, %s11
    %p161 = scmp.lt.s32.totalorder %s11, 3
    %p162 = pnand %p160, %p161
    %p163 = pneg %p162
    // Predicated region
    $region9: #{erfnet_ae_forward.110} parent=5 // pred_check
      _
    $region10: #{erfnet_ae_forward.110} parent=5 // pred_check_branch
      %165 = sbr.rel (%p162) target = $region12
    $region11: #{erfnet_ae_forward.110} parent=5 // pred_region
      %s166 = ssub.s32 %s11, 1
      // Predicated region
      $region13: #{erfnet_ae_forward.110} parent=11 // pred_check
        %p167 = pneg %p58
      $region14: #{erfnet_ae_forward.110} parent=11 // pred_check_branch
        %169 = sbr.rel (%p167) target = $region16
      $region15: #{erfnet_ae_forward.110} parent=11 // pred_region
        _
      $region16: #{erfnet_ae_forward.110} parent=11 // pred_fallthru
        _
      // Predicated region
      $region17: #{erfnet_ae_forward.110} parent=11 // pred_check
        %p170 = pneg %p79
      $region18: #{erfnet_ae_forward.110} parent=11 // pred_check_branch
        %172 = sbr.rel (%p170) target = $region20
      $region19: #{erfnet_ae_forward.110} parent=11 // pred_region
        _
      $region20: #{erfnet_ae_forward.110} parent=11 // pred_fallthru
        _
      // Predicated region
      $region21: #{erfnet_ae_forward.110} parent=11 // pred_check
        %p173 = pneg %p100
      $region22: #{erfnet_ae_forward.110} parent=11 // pred_check_branch
        %175 = sbr.rel (%p173) target = $region24
      $region23: #{erfnet_ae_forward.110} parent=11 // pred_region
        _
      $region24: #{erfnet_ae_forward.110} parent=11 // pred_fallthru
        _
    $region12: #{erfnet_ae_forward.110} parent=5 // pred_fallthru
      _
    %p176 = scmp.lt.s32.totalorder %s11, 2
    // Predicated region
    $region25: #{erfnet_ae_forward.110} parent=5 // pred_check
      %p177 = pneg %p176
    $region26: #{erfnet_ae_forward.110} parent=5 // pred_check_branch
      %179 = sbr.rel (%p177) target = $region28
    $region27: #{erfnet_ae_forward.110} parent=5 // pred_region
      // Predicated region
      $region29: #{erfnet_ae_forward.110} parent=27 // pred_check
        %p180 = pneg %p31
      $region30: #{erfnet_ae_forward.110} parent=27 // pred_check_branch
        %182 = sbr.rel (%p180) target = $region32
      $region31: #{erfnet_ae_forward.110} parent=27 // pred_region
        %s183 = smul.u32 8, %s11
        %p184 = scmp.lt.s32.totalorder %s183, 15
        %s185 = scalar_select %p184, %s183, 15
        %s186 = smul.addr %s185, 4
        %s187 = scalar_lea.vmem %s0, %s186
        %s188 = smul.u32 8, %s11
      $region32: #{erfnet_ae_forward.110} parent=27 // pred_fallthru
        _
      // Predicated region
      $region33: #{erfnet_ae_forward.110} parent=27 // pred_check
        %p189 = pneg %p120
      $region34: #{erfnet_ae_forward.110} parent=27 // pred_check_branch
        %191 = sbr.rel (%p189) target = $region36
      $region35: #{erfnet_ae_forward.110} parent=27 // pred_region
        %s192 = smul.u32 8, %s11
        %p193 = scmp.lt.s32.totalorder %s192, 15
        %s194 = scalar_select %p193, %s192, 15
        %s195 = smul.addr %s194, 8
        %s196 = scalar_lea.vmem %s4, %s195
        %s197 = smul.u32 8, %s11
      $region36: #{erfnet_ae_forward.110} parent=27 // pred_fallthru
        _
    $region28: #{erfnet_ae_forward.110} parent=5 // pred_fallthru
      _
    %p198 = scmp.le.s32.totalorder 1, %s11
    %p199 = scmp.lt.s32.totalorder %s11, 3
    %p200 = pnand %p198, %p199
    %p201 = pneg %p200
    // Predicated region
    $region37: #{erfnet_ae_forward.110} parent=5 // pred_check
      _
    $region38: #{erfnet_ae_forward.110} parent=5 // pred_check_branch
      %203 = sbr.rel (%p200) target = $region40
    $region39: #{erfnet_ae_forward.110} parent=5 // pred_region
      %s204 = ssub.s32 %s11, 1
      %s205 = smul.u32 8, %s16
      %p206 = scmp.lt.s32.totalorder %s205, 15
      %s207 = scalar_select %p206, %s205, 15
      %s208 = smul.addr %s207, 4
      %s209 = scalar_lea.vmem %s0, %s208
      %p210 = pneg %p37
      %p211 = pneg %p34
      %p212 = pneg %p58
      %p213 = pneg %p55
      %p214 = pneg %p79
      %p215 = pneg %p76
      %p216 = pneg %p100
      %p217 = pneg %p97
      %s218 = smul.u32 8, %s16
      %p219 = scmp.lt.s32.totalorder %s218, 15
      %s220 = scalar_select %p219, %s218, 15
      %s221 = smul.addr %s220, 8
      %s222 = scalar_lea.vmem %s4, %s221
      %p223 = pneg %p126
      %p224 = pneg %p123
      %p225 = pneg %p152
      %p226 = pneg %p149
      %s227 = smul.u32 8, %s16
      %p228 = scmp.lt.s32.totalorder %s227, 15
      %s229 = scalar_select %p228, %s227, 15
      %s230 = smul.addr %s229, 8
      %s231 = scalar_lea.vmem %s5, %s230
      %s232 = smul.u32 8, %s16
      %p233 = scmp.lt.s32.totalorder %s232, 15
      %s234 = scalar_select %p233, %s232, 15
      %s235 = smul.addr %s234, 4
      %s236 = scalar_lea.vmem %s0, %s235
      %s237 = smul.u32 8, %s16
      %s238 = smul.u32 8, %s16
      %p239 = scmp.lt.s32.totalorder %s238, 15
      %s240 = scalar_select %p239, %s238, 15
      %s241 = smul.addr %s240, 8
      %s242 = scalar_lea.vmem %s4, %s241
      %s243 = smul.u32 8, %s16
      %s244 = smul.u32 8, %s16
      %p245 = scmp.lt.s32.totalorder %s244, 15
      %s246 = scalar_select %p245, %s244, 15
      %s247 = smul.addr %s246, 8
      %s248 = scalar_lea.vmem %s5, %s247
      %s249 = smul.u32 8, %s16
      %v251 = vld [vmem:[%s236] sm:$0xf]
      %v252 = vld [vmem:[%s236 + $0x4] sm:$0xf]
      %v253 = vld [vmem:[%s236 + $0x8] sm:$0xf]
      %v254 = vld [vmem:[%s236 + $0xc] sm:$0xf]
      %v255 = vld [vmem:[%s236 + $0x10] sm:$0xf]
      %v256 = vld [vmem:[%s236 + $0x14] sm:$0xf]
      %v257 = vld [vmem:[%s236 + $0x18] sm:$0xf]
      %v258 = vld [vmem:[%s236 + $0x1c] sm:$0xf]
      %v259 = vld [vmem:[%s1] sm:$0xf]
      %v260 = vld [vmem:[%s1 + $0x4] sm:$0xf]
      %v261 = vld [vmem:[%s1 + $0x8] sm:$0xf]
      %v262 = vld [vmem:[%s1 + $0xc] sm:$0x3]
      %v263 = vld [vmem:[%s242] sm:$0xff]
      %v264 = vld [vmem:[%s242 + $0x8] sm:$0xff]
      %v265 = vld [vmem:[%s242 + $0x10] sm:$0xff]
      %v266 = vld [vmem:[%s242 + $0x18] sm:$0xff]
      %v267 = vld [vmem:[%s242 + $0x20] sm:$0xff]
      %v268 = vld [vmem:[%s242 + $0x28] sm:$0xff]
      %v269 = vld [vmem:[%s242 + $0x30] sm:$0xff]
      %v270 = vld [vmem:[%s242 + $0x38] sm:$0xff]
      %v279 = vunpack.c.l.b16 %v251
      %v280 = vunpack.c.l.b16 %v252
      %v281 = vunpack.c.l.b16 %v253
      %v282 = vunpack.c.l.b16 %v254
      %v283 = vunpack.c.l.b16 %v255
      %v284 = vunpack.c.l.b16 %v256
      %v285 = vunpack.c.l.b16 %v257
      %v286 = vunpack.c.l.b16 %v258
      %v287 = vpack.c.b16 %v280, %v279
      %v288 = vpack.c.b16 %v282, %v281
      %v289 = vpack.c.b16 %v284, %v283
      %v290 = vpack.c.b16 %v286, %v285
      %v295 = vunpack.c.l.b16 %v259
      %v296 = vunpack.c.l.b16 %v260
      %v297 = vunpack.c.l.b16 %v261
      %v298 = vunpack.c.l.b16 %v262
      %v299 = vpack.c.b16 %v296, %v295
      %v300 = vpack.c.b16 %v298, %v297
      %vm302 = vcmask 220160
      %v304 = vsel %vm302, %v287, 0
      %v307 = vsel %vm302, %v288, 0
      %v310 = vsel %vm302, %v289, 0
      %v313 = vsel %vm302, %v290, 0
      %vm315 = vcmask 1044480
      %vm316 = vcmask 1045504
      %v317 = vsel %vm315, 4294967295, 65535
      %v318 = vsel %vm316, %v317, 0
      %v320 = vand.u32 %v300, %v318
      %322 = vmatprep.subr.bf16.mxu0 0
      %323 = vmatpush1.bf16.msra.mxu0 0
      %324 = vmatprep.subr.bf16.mxu0 0
      %325 = vmatpush1.bf16.msra.mxu0 0
      %326 = vmatprep.subr.bf16.mxu0 0
      %327 = vmatpush1.bf16.msra.mxu0 0
      %328 = vmatprep.subr.bf16.mxu0 0
      %329 = vmatpush1.bf16.msra.mxu0 0
      %330 = vmatprep.subr.bf16.mxu0 0
      %331 = vmatpush1.bf16.msra.mxu0 0
      %332 = vmatprep.subr.bf16.mxu0 0
      %333 = vmatpush1.bf16.msra.mxu0 0
      %334 = vmatprep.subr.bf16.mxu0 0
      %335 = vmatpush1.bf16.msra.mxu0 %v320
      %336 = vmatprep.subr.bf16.mxu0 0
      %337 = vmatpush1.bf16.msra.mxu0 %v299
      %338 = vmatprep.subr.bf16.mxu0 0
      %339 = vmatpush2.bf16.msra.mxu0 0
      %340 = vmatprep.subr.bf16.mxu0 0
      %341 = vmatpush2.bf16.msra.mxu0 0
      %342 = vmatprep.subr.bf16.mxu0 0
      %343 = vmatpush2.bf16.msra.mxu0 0
      %344 = vmatprep.subr.bf16.mxu0 0
      %345 = vmatpush2.bf16.msra.mxu0 0
      %346 = vmatprep.subr.bf16.mxu0 0
      %347 = vmatpush2.bf16.msra.mxu0 0
      %348 = vmatprep.subr.bf16.mxu0 0
      %349 = vmatpush2.bf16.msra.mxu0 0
      %350 = vmatprep.subr.bf16.mxu0 0
      %351 = vmatpush2.bf16.msra.mxu0 0
      %352 = vmatprep.subr.bf16.mxu0 0
      %353 = vmatpush2.bf16.msra.mxu0 0
      %354 = vmatprep.mubr.bf16.mxu0 0
      %355 = vmatmul.mubr.bf16.gmra.mxu0 %v304
      %v356 = vpop.f32.mrf.mxu0
      %v357 = vadd.f32 %v263, %v356
      %v358 = vpop.f32.mrf.mxu0
      %v359 = vpop.f32.mrf.mxu0
      %v360 = vadd.f32 %v264, %v359
      %v361 = vpop.f32.mrf.mxu0
      %362 = vmatprep.mubr.bf16.mxu0 0
      %363 = vmatmul.mubr.bf16.gmra.mxu0 %v307
      %v364 = vpop.f32.mrf.mxu0
      %v365 = vadd.f32 %v265, %v364
      %v366 = vpop.f32.mrf.mxu0
      %v367 = vpop.f32.mrf.mxu0
      %v368 = vadd.f32 %v266, %v367
      %v369 = vpop.f32.mrf.mxu0
      %370 = vmatprep.mubr.bf16.mxu0 0
      %371 = vmatmul.mubr.bf16.gmra.mxu0 %v310
      %v372 = vpop.f32.mrf.mxu0
      %v373 = vadd.f32 %v267, %v372
      %v374 = vpop.f32.mrf.mxu0
      %v375 = vpop.f32.mrf.mxu0
      %v376 = vadd.f32 %v268, %v375
      %v377 = vpop.f32.mrf.mxu0
      %378 = vmatprep.mubr.bf16.mxu0 0
      %379 = vmatmul.mubr.bf16.gmra.mxu0 %v313
      %v380 = vpop.f32.mrf.mxu0
      %v381 = vadd.f32 %v269, %v380
      %v382 = vpop.f32.mrf.mxu0
      %v383 = vpop.f32.mrf.mxu0
      %v384 = vadd.f32 %v270, %v383
      %v385 = vpop.f32.mrf.mxu0
      %386 = vdwg.mxu0
      %v387 = vld [vmem:[%s2] sm:$0x1]
      %v389 = vlaneseq
      %v390 = vshrl.u32 %v389, 7
      %v391 = vsub.s32 0, %v390
      %v392 = vrot.slane %v387, %v391
      %v394 = vmul.f32 %v357, %v392
      %v395 = vmul.f32 %v360, %v392
      %v396 = vmul.f32 %v365, %v392
      %v397 = vmul.f32 %v368, %v392
      %v398 = vmul.f32 %v373, %v392
      %v399 = vmul.f32 %v376, %v392
      %v400 = vmul.f32 %v381, %v392
      %v401 = vmul.f32 %v384, %v392
      %v402 = vld [vmem:[%s3] sm:$0x1]
      %v404 = vlaneseq
      %v405 = vshrl.u32 %v404, 7
      %v406 = vsub.s32 0, %v405
      %v407 = vrot.slane %v402, %v406
      %v409 = vadd.f32 %v394, %v407
      %v410 = vadd.f32 %v395, %v407
      %v411 = vadd.f32 %v396, %v407
      %v412 = vadd.f32 %v397, %v407
      %v413 = vadd.f32 %v398, %v407
      %v414 = vadd.f32 %v399, %v407
      %v415 = vadd.f32 %v400, %v407
      %v416 = vadd.f32 %v401, %v407
      %v417 = vmax.f32 %v409, 0.0
      %v418 = vmax.f32 %v410, 0.0
      %v419 = vmax.f32 %v411, 0.0
      %v420 = vmax.f32 %v412, 0.0
      %v421 = vmax.f32 %v413, 0.0
      %v422 = vmax.f32 %v414, 0.0
      %v423 = vmax.f32 %v415, 0.0
      %v424 = vmax.f32 %v416, 0.0
      %425 = vst [vmem:[%s248] sm:$0xff] %v417
      %426 = vst [vmem:[%s248 + $0x8] sm:$0xff] %v418
      %427 = vst [vmem:[%s248 + $0x10] sm:$0xff] %v419
      %428 = vst [vmem:[%s248 + $0x18] sm:$0xff] %v420
      %429 = vst [vmem:[%s248 + $0x20] sm:$0xff] %v421
      %430 = vst [vmem:[%s248 + $0x28] sm:$0xff] %v422
      %431 = vst [vmem:[%s248 + $0x30] sm:$0xff] %v423
      %432 = vst [vmem:[%s248 + $0x38] sm:$0xff] %v424
      %s433 = smul.u32 8, %s16
      %p434 = scmp.lt.s32.totalorder %s433, 15
      %s435 = scalar_select %p434, %s433, 15
      %s436 = smul.addr %s435, 8
      %s437 = scalar_lea.vmem %s5, %s436
      // Predicated region
      $region41: #{erfnet_ae_forward.110} parent=39 // pred_check
        %p438 = pneg %p149
      $region42: #{erfnet_ae_forward.110} parent=39 // pred_check_branch
        %440 = sbr.rel (%p438) target = $region44
      $region43: #{erfnet_ae_forward.110} parent=39 // pred_region
        %s441 = smul.u32 8, %s16
      $region44: #{erfnet_ae_forward.110} parent=39 // pred_fallthru
        _
    $region40: #{erfnet_ae_forward.110} parent=5 // pred_fallthru
      _
    %p442 = scmp.le.s32.totalorder 2, %s11
    // Predicated region
    $region45: #{erfnet_ae_forward.110} parent=5 // pred_check
      %p443 = pneg %p442
    $region46: #{erfnet_ae_forward.110} parent=5 // pred_check_branch
      %445 = sbr.rel (%p443) target = $region48
    $region47: #{erfnet_ae_forward.110} parent=5 // pred_region
      %s446 = ssub.s32 %s11, 2
      // Predicated region
      $region49: #{erfnet_ae_forward.110} parent=47 // pred_check
        %p447 = pneg %p155
      $region50: #{erfnet_ae_forward.110} parent=47 // pred_check_branch
        %449 = sbr.rel (%p447) target = $region52
      $region51: #{erfnet_ae_forward.110} parent=47 // pred_region
        %s450 = smul.u32 8, %s17
        %p451 = scmp.lt.s32.totalorder %s450, 15
        %s452 = scalar_select %p451, %s450, 15
        %s453 = smul.addr %s452, 8
        %s454 = scalar_lea.vmem %s5, %s453
      $region52: #{erfnet_ae_forward.110} parent=47 // pred_fallthru
        _
    $region48: #{erfnet_ae_forward.110} parent=5 // pred_fallthru
      _
  $region6: #{erfnet_ae_forward.110} parent=0 // loop_footer
    %s15 = sadd.s32 1, %s11
  $region7: #{erfnet_ae_forward.110} parent=0 // loop_footer_branch
    %10 = sbr.rel target = $region3
  $region8: #{erfnet_ae_forward.110} parent=0 // loop_exit
    _

// kernel: erfnet_ae_forward.111
$region0: #{erfnet_ae_forward.111}
  #allocation0 [shape = 'u32[]', space=smem, size = 0x4, offset = 0x4, fixed_abs, tag = 'smem constant byte address 0x4 - core index']
  #allocation1 [shape = 'u32[144,128]{1,0:T(1,128)}', space=vmem, size = 0x12000, scoped, tag = 'internal scratch']
  %s0 = inlined_call_operand.vmem [shape: bf16[32,144], index: 0, kind: input, shape index: {}]
  %s1 = inlined_call_operand.vmem [shape: bf16[144,128], index: 1, kind: input, shape index: {}]
  %s2 = inlined_call_operand.vmem [shape: f32[1,128], index: 2, kind: input, shape index: {}]
  %s3 = inlined_call_operand.vmem [shape: f32[1,128], index: 3, kind: input, shape index: {}]
  %s4 = inlined_call_operand.vmem [shape: f32[32,128], index: 4, kind: input, shape index: {}]
  %s5 = inlined_call_operand.vmem [shape: f32[32,128], index: 5, kind: output, shape index: {}]
  %s6 = sld [smem:[#allocation0]]
  $region30: #{erfnet_ae_forward.111} parent=0
    _
  %s8 = ssub.s32 1, %s6
  %s9 = scalar_select 0, %s8, %s6
  // Predicated region
  $region2: #{erfnet_ae_forward.111} parent=0 // pred_check
    _
  $region3: #{erfnet_ae_forward.111} parent=0 // pred_check_branch
    %11 = sbr.rel (0) target = $region5
  $region4: #{erfnet_ae_forward.111} parent=0 // pred_region
    _
  $region5: #{erfnet_ae_forward.111} parent=0 // pred_fallthru
    _
  // Predicated region
  $region6: #{erfnet_ae_forward.111} parent=0 // pred_check
    _
  $region7: #{erfnet_ae_forward.111} parent=0 // pred_check_branch
    %13 = sbr.rel (0) target = $region9
  $region8: #{erfnet_ae_forward.111} parent=0 // pred_region
    _
  $region9: #{erfnet_ae_forward.111} parent=0 // pred_fallthru
    _
  // Predicated region
  $region10: #{erfnet_ae_forward.111} parent=0 // pred_check
    _
  $region11: #{erfnet_ae_forward.111} parent=0 // pred_check_branch
    %15 = sbr.rel (0) target = $region13
  $region12: #{erfnet_ae_forward.111} parent=0 // pred_region
    _
  $region13: #{erfnet_ae_forward.111} parent=0 // pred_fallthru
    _
  // Predicated region
  $region14: #{erfnet_ae_forward.111} parent=0 // pred_check
    _
  $region15: #{erfnet_ae_forward.111} parent=0 // pred_check_branch
    %17 = sbr.rel (0) target = $region17
  $region16: #{erfnet_ae_forward.111} parent=0 // pred_region
    _
  $region17: #{erfnet_ae_forward.111} parent=0 // pred_fallthru
    _
  // Predicated region
  $region18: #{erfnet_ae_forward.111} parent=0 // pred_check
    _
  $region19: #{erfnet_ae_forward.111} parent=0 // pred_check_branch
    %19 = sbr.rel (0) target = $region21
  $region20: #{erfnet_ae_forward.111} parent=0 // pred_region
    _
  $region21: #{erfnet_ae_forward.111} parent=0 // pred_fallthru
    _
  %v21 = vld [vmem:[%s0] sm:$0xff]
  %v22 = vld [vmem:[%s0 + $0x8] sm:$0xff]
  %v23 = vld [vmem:[%s0 + $0x10] sm:$0xff]
  %v24 = vld [vmem:[%s0 + $0x18] sm:$0xff]
  %v25 = vld [vmem:[%s1] sm:$0xf]
  %v26 = vld [vmem:[%s1 + $0x4] sm:$0xf]
  %v27 = vld [vmem:[%s1 + $0x8] sm:$0xf]
  %v28 = vld [vmem:[%s1 + $0xc] sm:$0xf]
  %v29 = vld [vmem:[%s1 + $0x10] sm:$0xf]
  %v30 = vld [vmem:[%s1 + $0x14] sm:$0xf]
  %v31 = vld [vmem:[%s1 + $0x18] sm:$0xf]
  %v32 = vld [vmem:[%s1 + $0x1c] sm:$0xf]
  %v33 = vld [vmem:[%s1 + $0x20] sm:$0xf]
  %v34 = vld [vmem:[%s1 + $0x24] sm:$0xf]
  %v35 = vld [vmem:[%s1 + $0x28] sm:$0xf]
  %v36 = vld [vmem:[%s1 + $0x2c] sm:$0xf]
  %v37 = vld [vmem:[%s1 + $0x30] sm:$0xf]
  %v38 = vld [vmem:[%s1 + $0x34] sm:$0xf]
  %v39 = vld [vmem:[%s1 + $0x38] sm:$0xf]
  %v40 = vld [vmem:[%s1 + $0x3c] sm:$0xf]
  %v41 = vld [vmem:[%s1 + $0x40] sm:$0xf]
  %v42 = vld [vmem:[%s1 + $0x44] sm:$0xf]
  %v43 = vld [vmem:[%s4] sm:$0xff]
  %v44 = vld [vmem:[%s4 + $0x8] sm:$0xff]
  %v45 = vld [vmem:[%s4 + $0x10] sm:$0xff]
  %v46 = vld [vmem:[%s4 + $0x18] sm:$0xff]
  %v51 = vunpack.c.l.b16 %v21
  %v52 = vunpack.c.h.b16 %v21
  %v53 = vunpack.c.l.b16 %v22
  %v54 = vunpack.c.h.b16 %v22
  %v55 = vunpack.c.l.b16 %v23
  %v56 = vunpack.c.h.b16 %v23
  %v57 = vunpack.c.l.b16 %v24
  %v58 = vunpack.c.h.b16 %v24
  %v59 = vpack.c.b16 %v53, %v51
  %v60 = vpack.c.b16 %v54, %v52
  %v61 = vpack.c.b16 %v57, %v55
  %v62 = vpack.c.b16 %v58, %v56
  %v83 = vunpack.c.l.b16 %v25
  %v84 = vunpack.c.l.b16 %v26
  %v85 = vunpack.c.l.b16 %v27
  %v86 = vunpack.c.l.b16 %v28
  %v87 = vunpack.c.l.b16 %v29
  %v88 = vunpack.c.l.b16 %v30
  %v89 = vunpack.c.l.b16 %v31
  %v90 = vunpack.c.l.b16 %v32
  %v91 = vunpack.c.l.b16 %v33
  %v92 = vunpack.c.l.b16 %v34
  %v93 = vunpack.c.l.b16 %v35
  %v94 = vunpack.c.l.b16 %v36
  %v95 = vunpack.c.l.b16 %v37
  %v96 = vunpack.c.l.b16 %v38
  %v97 = vunpack.c.l.b16 %v39
  %v98 = vunpack.c.l.b16 %v40
  %v99 = vunpack.c.l.b16 %v41
  %v100 = vunpack.c.l.b16 %v42
  %v101 = vpack.c.b16 %v84, %v83
  %v102 = vpack.c.b16 %v86, %v85
  %v103 = vpack.c.b16 %v88, %v87
  %v104 = vpack.c.b16 %v90, %v89
  %v105 = vpack.c.b16 %v92, %v91
  %v106 = vpack.c.b16 %v94, %v93
  %v107 = vpack.c.b16 %v96, %v95
  %v108 = vpack.c.b16 %v98, %v97
  %v109 = vpack.c.b16 %v100, %v99
  %vm119 = vcmask 130048
  %v121 = vsel %vm119, %v60, 0
  %v124 = vsel %vm119, %v62, 0
  %126 = vmatprep.subr.bf16.mxu0 0
  %127 = vmatpush1.bf16.msra.mxu0 %v108
  %128 = vmatprep.subr.bf16.mxu0 0
  %129 = vmatpush1.bf16.msra.mxu0 %v107
  %130 = vmatprep.subr.bf16.mxu0 0
  %131 = vmatpush1.bf16.msra.mxu0 %v106
  %132 = vmatprep.subr.bf16.mxu0 0
  %133 = vmatpush1.bf16.msra.mxu0 %v105
  %134 = vmatprep.subr.bf16.mxu0 0
  %135 = vmatpush1.bf16.msra.mxu0 %v104
  %136 = vmatprep.subr.bf16.mxu0 0
  %137 = vmatpush1.bf16.msra.mxu0 %v103
  %138 = vmatprep.subr.bf16.mxu0 0
  %139 = vmatpush1.bf16.msra.mxu0 %v102
  %140 = vmatprep.subr.bf16.mxu0 0
  %141 = vmatpush1.bf16.msra.mxu0 %v101
  %142 = vmatprep.subr.bf16.mxu0 0
  %143 = vmatpush2.bf16.msra.mxu0 0
  %144 = vmatprep.subr.bf16.mxu0 0
  %145 = vmatpush2.bf16.msra.mxu0 0
  %146 = vmatprep.subr.bf16.mxu0 0
  %147 = vmatpush2.bf16.msra.mxu0 0
  %148 = vmatprep.subr.bf16.mxu0 0
  %149 = vmatpush2.bf16.msra.mxu0 0
  %150 = vmatprep.subr.bf16.mxu0 0
  %151 = vmatpush2.bf16.msra.mxu0 0
  %152 = vmatprep.subr.bf16.mxu0 0
  %153 = vmatpush2.bf16.msra.mxu0 0
  %154 = vmatprep.subr.bf16.mxu0 0
  %155 = vmatpush2.bf16.msra.mxu0 0
  %156 = vmatprep.subr.bf16.mxu0 0
  %157 = vmatpush2.bf16.msra.mxu0 %v109
  %158 = vmatprep.mubr.bf16.mxu0 %v121
  %159 = vmatmul.mubr.bf16.gmra.mxu0 %v59
  %v160 = vpop.f32.mrf.mxu0
  %v161 = vadd.f32 %v43, %v160
  %v162 = vpop.f32.mrf.mxu0
  %v163 = vpop.f32.mrf.mxu0
  %v164 = vadd.f32 %v44, %v163
  %v165 = vpop.f32.mrf.mxu0
  %166 = vmatprep.mubr.bf16.mxu0 %v124
  %167 = vmatmul.mubr.bf16.gmra.mxu0 %v61
  %v168 = vpop.f32.mrf.mxu0
  %v169 = vadd.f32 %v45, %v168
  %v170 = vpop.f32.mrf.mxu0
  %v171 = vpop.f32.mrf.mxu0
  %v172 = vadd.f32 %v46, %v171
  %v173 = vpop.f32.mrf.mxu0
  %174 = vdwg.mxu0
  %v175 = vld [vmem:[%s2] sm:$0x1]
  %v177 = vlaneseq
  %v178 = vshrl.u32 %v177, 7
  %v179 = vsub.s32 0, %v178
  %v180 = vrot.slane %v175, %v179
  %v182 = vmul.f32 %v161, %v180
  %v183 = vmul.f32 %v164, %v180
  %v184 = vmul.f32 %v169, %v180
  %v185 = vmul.f32 %v172, %v180
  %v186 = vld [vmem:[%s3] sm:$0x1]
  %v188 = vlaneseq
  %v189 = vshrl.u32 %v188, 7
  %v190 = vsub.s32 0, %v189
  %v191 = vrot.slane %v186, %v190
  %v193 = vadd.f32 %v182, %v191
  %v194 = vadd.f32 %v183, %v191
  %v195 = vadd.f32 %v184, %v191
  %v196 = vadd.f32 %v185, %v191
  %v197 = vmax.f32 %v193, 0.0
  %v198 = vmax.f32 %v194, 0.0
  %v199 = vmax.f32 %v195, 0.0
  %v200 = vmax.f32 %v196, 0.0
  %201 = vst [vmem:[%s5] sm:$0xff] %v197
  %202 = vst [vmem:[%s5 + $0x8] sm:$0xff] %v198
  %203 = vst [vmem:[%s5 + $0x10] sm:$0xff] %v199
  %204 = vst [vmem:[%s5 + $0x18] sm:$0xff] %v200
  // Predicated region
  $region22: #{erfnet_ae_forward.111} parent=0 // pred_check
    _
  $region23: #{erfnet_ae_forward.111} parent=0 // pred_check_branch
    %206 = sbr.rel (0) target = $region25
  $region24: #{erfnet_ae_forward.111} parent=0 // pred_region
    _
  $region25: #{erfnet_ae_forward.111} parent=0 // pred_fallthru
    _
  // Predicated region
  $region26: #{erfnet_ae_forward.111} parent=0 // pred_check
    _
  $region27: #{erfnet_ae_forward.111} parent=0 // pred_check_branch
    %208 = sbr.rel (0) target = $region29
  $region28: #{erfnet_ae_forward.111} parent=0 // pred_region
    _
  $region29: #{erfnet_ae_forward.111} parent=0 // pred_fallthru
    _

// kernel: erfnet_ae_forward.112
$region0: #{erfnet_ae_forward.112}
  #allocation0 [shape = 'u32[]', space=smem, size = 0x4, offset = 0x4, fixed_abs, tag = 'smem constant byte address 0x4 - core index']
  #allocation1 [shape = 'u32[144,128]{1,0:T(1,128)}', space=vmem, size = 0x12000, scoped, tag = 'internal scratch']
  %s0 = inlined_call_operand.vmem [shape: bf16[32,192], index: 0, kind: input, shape index: {}]
  %s1 = inlined_call_operand.vmem [shape: bf16[192,128], index: 1, kind: input, shape index: {}]
  %s2 = inlined_call_operand.vmem [shape: f32[1,128], index: 2, kind: input, shape index: {}]
  %s3 = inlined_call_operand.vmem [shape: f32[1,128], index: 3, kind: input, shape index: {}]
  %s4 = inlined_call_operand.vmem [shape: f32[32,128], index: 4, kind: output, shape index: {}]
  %s5 = sld [smem:[#allocation0]]
  $region26: #{erfnet_ae_forward.112} parent=0
    _
  %s7 = ssub.s32 1, %s5
  %s8 = scalar_select 0, %s7, %s5
  // Predicated region
  $region2: #{erfnet_ae_forward.112} parent=0 // pred_check
    _
  $region3: #{erfnet_ae_forward.112} parent=0 // pred_check_branch
    %10 = sbr.rel (0) target = $region5
  $region4: #{erfnet_ae_forward.112} parent=0 // pred_region
    _
  $region5: #{erfnet_ae_forward.112} parent=0 // pred_fallthru
    _
  // Predicated region
  $region6: #{erfnet_ae_forward.112} parent=0 // pred_check
    _
  $region7: #{erfnet_ae_forward.112} parent=0 // pred_check_branch
    %12 = sbr.rel (0) target = $region9
  $region8: #{erfnet_ae_forward.112} parent=0 // pred_region
    _
  $region9: #{erfnet_ae_forward.112} parent=0 // pred_fallthru
    _
  // Predicated region
  $region10: #{erfnet_ae_forward.112} parent=0 // pred_check
    _
  $region11: #{erfnet_ae_forward.112} parent=0 // pred_check_branch
    %14 = sbr.rel (0) target = $region13
  $region12: #{erfnet_ae_forward.112} parent=0 // pred_region
    _
  $region13: #{erfnet_ae_forward.112} parent=0 // pred_fallthru
    _
  // Predicated region
  $region14: #{erfnet_ae_forward.112} parent=0 // pred_check
    _
  $region15: #{erfnet_ae_forward.112} parent=0 // pred_check_branch
    %16 = sbr.rel (0) target = $region17
  $region16: #{erfnet_ae_forward.112} parent=0 // pred_region
    _
  $region17: #{erfnet_ae_forward.112} parent=0 // pred_fallthru
    _
  %v18 = vld [vmem:[%s0] sm:$0xff]
  %v19 = vld [vmem:[%s0 + $0x8] sm:$0xff]
  %v20 = vld [vmem:[%s0 + $0x10] sm:$0xff]
  %v21 = vld [vmem:[%s0 + $0x18] sm:$0xff]
  %v22 = vld [vmem:[%s1] sm:$0xf]
  %v23 = vld [vmem:[%s1 + $0x4] sm:$0xf]
  %v24 = vld [vmem:[%s1 + $0x8] sm:$0xf]
  %v25 = vld [vmem:[%s1 + $0xc] sm:$0xf]
  %v26 = vld [vmem:[%s1 + $0x10] sm:$0xf]
  %v27 = vld [vmem:[%s1 + $0x14] sm:$0xf]
  %v28 = vld [vmem:[%s1 + $0x18] sm:$0xf]
  %v29 = vld [vmem:[%s1 + $0x1c] sm:$0xf]
  %v30 = vld [vmem:[%s1 + $0x20] sm:$0xf]
  %v31 = vld [vmem:[%s1 + $0x24] sm:$0xf]
  %v32 = vld [vmem:[%s1 + $0x28] sm:$0xf]
  %v33 = vld [vmem:[%s1 + $0x2c] sm:$0xf]
  %v34 = vld [vmem:[%s1 + $0x30] sm:$0xf]
  %v35 = vld [vmem:[%s1 + $0x34] sm:$0xf]
  %v36 = vld [vmem:[%s1 + $0x38] sm:$0xf]
  %v37 = vld [vmem:[%s1 + $0x3c] sm:$0xf]
  %v38 = vld [vmem:[%s1 + $0x40] sm:$0xf]
  %v39 = vld [vmem:[%s1 + $0x44] sm:$0xf]
  %v40 = vld [vmem:[%s1 + $0x48] sm:$0xf]
  %v41 = vld [vmem:[%s1 + $0x4c] sm:$0xf]
  %v42 = vld [vmem:[%s1 + $0x50] sm:$0xf]
  %v43 = vld [vmem:[%s1 + $0x54] sm:$0xf]
  %v44 = vld [vmem:[%s1 + $0x58] sm:$0xf]
  %v45 = vld [vmem:[%s1 + $0x5c] sm:$0xf]
  %v50 = vunpack.c.l.b16 %v18
  %v51 = vunpack.c.h.b16 %v18
  %v52 = vunpack.c.l.b16 %v19
  %v53 = vunpack.c.h.b16 %v19
  %v54 = vunpack.c.l.b16 %v20
  %v55 = vunpack.c.h.b16 %v20
  %v56 = vunpack.c.l.b16 %v21
  %v57 = vunpack.c.h.b16 %v21
  %v58 = vpack.c.b16 %v52, %v50
  %v59 = vpack.c.b16 %v53, %v51
  %v60 = vpack.c.b16 %v56, %v54
  %v61 = vpack.c.b16 %v57, %v55
  %v88 = vunpack.c.l.b16 %v22
  %v89 = vunpack.c.l.b16 %v23
  %v90 = vunpack.c.l.b16 %v24
  %v91 = vunpack.c.l.b16 %v25
  %v92 = vunpack.c.l.b16 %v26
  %v93 = vunpack.c.l.b16 %v27
  %v94 = vunpack.c.l.b16 %v28
  %v95 = vunpack.c.l.b16 %v29
  %v96 = vunpack.c.l.b16 %v30
  %v97 = vunpack.c.l.b16 %v31
  %v98 = vunpack.c.l.b16 %v32
  %v99 = vunpack.c.l.b16 %v33
  %v100 = vunpack.c.l.b16 %v34
  %v101 = vunpack.c.l.b16 %v35
  %v102 = vunpack.c.l.b16 %v36
  %v103 = vunpack.c.l.b16 %v37
  %v104 = vunpack.c.l.b16 %v38
  %v105 = vunpack.c.l.b16 %v39
  %v106 = vunpack.c.l.b16 %v40
  %v107 = vunpack.c.l.b16 %v41
  %v108 = vunpack.c.l.b16 %v42
  %v109 = vunpack.c.l.b16 %v43
  %v110 = vunpack.c.l.b16 %v44
  %v111 = vunpack.c.l.b16 %v45
  %v112 = vpack.c.b16 %v89, %v88
  %v113 = vpack.c.b16 %v91, %v90
  %v114 = vpack.c.b16 %v93, %v92
  %v115 = vpack.c.b16 %v95, %v94
  %v116 = vpack.c.b16 %v97, %v96
  %v117 = vpack.c.b16 %v99, %v98
  %v118 = vpack.c.b16 %v101, %v100
  %v119 = vpack.c.b16 %v103, %v102
  %v120 = vpack.c.b16 %v105, %v104
  %v121 = vpack.c.b16 %v107, %v106
  %v122 = vpack.c.b16 %v109, %v108
  %v123 = vpack.c.b16 %v111, %v110
  %vm136 = vcmask 523264
  %v138 = vsel %vm136, %v59, 0
  %v141 = vsel %vm136, %v61, 0
  %143 = vmatprep.subr.bf16.mxu0 0
  %144 = vmatpush1.bf16.msra.mxu0 %v119
  %145 = vmatprep.subr.bf16.mxu0 0
  %146 = vmatpush1.bf16.msra.mxu0 %v118
  %147 = vmatprep.subr.bf16.mxu0 0
  %148 = vmatpush1.bf16.msra.mxu0 %v117
  %149 = vmatprep.subr.bf16.mxu0 0
  %150 = vmatpush1.bf16.msra.mxu0 %v116
  %151 = vmatprep.subr.bf16.mxu0 0
  %152 = vmatpush1.bf16.msra.mxu0 %v115
  %153 = vmatprep.subr.bf16.mxu0 0
  %154 = vmatpush1.bf16.msra.mxu0 %v114
  %155 = vmatprep.subr.bf16.mxu0 0
  %156 = vmatpush1.bf16.msra.mxu0 %v113
  %157 = vmatprep.subr.bf16.mxu0 0
  %158 = vmatpush1.bf16.msra.mxu0 %v112
  %159 = vmatprep.subr.bf16.mxu0 0
  %160 = vmatpush2.bf16.msra.mxu0 0
  %161 = vmatprep.subr.bf16.mxu0 0
  %162 = vmatpush2.bf16.msra.mxu0 0
  %163 = vmatprep.subr.bf16.mxu0 0
  %164 = vmatpush2.bf16.msra.mxu0 0
  %165 = vmatprep.subr.bf16.mxu0 0
  %166 = vmatpush2.bf16.msra.mxu0 0
  %167 = vmatprep.subr.bf16.mxu0 0
  %168 = vmatpush2.bf16.msra.mxu0 %v123
  %169 = vmatprep.subr.bf16.mxu0 0
  %170 = vmatpush2.bf16.msra.mxu0 %v122
  %171 = vmatprep.subr.bf16.mxu0 0
  %172 = vmatpush2.bf16.msra.mxu0 %v121
  %173 = vmatprep.subr.bf16.mxu0 0
  %174 = vmatpush2.bf16.msra.mxu0 %v120
  %175 = vmatprep.mubr.bf16.mxu0 %v138
  %176 = vmatmul.mubr.bf16.gmra.mxu0 %v58
  %v177 = vpop.f32.mrf.mxu0
  %v178 = vadd.f32 0.0, %v177
  %v179 = vpop.f32.mrf.mxu0
  %v180 = vpop.f32.mrf.mxu0
  %v181 = vadd.f32 0.0, %v180
  %v182 = vpop.f32.mrf.mxu0
  %183 = vmatprep.mubr.bf16.mxu0 %v141
  %184 = vmatmul.mubr.bf16.gmra.mxu0 %v60
  %v185 = vpop.f32.mrf.mxu0
  %v186 = vadd.f32 0.0, %v185
  %v187 = vpop.f32.mrf.mxu0
  %v188 = vpop.f32.mrf.mxu0
  %v189 = vadd.f32 0.0, %v188
  %v190 = vpop.f32.mrf.mxu0
  %191 = vdwg.mxu0
  %v192 = vld [vmem:[%s2] sm:$0x1]
  %v194 = vlaneseq
  %v195 = vshrl.u32 %v194, 7
  %v196 = vsub.s32 0, %v195
  %v197 = vrot.slane %v192, %v196
  %v199 = vmul.f32 %v178, %v197
  %v200 = vmul.f32 %v181, %v197
  %v201 = vmul.f32 %v186, %v197
  %v202 = vmul.f32 %v189, %v197
  %v203 = vld [vmem:[%s3] sm:$0x1]
  %v205 = vlaneseq
  %v206 = vshrl.u32 %v205, 7
  %v207 = vsub.s32 0, %v206
  %v208 = vrot.slane %v203, %v207
  %v210 = vadd.f32 %v199, %v208
  %v211 = vadd.f32 %v200, %v208
  %v212 = vadd.f32 %v201, %v208
  %v213 = vadd.f32 %v202, %v208
  %v214 = vmax.f32 %v210, 0.0
  %v215 = vmax.f32 %v211, 0.0
  %v216 = vmax.f32 %v212, 0.0
  %v217 = vmax.f32 %v213, 0.0
  %218 = vst [vmem:[%s4] sm:$0xff] %v214
  %219 = vst [vmem:[%s4 + $0x8] sm:$0xff] %v215
  %220 = vst [vmem:[%s4 + $0x10] sm:$0xff] %v216
  %221 = vst [vmem:[%s4 + $0x18] sm:$0xff] %v217
  // Predicated region
  $region18: #{erfnet_ae_forward.112} parent=0 // pred_check
    _
  $region19: #{erfnet_ae_forward.112} parent=0 // pred_check_branch
    %223 = sbr.rel (0) target = $region21
  $region20: #{erfnet_ae_forward.112} parent=0 // pred_region
    _
  $region21: #{erfnet_ae_forward.112} parent=0 // pred_fallthru
    _
  // Predicated region
  $region22: #{erfnet_ae_forward.112} parent=0 // pred_check
    _
  $region23: #{erfnet_ae_forward.112} parent=0 // pred_check_branch
    %225 = sbr.rel (0) target = $region25
  $region24: #{erfnet_ae_forward.112} parent=0 // pred_region
    _
  $region25: #{erfnet_ae_forward.112} parent=0 // pred_fallthru
    _

// kernel: erfnet_ae_forward.115
$region0: #{erfnet_ae_forward.115}
  #allocation0 [shape = 'u32[]', space=smem, size = 0x4, offset = 0x4, fixed_abs, tag = 'smem constant byte address 0x4 - core index']
  #allocation1 [shape = 'u32[144,128]{1,0:T(1,128)}', space=vmem, size = 0x12000, scoped, tag = 'internal scratch']
  %s0 = inlined_call_operand.vmem [shape: bf16[32,192], index: 0, kind: input, shape index: {}]
  %s1 = inlined_call_operand.vmem [shape: bf16[192,128], index: 1, kind: input, shape index: {}]
  %s2 = inlined_call_operand.vmem [shape: f32[1,128], index: 2, kind: input, shape index: {}]
  %s3 = inlined_call_operand.vmem [shape: f32[1,128], index: 3, kind: input, shape index: {}]
  %s4 = inlined_call_operand.vmem [shape: f32[32,128], index: 4, kind: input, shape index: {}]
  %s5 = inlined_call_operand.vmem [shape: f32[32,128], index: 5, kind: output, shape index: {}]
  %s6 = sld [smem:[#allocation0]]
  $region30: #{erfnet_ae_forward.115} parent=0
    _
  %s8 = ssub.s32 1, %s6
  %s9 = scalar_select 0, %s8, %s6
  // Predicated region
  $region2: #{erfnet_ae_forward.115} parent=0 // pred_check
    _
  $region3: #{erfnet_ae_forward.115} parent=0 // pred_check_branch
    %11 = sbr.rel (0) target = $region5
  $region4: #{erfnet_ae_forward.115} parent=0 // pred_region
    _
  $region5: #{erfnet_ae_forward.115} parent=0 // pred_fallthru
    _
  // Predicated region
  $region6: #{erfnet_ae_forward.115} parent=0 // pred_check
    _
  $region7: #{erfnet_ae_forward.115} parent=0 // pred_check_branch
    %13 = sbr.rel (0) target = $region9
  $region8: #{erfnet_ae_forward.115} parent=0 // pred_region
    _
  $region9: #{erfnet_ae_forward.115} parent=0 // pred_fallthru
    _
  // Predicated region
  $region10: #{erfnet_ae_forward.115} parent=0 // pred_check
    _
  $region11: #{erfnet_ae_forward.115} parent=0 // pred_check_branch
    %15 = sbr.rel (0) target = $region13
  $region12: #{erfnet_ae_forward.115} parent=0 // pred_region
    _
  $region13: #{erfnet_ae_forward.115} parent=0 // pred_fallthru
    _
  // Predicated region
  $region14: #{erfnet_ae_forward.115} parent=0 // pred_check
    _
  $region15: #{erfnet_ae_forward.115} parent=0 // pred_check_branch
    %17 = sbr.rel (0) target = $region17
  $region16: #{erfnet_ae_forward.115} parent=0 // pred_region
    _
  $region17: #{erfnet_ae_forward.115} parent=0 // pred_fallthru
    _
  // Predicated region
  $region18: #{erfnet_ae_forward.115} parent=0 // pred_check
    _
  $region19: #{erfnet_ae_forward.115} parent=0 // pred_check_branch
    %19 = sbr.rel (0) target = $region21
  $region20: #{erfnet_ae_forward.115} parent=0 // pred_region
    _
  $region21: #{erfnet_ae_forward.115} parent=0 // pred_fallthru
    _
  %v21 = vld [vmem:[%s0] sm:$0xff]
  %v22 = vld [vmem:[%s0 + $0x8] sm:$0xff]
  %v23 = vld [vmem:[%s0 + $0x10] sm:$0xff]
  %v24 = vld [vmem:[%s0 + $0x18] sm:$0xff]
  %v25 = vld [vmem:[%s1] sm:$0xf]
  %v26 = vld [vmem:[%s1 + $0x4] sm:$0xf]
  %v27 = vld [vmem:[%s1 + $0x8] sm:$0xf]
  %v28 = vld [vmem:[%s1 + $0xc] sm:$0xf]
  %v29 = vld [vmem:[%s1 + $0x10] sm:$0xf]
  %v30 = vld [vmem:[%s1 + $0x14] sm:$0xf]
  %v31 = vld [vmem:[%s1 + $0x18] sm:$0xf]
  %v32 = vld [vmem:[%s1 + $0x1c] sm:$0xf]
  %v33 = vld [vmem:[%s1 + $0x20] sm:$0xf]
  %v34 = vld [vmem:[%s1 + $0x24] sm:$0xf]
  %v35 = vld [vmem:[%s1 + $0x28] sm:$0xf]
  %v36 = vld [vmem:[%s1 + $0x2c] sm:$0xf]
  %v37 = vld [vmem:[%s1 + $0x30] sm:$0xf]
  %v38 = vld [vmem:[%s1 + $0x34] sm:$0xf]
  %v39 = vld [vmem:[%s1 + $0x38] sm:$0xf]
  %v40 = vld [vmem:[%s1 + $0x3c] sm:$0xf]
  %v41 = vld [vmem:[%s1 + $0x40] sm:$0xf]
  %v42 = vld [vmem:[%s1 + $0x44] sm:$0xf]
  %v43 = vld [vmem:[%s1 + $0x48] sm:$0xf]
  %v44 = vld [vmem:[%s1 + $0x4c] sm:$0xf]
  %v45 = vld [vmem:[%s1 + $0x50] sm:$0xf]
  %v46 = vld [vmem:[%s1 + $0x54] sm:$0xf]
  %v47 = vld [vmem:[%s1 + $0x58] sm:$0xf]
  %v48 = vld [vmem:[%s1 + $0x5c] sm:$0xf]
  %v53 = vunpack.c.l.b16 %v21
  %v54 = vunpack.c.h.b16 %v21
  %v55 = vunpack.c.l.b16 %v22
  %v56 = vunpack.c.h.b16 %v22
  %v57 = vunpack.c.l.b16 %v23
  %v58 = vunpack.c.h.b16 %v23
  %v59 = vunpack.c.l.b16 %v24
  %v60 = vunpack.c.h.b16 %v24
  %v61 = vpack.c.b16 %v55, %v53
  %v62 = vpack.c.b16 %v56, %v54
  %v63 = vpack.c.b16 %v59, %v57
  %v64 = vpack.c.b16 %v60, %v58
  %v91 = vunpack.c.l.b16 %v25
  %v92 = vunpack.c.l.b16 %v26
  %v93 = vunpack.c.l.b16 %v27
  %v94 = vunpack.c.l.b16 %v28
  %v95 = vunpack.c.l.b16 %v29
  %v96 = vunpack.c.l.b16 %v30
  %v97 = vunpack.c.l.b16 %v31
  %v98 = vunpack.c.l.b16 %v32
  %v99 = vunpack.c.l.b16 %v33
  %v100 = vunpack.c.l.b16 %v34
  %v101 = vunpack.c.l.b16 %v35
  %v102 = vunpack.c.l.b16 %v36
  %v103 = vunpack.c.l.b16 %v37
  %v104 = vunpack.c.l.b16 %v38
  %v105 = vunpack.c.l.b16 %v39
  %v106 = vunpack.c.l.b16 %v40
  %v107 = vunpack.c.l.b16 %v41
  %v108 = vunpack.c.l.b16 %v42
  %v109 = vunpack.c.l.b16 %v43
  %v110 = vunpack.c.l.b16 %v44
  %v111 = vunpack.c.l.b16 %v45
  %v112 = vunpack.c.l.b16 %v46
  %v113 = vunpack.c.l.b16 %v47
  %v114 = vunpack.c.l.b16 %v48
  %v115 = vpack.c.b16 %v92, %v91
  %v116 = vpack.c.b16 %v94, %v93
  %v117 = vpack.c.b16 %v96, %v95
  %v118 = vpack.c.b16 %v98, %v97
  %v119 = vpack.c.b16 %v100, %v99
  %v120 = vpack.c.b16 %v102, %v101
  %v121 = vpack.c.b16 %v104, %v103
  %v122 = vpack.c.b16 %v106, %v105
  %v123 = vpack.c.b16 %v108, %v107
  %v124 = vpack.c.b16 %v110, %v109
  %v125 = vpack.c.b16 %v112, %v111
  %v126 = vpack.c.b16 %v114, %v113
  %vm139 = vcmask 523264
  %v141 = vsel %vm139, %v62, 0
  %v144 = vsel %vm139, %v64, 0
  %146 = vmatprep.subr.bf16.mxu0 0
  %147 = vmatpush1.bf16.msra.mxu0 %v122
  %148 = vmatprep.subr.bf16.mxu0 0
  %149 = vmatpush1.bf16.msra.mxu0 %v121
  %150 = vmatprep.subr.bf16.mxu0 0
  %151 = vmatpush1.bf16.msra.mxu0 %v120
  %152 = vmatprep.subr.bf16.mxu0 0
  %153 = vmatpush1.bf16.msra.mxu0 %v119
  %154 = vmatprep.subr.bf16.mxu0 0
  %155 = vmatpush1.bf16.msra.mxu0 %v118
  %156 = vmatprep.subr.bf16.mxu0 0
  %157 = vmatpush1.bf16.msra.mxu0 %v117
  %158 = vmatprep.subr.bf16.mxu0 0
  %159 = vmatpush1.bf16.msra.mxu0 %v116
  %160 = vmatprep.subr.bf16.mxu0 0
  %161 = vmatpush1.bf16.msra.mxu0 %v115
  %162 = vmatprep.subr.bf16.mxu0 0
  %163 = vmatpush2.bf16.msra.mxu0 0
  %164 = vmatprep.subr.bf16.mxu0 0
  %165 = vmatpush2.bf16.msra.mxu0 0
  %166 = vmatprep.subr.bf16.mxu0 0
  %167 = vmatpush2.bf16.msra.mxu0 0
  %168 = vmatprep.subr.bf16.mxu0 0
  %169 = vmatpush2.bf16.msra.mxu0 0
  %170 = vmatprep.subr.bf16.mxu0 0
  %171 = vmatpush2.bf16.msra.mxu0 %v126
  %172 = vmatprep.subr.bf16.mxu0 0
  %173 = vmatpush2.bf16.msra.mxu0 %v125
  %174 = vmatprep.subr.bf16.mxu0 0
  %175 = vmatpush2.bf16.msra.mxu0 %v124
  %176 = vmatprep.subr.bf16.mxu0 0
  %177 = vmatpush2.bf16.msra.mxu0 %v123
  %178 = vmatprep.mubr.bf16.mxu0 %v141
  %179 = vmatmul.mubr.bf16.gmra.mxu0 %v61
  %v180 = vpop.f32.mrf.mxu0
  %v181 = vadd.f32 0.0, %v180
  %v182 = vpop.f32.mrf.mxu0
  %v183 = vpop.f32.mrf.mxu0
  %v184 = vadd.f32 0.0, %v183
  %v185 = vpop.f32.mrf.mxu0
  %186 = vmatprep.mubr.bf16.mxu0 %v144
  %187 = vmatmul.mubr.bf16.gmra.mxu0 %v63
  %v188 = vpop.f32.mrf.mxu0
  %v189 = vadd.f32 0.0, %v188
  %v190 = vpop.f32.mrf.mxu0
  %v191 = vpop.f32.mrf.mxu0
  %v192 = vadd.f32 0.0, %v191
  %v193 = vpop.f32.mrf.mxu0
  %194 = vdwg.mxu0
  %v195 = vld [vmem:[%s2] sm:$0x1]
  %v197 = vlaneseq
  %v198 = vshrl.u32 %v197, 7
  %v199 = vsub.s32 0, %v198
  %v200 = vrot.slane %v195, %v199
  %v202 = vmul.f32 %v181, %v200
  %v203 = vmul.f32 %v184, %v200
  %v204 = vmul.f32 %v189, %v200
  %v205 = vmul.f32 %v192, %v200
  %v206 = vld [vmem:[%s3] sm:$0x1]
  %v208 = vlaneseq
  %v209 = vshrl.u32 %v208, 7
  %v210 = vsub.s32 0, %v209
  %v211 = vrot.slane %v206, %v210
  %v213 = vadd.f32 %v202, %v211
  %v214 = vadd.f32 %v203, %v211
  %v215 = vadd.f32 %v204, %v211
  %v216 = vadd.f32 %v205, %v211
  %v217 = vld [vmem:[%s4] sm:$0xff]
  %v218 = vld [vmem:[%s4 + $0x8] sm:$0xff]
  %v219 = vld [vmem:[%s4 + $0x10] sm:$0xff]
  %v220 = vld [vmem:[%s4 + $0x18] sm:$0xff]
  %v221 = vadd.f32 %v213, %v217
  %v222 = vadd.f32 %v214, %v218
  %v223 = vadd.f32 %v215, %v219
  %v224 = vadd.f32 %v216, %v220
  %v225 = vmax.f32 %v221, 0.0
  %v226 = vmax.f32 %v222, 0.0
  %v227 = vmax.f32 %v223, 0.0
  %v228 = vmax.f32 %v224, 0.0
  %229 = vst [vmem:[%s5] sm:$0xff] %v225
  %230 = vst [vmem:[%s5 + $0x8] sm:$0xff] %v226
  %231 = vst [vmem:[%s5 + $0x10] sm:$0xff] %v227
  %232 = vst [vmem:[%s5 + $0x18] sm:$0xff] %v228
  // Predicated region
  $region22: #{erfnet_ae_forward.115} parent=0 // pred_check
    _
  $region23: #{erfnet_ae_forward.115} parent=0 // pred_check_branch
    %234 = sbr.rel (0) target = $region25
  $region24: #{erfnet_ae_forward.115} parent=0 // pred_region
    _
  $region25: #{erfnet_ae_forward.115} parent=0 // pred_fallthru
    _
  // Predicated region
  $region26: #{erfnet_ae_forward.115} parent=0 // pred_check
    _
  $region27: #{erfnet_ae_forward.115} parent=0 // pred_check_branch
    %236 = sbr.rel (0) target = $region29
  $region28: #{erfnet_ae_forward.115} parent=0 // pred_region
    _
  $region29: #{erfnet_ae_forward.115} parent=0 // pred_fallthru
    _

// kernel: erfnet_ae_forward.132
$region0: #{erfnet_ae_forward.132}
  #allocation0 [shape = 'u32[]', space=smem, size = 0x4, offset = 0x4, fixed_abs, tag = 'smem constant byte address 0x4 - core index']
  #allocation1 [shape = 'u32[144,128]{1,0:T(1,128)}', space=vmem, size = 0x12000, scoped, tag = 'internal scratch']
  %s0 = inlined_call_operand.vmem [shape: bf16[8,576], index: 0, kind: input, shape index: {}]
  %s1 = inlined_call_operand.vmem [shape: bf16[576,128], index: 1, kind: input, shape index: {}]
  %s2 = inlined_call_operand.vmem [shape: f32[1,128], index: 2, kind: input, shape index: {}]
  %s3 = inlined_call_operand.vmem [shape: f32[1,128], index: 3, kind: input, shape index: {}]
  %s4 = inlined_call_operand.vmem [shape: f32[8,128], index: 4, kind: input, shape index: {}]
  %s5 = inlined_call_operand.vmem [shape: f32[8,128], index: 5, kind: output, shape index: {}]
  %s6 = sld [smem:[#allocation0]]
  $region30: #{erfnet_ae_forward.132} parent=0
    _
  %s8 = ssub.s32 1, %s6
  %s9 = scalar_select 0, %s8, %s6
  // Predicated region
  $region2: #{erfnet_ae_forward.132} parent=0 // pred_check
    _
  $region3: #{erfnet_ae_forward.132} parent=0 // pred_check_branch
    %11 = sbr.rel (0) target = $region5
  $region4: #{erfnet_ae_forward.132} parent=0 // pred_region
    _
  $region5: #{erfnet_ae_forward.132} parent=0 // pred_fallthru
    _
  // Predicated region
  $region6: #{erfnet_ae_forward.132} parent=0 // pred_check
    _
  $region7: #{erfnet_ae_forward.132} parent=0 // pred_check_branch
    %13 = sbr.rel (0) target = $region9
  $region8: #{erfnet_ae_forward.132} parent=0 // pred_region
    _
  $region9: #{erfnet_ae_forward.132} parent=0 // pred_fallthru
    _
  // Predicated region
  $region10: #{erfnet_ae_forward.132} parent=0 // pred_check
    _
  $region11: #{erfnet_ae_forward.132} parent=0 // pred_check_branch
    %15 = sbr.rel (0) target = $region13
  $region12: #{erfnet_ae_forward.132} parent=0 // pred_region
    _
  $region13: #{erfnet_ae_forward.132} parent=0 // pred_fallthru
    _
  // Predicated region
  $region14: #{erfnet_ae_forward.132} parent=0 // pred_check
    _
  $region15: #{erfnet_ae_forward.132} parent=0 // pred_check_branch
    %17 = sbr.rel (0) target = $region17
  $region16: #{erfnet_ae_forward.132} parent=0 // pred_region
    _
  $region17: #{erfnet_ae_forward.132} parent=0 // pred_fallthru
    _
  // Predicated region
  $region18: #{erfnet_ae_forward.132} parent=0 // pred_check
    _
  $region19: #{erfnet_ae_forward.132} parent=0 // pred_check_branch
    %19 = sbr.rel (0) target = $region21
  $region20: #{erfnet_ae_forward.132} parent=0 // pred_region
    _
  $region21: #{erfnet_ae_forward.132} parent=0 // pred_fallthru
    _
  %v21 = vld [vmem:[%s0] sm:$0xff]
  %v22 = vld [vmem:[%s0 + $0x8] sm:$0xff]
  %v23 = vld [vmem:[%s0 + $0x10] sm:$0xf]
  %v24 = vld [vmem:[%s1] sm:$0xf]
  %v25 = vld [vmem:[%s1 + $0x4] sm:$0xf]
  %v26 = vld [vmem:[%s1 + $0x8] sm:$0xf]
  %v27 = vld [vmem:[%s1 + $0xc] sm:$0xf]
  %v28 = vld [vmem:[%s1 + $0x10] sm:$0xf]
  %v29 = vld [vmem:[%s1 + $0x14] sm:$0xf]
  %v30 = vld [vmem:[%s1 + $0x18] sm:$0xf]
  %v31 = vld [vmem:[%s1 + $0x1c] sm:$0xf]
  %v32 = vld [vmem:[%s1 + $0x20] sm:$0xf]
  %v33 = vld [vmem:[%s1 + $0x24] sm:$0xf]
  %v34 = vld [vmem:[%s1 + $0x28] sm:$0xf]
  %v35 = vld [vmem:[%s1 + $0x2c] sm:$0xf]
  %v36 = vld [vmem:[%s1 + $0x30] sm:$0xf]
  %v37 = vld [vmem:[%s1 + $0x34] sm:$0xf]
  %v38 = vld [vmem:[%s1 + $0x38] sm:$0xf]
  %v39 = vld [vmem:[%s1 + $0x3c] sm:$0xf]
  %v40 = vld [vmem:[%s1 + $0x40] sm:$0xf]
  %v41 = vld [vmem:[%s1 + $0x44] sm:$0xf]
  %v42 = vld [vmem:[%s1 + $0x48] sm:$0xf]
  %v43 = vld [vmem:[%s1 + $0x4c] sm:$0xf]
  %v44 = vld [vmem:[%s1 + $0x50] sm:$0xf]
  %v45 = vld [vmem:[%s1 + $0x54] sm:$0xf]
  %v46 = vld [vmem:[%s1 + $0x58] sm:$0xf]
  %v47 = vld [vmem:[%s1 + $0x5c] sm:$0xf]
  %v48 = vld [vmem:[%s1 + $0x60] sm:$0xf]
  %v49 = vld [vmem:[%s1 + $0x64] sm:$0xf]
  %v50 = vld [vmem:[%s1 + $0x68] sm:$0xf]
  %v51 = vld [vmem:[%s1 + $0x6c] sm:$0xf]
  %v52 = vld [vmem:[%s1 + $0x70] sm:$0xf]
  %v53 = vld [vmem:[%s1 + $0x74] sm:$0xf]
  %v54 = vld [vmem:[%s1 + $0x78] sm:$0xf]
  %v55 = vld [vmem:[%s1 + $0x7c] sm:$0xf]
  %v56 = vld [vmem:[%s1 + $0x80] sm:$0xf]
  %v57 = vld [vmem:[%s1 + $0x84] sm:$0xf]
  %v58 = vld [vmem:[%s1 + $0x88] sm:$0xf]
  %v59 = vld [vmem:[%s1 + $0x8c] sm:$0xf]
  %v60 = vld [vmem:[%s1 + $0x90] sm:$0xf]
  %v61 = vld [vmem:[%s1 + $0x94] sm:$0xf]
  %v62 = vld [vmem:[%s1 + $0x98] sm:$0xf]
  %v63 = vld [vmem:[%s1 + $0x9c] sm:$0xf]
  %v64 = vld [vmem:[%s1 + $0xa0] sm:$0xf]
  %v65 = vld [vmem:[%s1 + $0xa4] sm:$0xf]
  %v66 = vld [vmem:[%s1 + $0xa8] sm:$0xf]
  %v67 = vld [vmem:[%s1 + $0xac] sm:$0xf]
  %v68 = vld [vmem:[%s1 + $0xb0] sm:$0xf]
  %v69 = vld [vmem:[%s1 + $0xb4] sm:$0xf]
  %v70 = vld [vmem:[%s1 + $0xb8] sm:$0xf]
  %v71 = vld [vmem:[%s1 + $0xbc] sm:$0xf]
  %v72 = vld [vmem:[%s1 + $0xc0] sm:$0xf]
  %v73 = vld [vmem:[%s1 + $0xc4] sm:$0xf]
  %v74 = vld [vmem:[%s1 + $0xc8] sm:$0xf]
  %v75 = vld [vmem:[%s1 + $0xcc] sm:$0xf]
  %v76 = vld [vmem:[%s1 + $0xd0] sm:$0xf]
  %v77 = vld [vmem:[%s1 + $0xd4] sm:$0xf]
  %v78 = vld [vmem:[%s1 + $0xd8] sm:$0xf]
  %v79 = vld [vmem:[%s1 + $0xdc] sm:$0xf]
  %v80 = vld [vmem:[%s1 + $0xe0] sm:$0xf]
  %v81 = vld [vmem:[%s1 + $0xe4] sm:$0xf]
  %v82 = vld [vmem:[%s1 + $0xe8] sm:$0xf]
  %v83 = vld [vmem:[%s1 + $0xec] sm:$0xf]
  %v84 = vld [vmem:[%s1 + $0xf0] sm:$0xf]
  %v85 = vld [vmem:[%s1 + $0xf4] sm:$0xf]
  %v86 = vld [vmem:[%s1 + $0xf8] sm:$0xf]
  %v87 = vld [vmem:[%s1 + $0xfc] sm:$0xf]
  %v88 = vld [vmem:[%s1 + $0x100] sm:$0xf]
  %v89 = vld [vmem:[%s1 + $0x104] sm:$0xf]
  %v90 = vld [vmem:[%s1 + $0x108] sm:$0xf]
  %v91 = vld [vmem:[%s1 + $0x10c] sm:$0xf]
  %v92 = vld [vmem:[%s1 + $0x110] sm:$0xf]
  %v93 = vld [vmem:[%s1 + $0x114] sm:$0xf]
  %v94 = vld [vmem:[%s1 + $0x118] sm:$0xf]
  %v95 = vld [vmem:[%s1 + $0x11c] sm:$0xf]
  %v96 = vld [vmem:[%s4] sm:$0xff]
  %v100 = vunpack.c.l.b16 %v21
  %v101 = vunpack.c.h.b16 %v21
  %v102 = vunpack.c.l.b16 %v22
  %v103 = vunpack.c.h.b16 %v22
  %v104 = vunpack.c.l.b16 %v23
  %v105 = vpack.c.b16 %v100, %v100
  %v106 = vpack.c.b16 %v101, %v101
  %v107 = vpack.c.b16 %v102, %v102
  %v108 = vpack.c.b16 %v103, %v103
  %v109 = vpack.c.b16 %v104, %v104
  %v186 = vunpack.c.l.b16 %v24
  %v187 = vunpack.c.l.b16 %v25
  %v188 = vunpack.c.l.b16 %v26
  %v189 = vunpack.c.l.b16 %v27
  %v190 = vunpack.c.l.b16 %v28
  %v191 = vunpack.c.l.b16 %v29
  %v192 = vunpack.c.l.b16 %v30
  %v193 = vunpack.c.l.b16 %v31
  %v194 = vunpack.c.l.b16 %v32
  %v195 = vunpack.c.l.b16 %v33
  %v196 = vunpack.c.l.b16 %v34
  %v197 = vunpack.c.l.b16 %v35
  %v198 = vunpack.c.l.b16 %v36
  %v199 = vunpack.c.l.b16 %v37
  %v200 = vunpack.c.l.b16 %v38
  %v201 = vunpack.c.l.b16 %v39
  %v202 = vunpack.c.l.b16 %v40
  %v203 = vunpack.c.l.b16 %v41
  %v204 = vunpack.c.l.b16 %v42
  %v205 = vunpack.c.l.b16 %v43
  %v206 = vunpack.c.l.b16 %v44
  %v207 = vunpack.c.l.b16 %v45
  %v208 = vunpack.c.l.b16 %v46
  %v209 = vunpack.c.l.b16 %v47
  %v210 = vunpack.c.l.b16 %v48
  %v211 = vunpack.c.l.b16 %v49
  %v212 = vunpack.c.l.b16 %v50
  %v213 = vunpack.c.l.b16 %v51
  %v214 = vunpack.c.l.b16 %v52
  %v215 = vunpack.c.l.b16 %v53
  %v216 = vunpack.c.l.b16 %v54
  %v217 = vunpack.c.l.b16 %v55
  %v218 = vunpack.c.l.b16 %v56
  %v219 = vunpack.c.l.b16 %v57
  %v220 = vunpack.c.l.b16 %v58
  %v221 = vunpack.c.l.b16 %v59
  %v222 = vunpack.c.l.b16 %v60
  %v223 = vunpack.c.l.b16 %v61
  %v224 = vunpack.c.l.b16 %v62
  %v225 = vunpack.c.l.b16 %v63
  %v226 = vunpack.c.l.b16 %v64
  %v227 = vunpack.c.l.b16 %v65
  %v228 = vunpack.c.l.b16 %v66
  %v229 = vunpack.c.l.b16 %v67
  %v230 = vunpack.c.l.b16 %v68
  %v231 = vunpack.c.l.b16 %v69
  %v232 = vunpack.c.l.b16 %v70
  %v233 = vunpack.c.l.b16 %v71
  %v234 = vunpack.c.l.b16 %v72
  %v235 = vunpack.c.l.b16 %v73
  %v236 = vunpack.c.l.b16 %v74
  %v237 = vunpack.c.l.b16 %v75
  %v238 = vunpack.c.l.b16 %v76
  %v239 = vunpack.c.l.b16 %v77
  %v240 = vunpack.c.l.b16 %v78
  %v241 = vunpack.c.l.b16 %v79
  %v242 = vunpack.c.l.b16 %v80
  %v243 = vunpack.c.l.b16 %v81
  %v244 = vunpack.c.l.b16 %v82
  %v245 = vunpack.c.l.b16 %v83
  %v246 = vunpack.c.l.b16 %v84
  %v247 = vunpack.c.l.b16 %v85
  %v248 = vunpack.c.l.b16 %v86
  %v249 = vunpack.c.l.b16 %v87
  %v250 = vunpack.c.l.b16 %v88
  %v251 = vunpack.c.l.b16 %v89
  %v252 = vunpack.c.l.b16 %v90
  %v253 = vunpack.c.l.b16 %v91
  %v254 = vunpack.c.l.b16 %v92
  %v255 = vunpack.c.l.b16 %v93
  %v256 = vunpack.c.l.b16 %v94
  %v257 = vunpack.c.l.b16 %v95
  %v258 = vpack.c.b16 %v187, %v186
  %v259 = vpack.c.b16 %v189, %v188
  %v260 = vpack.c.b16 %v191, %v190
  %v261 = vpack.c.b16 %v193, %v192
  %v262 = vpack.c.b16 %v195, %v194
  %v263 = vpack.c.b16 %v197, %v196
  %v264 = vpack.c.b16 %v199, %v198
  %v265 = vpack.c.b16 %v201, %v200
  %v266 = vpack.c.b16 %v203, %v202
  %v267 = vpack.c.b16 %v205, %v204
  %v268 = vpack.c.b16 %v207, %v206
  %v269 = vpack.c.b16 %v209, %v208
  %v270 = vpack.c.b16 %v211, %v210
  %v271 = vpack.c.b16 %v213, %v212
  %v272 = vpack.c.b16 %v215, %v214
  %v273 = vpack.c.b16 %v217, %v216
  %v274 = vpack.c.b16 %v219, %v218
  %v275 = vpack.c.b16 %v221, %v220
  %v276 = vpack.c.b16 %v223, %v222
  %v277 = vpack.c.b16 %v225, %v224
  %v278 = vpack.c.b16 %v227, %v226
  %v279 = vpack.c.b16 %v229, %v228
  %v280 = vpack.c.b16 %v231, %v230
  %v281 = vpack.c.b16 %v233, %v232
  %v282 = vpack.c.b16 %v235, %v234
  %v283 = vpack.c.b16 %v237, %v236
  %v284 = vpack.c.b16 %v239, %v238
  %v285 = vpack.c.b16 %v241, %v240
  %v286 = vpack.c.b16 %v243, %v242
  %v287 = vpack.c.b16 %v245, %v244
  %v288 = vpack.c.b16 %v247, %v246
  %v289 = vpack.c.b16 %v249, %v248
  %v290 = vpack.c.b16 %v251, %v250
  %v291 = vpack.c.b16 %v253, %v252
  %v292 = vpack.c.b16 %v255, %v254
  %v293 = vpack.c.b16 %v257, %v256
  %vm330 = vcmask 523264
  %v332 = vsel %vm330, %v109, 0
  %334 = vmatprep.subr.bf16.mxu0 0
  %335 = vmatpush1.bf16.msra.mxu0 %v265
  %336 = vmatprep.subr.bf16.mxu0 0
  %337 = vmatpush1.bf16.msra.mxu0 %v264
  %338 = vmatprep.subr.bf16.mxu0 0
  %339 = vmatpush1.bf16.msra.mxu0 %v263
  %340 = vmatprep.subr.bf16.mxu0 0
  %341 = vmatpush1.bf16.msra.mxu0 %v262
  %342 = vmatprep.subr.bf16.mxu0 0
  %343 = vmatpush1.bf16.msra.mxu0 %v261
  %344 = vmatprep.subr.bf16.mxu0 0
  %345 = vmatpush1.bf16.msra.mxu0 %v260
  %346 = vmatprep.subr.bf16.mxu0 0
  %347 = vmatpush1.bf16.msra.mxu0 %v259
  %348 = vmatprep.subr.bf16.mxu0 0
  %349 = vmatpush1.bf16.msra.mxu0 %v258
  %350 = vmatprep.subr.bf16.mxu0 0
  %351 = vmatpush2.bf16.msra.mxu0 %v273
  %352 = vmatprep.subr.bf16.mxu0 0
  %353 = vmatpush2.bf16.msra.mxu0 %v272
  %354 = vmatprep.subr.bf16.mxu0 0
  %355 = vmatpush2.bf16.msra.mxu0 %v271
  %356 = vmatprep.subr.bf16.mxu0 0
  %357 = vmatpush2.bf16.msra.mxu0 %v270
  %358 = vmatprep.subr.bf16.mxu0 0
  %359 = vmatpush2.bf16.msra.mxu0 %v269
  %360 = vmatprep.subr.bf16.mxu0 0
  %361 = vmatpush2.bf16.msra.mxu0 %v268
  %362 = vmatprep.subr.bf16.mxu0 0
  %363 = vmatpush2.bf16.msra.mxu0 %v267
  %364 = vmatprep.subr.bf16.mxu0 0
  %365 = vmatpush2.bf16.msra.mxu0 %v266
  %366 = vmatprep.mubr.bf16.mxu0 %v106
  %367 = vmatmul.mubr.bf16.gmra.mxu0 %v105
  %v368 = vpop.f32.mrf.mxu0
  %v369 = vadd.f32 %v96, %v368
  %v370 = vpop.f32.mrf.mxu0
  %v371 = vpop.f32.mrf.mxu0
  %v372 = vpop.f32.mrf.mxu0
  %373 = vdwg.mxu0
  %374 = vmatprep.subr.bf16.mxu0 0
  %375 = vmatpush1.bf16.msra.mxu0 %v281
  %376 = vmatprep.subr.bf16.mxu0 0
  %377 = vmatpush1.bf16.msra.mxu0 %v280
  %378 = vmatprep.subr.bf16.mxu0 0
  %379 = vmatpush1.bf16.msra.mxu0 %v279
  %380 = vmatprep.subr.bf16.mxu0 0
  %381 = vmatpush1.bf16.msra.mxu0 %v278
  %382 = vmatprep.subr.bf16.mxu0 0
  %383 = vmatpush1.bf16.msra.mxu0 %v277
  %384 = vmatprep.subr.bf16.mxu0 0
  %385 = vmatpush1.bf16.msra.mxu0 %v276
  %386 = vmatprep.subr.bf16.mxu0 0
  %387 = vmatpush1.bf16.msra.mxu0 %v275
  %388 = vmatprep.subr.bf16.mxu0 0
  %389 = vmatpush1.bf16.msra.mxu0 %v274
  %390 = vmatprep.subr.bf16.mxu0 0
  %391 = vmatpush2.bf16.msra.mxu0 %v289
  %392 = vmatprep.subr.bf16.mxu0 0
  %393 = vmatpush2.bf16.msra.mxu0 %v288
  %394 = vmatprep.subr.bf16.mxu0 0
  %395 = vmatpush2.bf16.msra.mxu0 %v287
  %396 = vmatprep.subr.bf16.mxu0 0
  %397 = vmatpush2.bf16.msra.mxu0 %v286
  %398 = vmatprep.subr.bf16.mxu0 0
  %399 = vmatpush2.bf16.msra.mxu0 %v285
  %400 = vmatprep.subr.bf16.mxu0 0
  %401 = vmatpush2.bf16.msra.mxu0 %v284
  %402 = vmatprep.subr.bf16.mxu0 0
  %403 = vmatpush2.bf16.msra.mxu0 %v283
  %404 = vmatprep.subr.bf16.mxu0 0
  %405 = vmatpush2.bf16.msra.mxu0 %v282
  %406 = vmatprep.mubr.bf16.mxu0 %v108
  %407 = vmatmul.mubr.bf16.gmra.mxu0 %v107
  %v408 = vpop.f32.mrf.mxu0
  %v409 = vadd.f32 %v369, %v408
  %v410 = vpop.f32.mrf.mxu0
  %v411 = vpop.f32.mrf.mxu0
  %v412 = vpop.f32.mrf.mxu0
  %413 = vdwg.mxu0
  %414 = vmatprep.subr.bf16.mxu0 0
  %415 = vmatpush1.bf16.msra.mxu0 0
  %416 = vmatprep.subr.bf16.mxu0 0
  %417 = vmatpush1.bf16.msra.mxu0 0
  %418 = vmatprep.subr.bf16.mxu0 0
  %419 = vmatpush1.bf16.msra.mxu0 0
  %420 = vmatprep.subr.bf16.mxu0 0
  %421 = vmatpush1.bf16.msra.mxu0 0
  %422 = vmatprep.subr.bf16.mxu0 0
  %423 = vmatpush1.bf16.msra.mxu0 %v293
  %424 = vmatprep.subr.bf16.mxu0 0
  %425 = vmatpush1.bf16.msra.mxu0 %v292
  %426 = vmatprep.subr.bf16.mxu0 0
  %427 = vmatpush1.bf16.msra.mxu0 %v291
  %428 = vmatprep.subr.bf16.mxu0 0
  %429 = vmatpush1.bf16.msra.mxu0 %v290
  %430 = vmatprep.subr.bf16.mxu0 0
  %431 = vmatpush2.bf16.msra.mxu0 0
  %432 = vmatprep.subr.bf16.mxu0 0
  %433 = vmatpush2.bf16.msra.mxu0 0
  %434 = vmatprep.subr.bf16.mxu0 0
  %435 = vmatpush2.bf16.msra.mxu0 0
  %436 = vmatprep.subr.bf16.mxu0 0
  %437 = vmatpush2.bf16.msra.mxu0 0
  %438 = vmatprep.subr.bf16.mxu0 0
  %439 = vmatpush2.bf16.msra.mxu0 0
  %440 = vmatprep.subr.bf16.mxu0 0
  %441 = vmatpush2.bf16.msra.mxu0 0
  %442 = vmatprep.subr.bf16.mxu0 0
  %443 = vmatpush2.bf16.msra.mxu0 0
  %444 = vmatprep.subr.bf16.mxu0 0
  %445 = vmatpush2.bf16.msra.mxu0 0
  %446 = vmatprep.mubr.bf16.mxu0 0
  %447 = vmatmul.mubr.bf16.gmra.mxu0 %v332
  %v448 = vpop.f32.mrf.mxu0
  %v449 = vadd.f32 %v409, %v448
  %v450 = vpop.f32.mrf.mxu0
  %v451 = vpop.f32.mrf.mxu0
  %v452 = vpop.f32.mrf.mxu0
  %453 = vdwg.mxu0
  %v454 = vld [vmem:[%s2] sm:$0x1]
  %v456 = vlaneseq
  %v457 = vshrl.u32 %v456, 7
  %v458 = vsub.s32 0, %v457
  %v459 = vrot.slane %v454, %v458
  %v461 = vmul.f32 %v449, %v459
  %v462 = vld [vmem:[%s3] sm:$0x1]
  %v464 = vlaneseq
  %v465 = vshrl.u32 %v464, 7
  %v466 = vsub.s32 0, %v465
  %v467 = vrot.slane %v462, %v466
  %v469 = vadd.f32 %v461, %v467
  %v470 = vmax.f32 %v469, 0.0
  %471 = vst [vmem:[%s5] sm:$0xff] %v470
  // Predicated region
  $region22: #{erfnet_ae_forward.132} parent=0 // pred_check
    _
  $region23: #{erfnet_ae_forward.132} parent=0 // pred_check_branch
    %473 = sbr.rel (0) target = $region25
  $region24: #{erfnet_ae_forward.132} parent=0 // pred_region
    _
  $region25: #{erfnet_ae_forward.132} parent=0 // pred_fallthru
    _
  // Predicated region
  $region26: #{erfnet_ae_forward.132} parent=0 // pred_check
    _
  $region27: #{erfnet_ae_forward.132} parent=0 // pred_check_branch
    %475 = sbr.rel (0) target = $region29
  $region28: #{erfnet_ae_forward.132} parent=0 // pred_region
    _
  $region29: #{erfnet_ae_forward.132} parent=0 // pred_fallthru
    _

// kernel: erfnet_ae_forward.136
$region0: #{erfnet_ae_forward.136}
  #allocation0 [shape = 'u32[]', space=smem, size = 0x4, offset = 0x4, fixed_abs, tag = 'smem constant byte address 0x4 - core index']
  #allocation1 [shape = 'u32[144,128]{1,0:T(1,128)}', space=vmem, size = 0x12000, scoped, tag = 'internal scratch']
  %s0 = inlined_call_operand.vmem [shape: bf16[8,384], index: 0, kind: input, shape index: {}]
  %s1 = inlined_call_operand.vmem [shape: bf16[384,128], index: 1, kind: input, shape index: {}]
  %s2 = inlined_call_operand.vmem [shape: f32[1,128], index: 2, kind: input, shape index: {}]
  %s3 = inlined_call_operand.vmem [shape: f32[1,128], index: 3, kind: input, shape index: {}]
  %s4 = inlined_call_operand.vmem [shape: f32[8,128], index: 4, kind: input, shape index: {}]
  %s5 = inlined_call_operand.vmem [shape: f32[8,128], index: 5, kind: output, shape index: {}]
  %s6 = sld [smem:[#allocation0]]
  $region30: #{erfnet_ae_forward.136} parent=0
    _
  %s8 = ssub.s32 1, %s6
  %s9 = scalar_select 0, %s8, %s6
  // Predicated region
  $region2: #{erfnet_ae_forward.136} parent=0 // pred_check
    _
  $region3: #{erfnet_ae_forward.136} parent=0 // pred_check_branch
    %11 = sbr.rel (0) target = $region5
  $region4: #{erfnet_ae_forward.136} parent=0 // pred_region
    _
  $region5: #{erfnet_ae_forward.136} parent=0 // pred_fallthru
    _
  // Predicated region
  $region6: #{erfnet_ae_forward.136} parent=0 // pred_check
    _
  $region7: #{erfnet_ae_forward.136} parent=0 // pred_check_branch
    %13 = sbr.rel (0) target = $region9
  $region8: #{erfnet_ae_forward.136} parent=0 // pred_region
    _
  $region9: #{erfnet_ae_forward.136} parent=0 // pred_fallthru
    _
  // Predicated region
  $region10: #{erfnet_ae_forward.136} parent=0 // pred_check
    _
  $region11: #{erfnet_ae_forward.136} parent=0 // pred_check_branch
    %15 = sbr.rel (0) target = $region13
  $region12: #{erfnet_ae_forward.136} parent=0 // pred_region
    _
  $region13: #{erfnet_ae_forward.136} parent=0 // pred_fallthru
    _
  // Predicated region
  $region14: #{erfnet_ae_forward.136} parent=0 // pred_check
    _
  $region15: #{erfnet_ae_forward.136} parent=0 // pred_check_branch
    %17 = sbr.rel (0) target = $region17
  $region16: #{erfnet_ae_forward.136} parent=0 // pred_region
    _
  $region17: #{erfnet_ae_forward.136} parent=0 // pred_fallthru
    _
  // Predicated region
  $region18: #{erfnet_ae_forward.136} parent=0 // pred_check
    _
  $region19: #{erfnet_ae_forward.136} parent=0 // pred_check_branch
    %19 = sbr.rel (0) target = $region21
  $region20: #{erfnet_ae_forward.136} parent=0 // pred_region
    _
  $region21: #{erfnet_ae_forward.136} parent=0 // pred_fallthru
    _
  %v21 = vld [vmem:[%s0] sm:$0xff]
  %v22 = vld [vmem:[%s0 + $0x8] sm:$0xf]
  %v23 = vld [vmem:[%s1] sm:$0xf]
  %v24 = vld [vmem:[%s1 + $0x4] sm:$0xf]
  %v25 = vld [vmem:[%s1 + $0x8] sm:$0xf]
  %v26 = vld [vmem:[%s1 + $0xc] sm:$0xf]
  %v27 = vld [vmem:[%s1 + $0x10] sm:$0xf]
  %v28 = vld [vmem:[%s1 + $0x14] sm:$0xf]
  %v29 = vld [vmem:[%s1 + $0x18] sm:$0xf]
  %v30 = vld [vmem:[%s1 + $0x1c] sm:$0xf]
  %v31 = vld [vmem:[%s1 + $0x20] sm:$0xf]
  %v32 = vld [vmem:[%s1 + $0x24] sm:$0xf]
  %v33 = vld [vmem:[%s1 + $0x28] sm:$0xf]
  %v34 = vld [vmem:[%s1 + $0x2c] sm:$0xf]
  %v35 = vld [vmem:[%s1 + $0x30] sm:$0xf]
  %v36 = vld [vmem:[%s1 + $0x34] sm:$0xf]
  %v37 = vld [vmem:[%s1 + $0x38] sm:$0xf]
  %v38 = vld [vmem:[%s1 + $0x3c] sm:$0xf]
  %v39 = vld [vmem:[%s1 + $0x40] sm:$0xf]
  %v40 = vld [vmem:[%s1 + $0x44] sm:$0xf]
  %v41 = vld [vmem:[%s1 + $0x48] sm:$0xf]
  %v42 = vld [vmem:[%s1 + $0x4c] sm:$0xf]
  %v43 = vld [vmem:[%s1 + $0x50] sm:$0xf]
  %v44 = vld [vmem:[%s1 + $0x54] sm:$0xf]
  %v45 = vld [vmem:[%s1 + $0x58] sm:$0xf]
  %v46 = vld [vmem:[%s1 + $0x5c] sm:$0xf]
  %v47 = vld [vmem:[%s1 + $0x60] sm:$0xf]
  %v48 = vld [vmem:[%s1 + $0x64] sm:$0xf]
  %v49 = vld [vmem:[%s1 + $0x68] sm:$0xf]
  %v50 = vld [vmem:[%s1 + $0x6c] sm:$0xf]
  %v51 = vld [vmem:[%s1 + $0x70] sm:$0xf]
  %v52 = vld [vmem:[%s1 + $0x74] sm:$0xf]
  %v53 = vld [vmem:[%s1 + $0x78] sm:$0xf]
  %v54 = vld [vmem:[%s1 + $0x7c] sm:$0xf]
  %v55 = vld [vmem:[%s1 + $0x80] sm:$0xf]
  %v56 = vld [vmem:[%s1 + $0x84] sm:$0xf]
  %v57 = vld [vmem:[%s1 + $0x88] sm:$0xf]
  %v58 = vld [vmem:[%s1 + $0x8c] sm:$0xf]
  %v59 = vld [vmem:[%s1 + $0x90] sm:$0xf]
  %v60 = vld [vmem:[%s1 + $0x94] sm:$0xf]
  %v61 = vld [vmem:[%s1 + $0x98] sm:$0xf]
  %v62 = vld [vmem:[%s1 + $0x9c] sm:$0xf]
  %v63 = vld [vmem:[%s1 + $0xa0] sm:$0xf]
  %v64 = vld [vmem:[%s1 + $0xa4] sm:$0xf]
  %v65 = vld [vmem:[%s1 + $0xa8] sm:$0xf]
  %v66 = vld [vmem:[%s1 + $0xac] sm:$0xf]
  %v67 = vld [vmem:[%s1 + $0xb0] sm:$0xf]
  %v68 = vld [vmem:[%s1 + $0xb4] sm:$0xf]
  %v69 = vld [vmem:[%s1 + $0xb8] sm:$0xf]
  %v70 = vld [vmem:[%s1 + $0xbc] sm:$0xf]
  %v73 = vunpack.c.l.b16 %v21
  %v74 = vunpack.c.h.b16 %v21
  %v75 = vunpack.c.l.b16 %v22
  %v76 = vpack.c.b16 %v73, %v73
  %v77 = vpack.c.b16 %v74, %v74
  %v78 = vpack.c.b16 %v75, %v75
  %v130 = vunpack.c.l.b16 %v23
  %v131 = vunpack.c.l.b16 %v24
  %v132 = vunpack.c.l.b16 %v25
  %v133 = vunpack.c.l.b16 %v26
  %v134 = vunpack.c.l.b16 %v27
  %v135 = vunpack.c.l.b16 %v28
  %v136 = vunpack.c.l.b16 %v29
  %v137 = vunpack.c.l.b16 %v30
  %v138 = vunpack.c.l.b16 %v31
  %v139 = vunpack.c.l.b16 %v32
  %v140 = vunpack.c.l.b16 %v33
  %v141 = vunpack.c.l.b16 %v34
  %v142 = vunpack.c.l.b16 %v35
  %v143 = vunpack.c.l.b16 %v36
  %v144 = vunpack.c.l.b16 %v37
  %v145 = vunpack.c.l.b16 %v38
  %v146 = vunpack.c.l.b16 %v39
  %v147 = vunpack.c.l.b16 %v40
  %v148 = vunpack.c.l.b16 %v41
  %v149 = vunpack.c.l.b16 %v42
  %v150 = vunpack.c.l.b16 %v43
  %v151 = vunpack.c.l.b16 %v44
  %v152 = vunpack.c.l.b16 %v45
  %v153 = vunpack.c.l.b16 %v46
  %v154 = vunpack.c.l.b16 %v47
  %v155 = vunpack.c.l.b16 %v48
  %v156 = vunpack.c.l.b16 %v49
  %v157 = vunpack.c.l.b16 %v50
  %v158 = vunpack.c.l.b16 %v51
  %v159 = vunpack.c.l.b16 %v52
  %v160 = vunpack.c.l.b16 %v53
  %v161 = vunpack.c.l.b16 %v54
  %v162 = vunpack.c.l.b16 %v55
  %v163 = vunpack.c.l.b16 %v56
  %v164 = vunpack.c.l.b16 %v57
  %v165 = vunpack.c.l.b16 %v58
  %v166 = vunpack.c.l.b16 %v59
  %v167 = vunpack.c.l.b16 %v60
  %v168 = vunpack.c.l.b16 %v61
  %v169 = vunpack.c.l.b16 %v62
  %v170 = vunpack.c.l.b16 %v63
  %v171 = vunpack.c.l.b16 %v64
  %v172 = vunpack.c.l.b16 %v65
  %v173 = vunpack.c.l.b16 %v66
  %v174 = vunpack.c.l.b16 %v67
  %v175 = vunpack.c.l.b16 %v68
  %v176 = vunpack.c.l.b16 %v69
  %v177 = vunpack.c.l.b16 %v70
  %v178 = vpack.c.b16 %v131, %v130
  %v179 = vpack.c.b16 %v133, %v132
  %v180 = vpack.c.b16 %v135, %v134
  %v181 = vpack.c.b16 %v137, %v136
  %v182 = vpack.c.b16 %v139, %v138
  %v183 = vpack.c.b16 %v141, %v140
  %v184 = vpack.c.b16 %v143, %v142
  %v185 = vpack.c.b16 %v145, %v144
  %v186 = vpack.c.b16 %v147, %v146
  %v187 = vpack.c.b16 %v149, %v148
  %v188 = vpack.c.b16 %v151, %v150
  %v189 = vpack.c.b16 %v153, %v152
  %v190 = vpack.c.b16 %v155, %v154
  %v191 = vpack.c.b16 %v157, %v156
  %v192 = vpack.c.b16 %v159, %v158
  %v193 = vpack.c.b16 %v161, %v160
  %v194 = vpack.c.b16 %v163, %v162
  %v195 = vpack.c.b16 %v165, %v164
  %v196 = vpack.c.b16 %v167, %v166
  %v197 = vpack.c.b16 %v169, %v168
  %v198 = vpack.c.b16 %v171, %v170
  %v199 = vpack.c.b16 %v173, %v172
  %v200 = vpack.c.b16 %v175, %v174
  %v201 = vpack.c.b16 %v177, %v176
  %226 = vmatprep.subr.bf16.mxu0 0
  %227 = vmatpush1.bf16.msra.mxu0 %v185
  %228 = vmatprep.subr.bf16.mxu0 0
  %229 = vmatpush1.bf16.msra.mxu0 %v184
  %230 = vmatprep.subr.bf16.mxu0 0
  %231 = vmatpush1.bf16.msra.mxu0 %v183
  %232 = vmatprep.subr.bf16.mxu0 0
  %233 = vmatpush1.bf16.msra.mxu0 %v182
  %234 = vmatprep.subr.bf16.mxu0 0
  %235 = vmatpush1.bf16.msra.mxu0 %v181
  %236 = vmatprep.subr.bf16.mxu0 0
  %237 = vmatpush1.bf16.msra.mxu0 %v180
  %238 = vmatprep.subr.bf16.mxu0 0
  %239 = vmatpush1.bf16.msra.mxu0 %v179
  %240 = vmatprep.subr.bf16.mxu0 0
  %241 = vmatpush1.bf16.msra.mxu0 %v178
  %242 = vmatprep.subr.bf16.mxu0 0
  %243 = vmatpush2.bf16.msra.mxu0 %v193
  %244 = vmatprep.subr.bf16.mxu0 0
  %245 = vmatpush2.bf16.msra.mxu0 %v192
  %246 = vmatprep.subr.bf16.mxu0 0
  %247 = vmatpush2.bf16.msra.mxu0 %v191
  %248 = vmatprep.subr.bf16.mxu0 0
  %249 = vmatpush2.bf16.msra.mxu0 %v190
  %250 = vmatprep.subr.bf16.mxu0 0
  %251 = vmatpush2.bf16.msra.mxu0 %v189
  %252 = vmatprep.subr.bf16.mxu0 0
  %253 = vmatpush2.bf16.msra.mxu0 %v188
  %254 = vmatprep.subr.bf16.mxu0 0
  %255 = vmatpush2.bf16.msra.mxu0 %v187
  %256 = vmatprep.subr.bf16.mxu0 0
  %257 = vmatpush2.bf16.msra.mxu0 %v186
  %258 = vmatprep.mubr.bf16.mxu0 %v77
  %259 = vmatmul.mubr.bf16.gmra.mxu0 %v76
  %v260 = vpop.f32.mrf.mxu0
  %v261 = vadd.f32 0.0, %v260
  %v262 = vpop.f32.mrf.mxu0
  %v263 = vpop.f32.mrf.mxu0
  %v264 = vpop.f32.mrf.mxu0
  %265 = vdwg.mxu0
  %266 = vmatprep.subr.bf16.mxu0 0
  %267 = vmatpush1.bf16.msra.mxu0 %v201
  %268 = vmatprep.subr.bf16.mxu0 0
  %269 = vmatpush1.bf16.msra.mxu0 %v200
  %270 = vmatprep.subr.bf16.mxu0 0
  %271 = vmatpush1.bf16.msra.mxu0 %v199
  %272 = vmatprep.subr.bf16.mxu0 0
  %273 = vmatpush1.bf16.msra.mxu0 %v198
  %274 = vmatprep.subr.bf16.mxu0 0
  %275 = vmatpush1.bf16.msra.mxu0 %v197
  %276 = vmatprep.subr.bf16.mxu0 0
  %277 = vmatpush1.bf16.msra.mxu0 %v196
  %278 = vmatprep.subr.bf16.mxu0 0
  %279 = vmatpush1.bf16.msra.mxu0 %v195
  %280 = vmatprep.subr.bf16.mxu0 0
  %281 = vmatpush1.bf16.msra.mxu0 %v194
  %282 = vmatprep.subr.bf16.mxu0 0
  %283 = vmatpush2.bf16.msra.mxu0 0
  %284 = vmatprep.subr.bf16.mxu0 0
  %285 = vmatpush2.bf16.msra.mxu0 0
  %286 = vmatprep.subr.bf16.mxu0 0
  %287 = vmatpush2.bf16.msra.mxu0 0
  %288 = vmatprep.subr.bf16.mxu0 0
  %289 = vmatpush2.bf16.msra.mxu0 0
  %290 = vmatprep.subr.bf16.mxu0 0
  %291 = vmatpush2.bf16.msra.mxu0 0
  %292 = vmatprep.subr.bf16.mxu0 0
  %293 = vmatpush2.bf16.msra.mxu0 0
  %294 = vmatprep.subr.bf16.mxu0 0
  %295 = vmatpush2.bf16.msra.mxu0 0
  %296 = vmatprep.subr.bf16.mxu0 0
  %297 = vmatpush2.bf16.msra.mxu0 0
  %298 = vmatprep.mubr.bf16.mxu0 0
  %299 = vmatmul.mubr.bf16.gmra.mxu0 %v78
  %v300 = vpop.f32.mrf.mxu0
  %v301 = vadd.f32 %v261, %v300
  %v302 = vpop.f32.mrf.mxu0
  %v303 = vpop.f32.mrf.mxu0
  %v304 = vpop.f32.mrf.mxu0
  %305 = vdwg.mxu0
  %v306 = vld [vmem:[%s2] sm:$0x1]
  %v308 = vlaneseq
  %v309 = vshrl.u32 %v308, 7
  %v310 = vsub.s32 0, %v309
  %v311 = vrot.slane %v306, %v310
  %v313 = vmul.f32 %v301, %v311
  %v314 = vld [vmem:[%s3] sm:$0x1]
  %v316 = vlaneseq
  %v317 = vshrl.u32 %v316, 7
  %v318 = vsub.s32 0, %v317
  %v319 = vrot.slane %v314, %v318
  %v321 = vadd.f32 %v313, %v319
  %v322 = vld [vmem:[%s4] sm:$0xff]
  %v323 = vadd.f32 %v321, %v322
  %v324 = vmax.f32 %v323, 0.0
  %325 = vst [vmem:[%s5] sm:$0xff] %v324
  // Predicated region
  $region22: #{erfnet_ae_forward.136} parent=0 // pred_check
    _
  $region23: #{erfnet_ae_forward.136} parent=0 // pred_check_branch
    %327 = sbr.rel (0) target = $region25
  $region24: #{erfnet_ae_forward.136} parent=0 // pred_region
    _
  $region25: #{erfnet_ae_forward.136} parent=0 // pred_fallthru
    _
  // Predicated region
  $region26: #{erfnet_ae_forward.136} parent=0 // pred_check
    _
  $region27: #{erfnet_ae_forward.136} parent=0 // pred_check_branch
    %329 = sbr.rel (0) target = $region29
  $region28: #{erfnet_ae_forward.136} parent=0 // pred_region
    _
  $region29: #{erfnet_ae_forward.136} parent=0 // pred_fallthru
    _

// kernel: erfnet_ae_forward.133
$region0: #{erfnet_ae_forward.133}
  #allocation0 [shape = 'u32[]', space=smem, size = 0x4, offset = 0x4, fixed_abs, tag = 'smem constant byte address 0x4 - core index']
  #allocation1 [shape = 'u32[144,128]{1,0:T(1,128)}', space=vmem, size = 0x12000, scoped, tag = 'internal scratch']
  %s0 = inlined_call_operand.vmem [shape: bf16[8,384], index: 0, kind: input, shape index: {}]
  %s1 = inlined_call_operand.vmem [shape: bf16[384,128], index: 1, kind: input, shape index: {}]
  %s2 = inlined_call_operand.vmem [shape: f32[1,128], index: 2, kind: input, shape index: {}]
  %s3 = inlined_call_operand.vmem [shape: f32[1,128], index: 3, kind: input, shape index: {}]
  %s4 = inlined_call_operand.vmem [shape: f32[8,128], index: 4, kind: output, shape index: {}]
  %s5 = sld [smem:[#allocation0]]
  $region26: #{erfnet_ae_forward.133} parent=0
    _
  %s7 = ssub.s32 1, %s5
  %s8 = scalar_select 0, %s7, %s5
  // Predicated region
  $region2: #{erfnet_ae_forward.133} parent=0 // pred_check
    _
  $region3: #{erfnet_ae_forward.133} parent=0 // pred_check_branch
    %10 = sbr.rel (0) target = $region5
  $region4: #{erfnet_ae_forward.133} parent=0 // pred_region
    _
  $region5: #{erfnet_ae_forward.133} parent=0 // pred_fallthru
    _
  // Predicated region
  $region6: #{erfnet_ae_forward.133} parent=0 // pred_check
    _
  $region7: #{erfnet_ae_forward.133} parent=0 // pred_check_branch
    %12 = sbr.rel (0) target = $region9
  $region8: #{erfnet_ae_forward.133} parent=0 // pred_region
    _
  $region9: #{erfnet_ae_forward.133} parent=0 // pred_fallthru
    _
  // Predicated region
  $region10: #{erfnet_ae_forward.133} parent=0 // pred_check
    _
  $region11: #{erfnet_ae_forward.133} parent=0 // pred_check_branch
    %14 = sbr.rel (0) target = $region13
  $region12: #{erfnet_ae_forward.133} parent=0 // pred_region
    _
  $region13: #{erfnet_ae_forward.133} parent=0 // pred_fallthru
    _
  // Predicated region
  $region14: #{erfnet_ae_forward.133} parent=0 // pred_check
    _
  $region15: #{erfnet_ae_forward.133} parent=0 // pred_check_branch
    %16 = sbr.rel (0) target = $region17
  $region16: #{erfnet_ae_forward.133} parent=0 // pred_region
    _
  $region17: #{erfnet_ae_forward.133} parent=0 // pred_fallthru
    _
  %v18 = vld [vmem:[%s0] sm:$0xff]
  %v19 = vld [vmem:[%s0 + $0x8] sm:$0xf]
  %v20 = vld [vmem:[%s1] sm:$0xf]
  %v21 = vld [vmem:[%s1 + $0x4] sm:$0xf]
  %v22 = vld [vmem:[%s1 + $0x8] sm:$0xf]
  %v23 = vld [vmem:[%s1 + $0xc] sm:$0xf]
  %v24 = vld [vmem:[%s1 + $0x10] sm:$0xf]
  %v25 = vld [vmem:[%s1 + $0x14] sm:$0xf]
  %v26 = vld [vmem:[%s1 + $0x18] sm:$0xf]
  %v27 = vld [vmem:[%s1 + $0x1c] sm:$0xf]
  %v28 = vld [vmem:[%s1 + $0x20] sm:$0xf]
  %v29 = vld [vmem:[%s1 + $0x24] sm:$0xf]
  %v30 = vld [vmem:[%s1 + $0x28] sm:$0xf]
  %v31 = vld [vmem:[%s1 + $0x2c] sm:$0xf]
  %v32 = vld [vmem:[%s1 + $0x30] sm:$0xf]
  %v33 = vld [vmem:[%s1 + $0x34] sm:$0xf]
  %v34 = vld [vmem:[%s1 + $0x38] sm:$0xf]
  %v35 = vld [vmem:[%s1 + $0x3c] sm:$0xf]
  %v36 = vld [vmem:[%s1 + $0x40] sm:$0xf]
  %v37 = vld [vmem:[%s1 + $0x44] sm:$0xf]
  %v38 = vld [vmem:[%s1 + $0x48] sm:$0xf]
  %v39 = vld [vmem:[%s1 + $0x4c] sm:$0xf]
  %v40 = vld [vmem:[%s1 + $0x50] sm:$0xf]
  %v41 = vld [vmem:[%s1 + $0x54] sm:$0xf]
  %v42 = vld [vmem:[%s1 + $0x58] sm:$0xf]
  %v43 = vld [vmem:[%s1 + $0x5c] sm:$0xf]
  %v44 = vld [vmem:[%s1 + $0x60] sm:$0xf]
  %v45 = vld [vmem:[%s1 + $0x64] sm:$0xf]
  %v46 = vld [vmem:[%s1 + $0x68] sm:$0xf]
  %v47 = vld [vmem:[%s1 + $0x6c] sm:$0xf]
  %v48 = vld [vmem:[%s1 + $0x70] sm:$0xf]
  %v49 = vld [vmem:[%s1 + $0x74] sm:$0xf]
  %v50 = vld [vmem:[%s1 + $0x78] sm:$0xf]
  %v51 = vld [vmem:[%s1 + $0x7c] sm:$0xf]
  %v52 = vld [vmem:[%s1 + $0x80] sm:$0xf]
  %v53 = vld [vmem:[%s1 + $0x84] sm:$0xf]
  %v54 = vld [vmem:[%s1 + $0x88] sm:$0xf]
  %v55 = vld [vmem:[%s1 + $0x8c] sm:$0xf]
  %v56 = vld [vmem:[%s1 + $0x90] sm:$0xf]
  %v57 = vld [vmem:[%s1 + $0x94] sm:$0xf]
  %v58 = vld [vmem:[%s1 + $0x98] sm:$0xf]
  %v59 = vld [vmem:[%s1 + $0x9c] sm:$0xf]
  %v60 = vld [vmem:[%s1 + $0xa0] sm:$0xf]
  %v61 = vld [vmem:[%s1 + $0xa4] sm:$0xf]
  %v62 = vld [vmem:[%s1 + $0xa8] sm:$0xf]
  %v63 = vld [vmem:[%s1 + $0xac] sm:$0xf]
  %v64 = vld [vmem:[%s1 + $0xb0] sm:$0xf]
  %v65 = vld [vmem:[%s1 + $0xb4] sm:$0xf]
  %v66 = vld [vmem:[%s1 + $0xb8] sm:$0xf]
  %v67 = vld [vmem:[%s1 + $0xbc] sm:$0xf]
  %v70 = vunpack.c.l.b16 %v18
  %v71 = vunpack.c.h.b16 %v18
  %v72 = vunpack.c.l.b16 %v19
  %v73 = vpack.c.b16 %v70, %v70
  %v74 = vpack.c.b16 %v71, %v71
  %v75 = vpack.c.b16 %v72, %v72
  %v127 = vunpack.c.l.b16 %v20
  %v128 = vunpack.c.l.b16 %v21
  %v129 = vunpack.c.l.b16 %v22
  %v130 = vunpack.c.l.b16 %v23
  %v131 = vunpack.c.l.b16 %v24
  %v132 = vunpack.c.l.b16 %v25
  %v133 = vunpack.c.l.b16 %v26
  %v134 = vunpack.c.l.b16 %v27
  %v135 = vunpack.c.l.b16 %v28
  %v136 = vunpack.c.l.b16 %v29
  %v137 = vunpack.c.l.b16 %v30
  %v138 = vunpack.c.l.b16 %v31
  %v139 = vunpack.c.l.b16 %v32
  %v140 = vunpack.c.l.b16 %v33
  %v141 = vunpack.c.l.b16 %v34
  %v142 = vunpack.c.l.b16 %v35
  %v143 = vunpack.c.l.b16 %v36
  %v144 = vunpack.c.l.b16 %v37
  %v145 = vunpack.c.l.b16 %v38
  %v146 = vunpack.c.l.b16 %v39
  %v147 = vunpack.c.l.b16 %v40
  %v148 = vunpack.c.l.b16 %v41
  %v149 = vunpack.c.l.b16 %v42
  %v150 = vunpack.c.l.b16 %v43
  %v151 = vunpack.c.l.b16 %v44
  %v152 = vunpack.c.l.b16 %v45
  %v153 = vunpack.c.l.b16 %v46
  %v154 = vunpack.c.l.b16 %v47
  %v155 = vunpack.c.l.b16 %v48
  %v156 = vunpack.c.l.b16 %v49
  %v157 = vunpack.c.l.b16 %v50
  %v158 = vunpack.c.l.b16 %v51
  %v159 = vunpack.c.l.b16 %v52
  %v160 = vunpack.c.l.b16 %v53
  %v161 = vunpack.c.l.b16 %v54
  %v162 = vunpack.c.l.b16 %v55
  %v163 = vunpack.c.l.b16 %v56
  %v164 = vunpack.c.l.b16 %v57
  %v165 = vunpack.c.l.b16 %v58
  %v166 = vunpack.c.l.b16 %v59
  %v167 = vunpack.c.l.b16 %v60
  %v168 = vunpack.c.l.b16 %v61
  %v169 = vunpack.c.l.b16 %v62
  %v170 = vunpack.c.l.b16 %v63
  %v171 = vunpack.c.l.b16 %v64
  %v172 = vunpack.c.l.b16 %v65
  %v173 = vunpack.c.l.b16 %v66
  %v174 = vunpack.c.l.b16 %v67
  %v175 = vpack.c.b16 %v128, %v127
  %v176 = vpack.c.b16 %v130, %v129
  %v177 = vpack.c.b16 %v132, %v131
  %v178 = vpack.c.b16 %v134, %v133
  %v179 = vpack.c.b16 %v136, %v135
  %v180 = vpack.c.b16 %v138, %v137
  %v181 = vpack.c.b16 %v140, %v139
  %v182 = vpack.c.b16 %v142, %v141
  %v183 = vpack.c.b16 %v144, %v143
  %v184 = vpack.c.b16 %v146, %v145
  %v185 = vpack.c.b16 %v148, %v147
  %v186 = vpack.c.b16 %v150, %v149
  %v187 = vpack.c.b16 %v152, %v151
  %v188 = vpack.c.b16 %v154, %v153
  %v189 = vpack.c.b16 %v156, %v155
  %v190 = vpack.c.b16 %v158, %v157
  %v191 = vpack.c.b16 %v160, %v159
  %v192 = vpack.c.b16 %v162, %v161
  %v193 = vpack.c.b16 %v164, %v163
  %v194 = vpack.c.b16 %v166, %v165
  %v195 = vpack.c.b16 %v168, %v167
  %v196 = vpack.c.b16 %v170, %v169
  %v197 = vpack.c.b16 %v172, %v171
  %v198 = vpack.c.b16 %v174, %v173
  %223 = vmatprep.subr.bf16.mxu0 0
  %224 = vmatpush1.bf16.msra.mxu0 %v182
  %225 = vmatprep.subr.bf16.mxu0 0
  %226 = vmatpush1.bf16.msra.mxu0 %v181
  %227 = vmatprep.subr.bf16.mxu0 0
  %228 = vmatpush1.bf16.msra.mxu0 %v180
  %229 = vmatprep.subr.bf16.mxu0 0
  %230 = vmatpush1.bf16.msra.mxu0 %v179
  %231 = vmatprep.subr.bf16.mxu0 0
  %232 = vmatpush1.bf16.msra.mxu0 %v178
  %233 = vmatprep.subr.bf16.mxu0 0
  %234 = vmatpush1.bf16.msra.mxu0 %v177
  %235 = vmatprep.subr.bf16.mxu0 0
  %236 = vmatpush1.bf16.msra.mxu0 %v176
  %237 = vmatprep.subr.bf16.mxu0 0
  %238 = vmatpush1.bf16.msra.mxu0 %v175
  %239 = vmatprep.subr.bf16.mxu0 0
  %240 = vmatpush2.bf16.msra.mxu0 %v190
  %241 = vmatprep.subr.bf16.mxu0 0
  %242 = vmatpush2.bf16.msra.mxu0 %v189
  %243 = vmatprep.subr.bf16.mxu0 0
  %244 = vmatpush2.bf16.msra.mxu0 %v188
  %245 = vmatprep.subr.bf16.mxu0 0
  %246 = vmatpush2.bf16.msra.mxu0 %v187
  %247 = vmatprep.subr.bf16.mxu0 0
  %248 = vmatpush2.bf16.msra.mxu0 %v186
  %249 = vmatprep.subr.bf16.mxu0 0
  %250 = vmatpush2.bf16.msra.mxu0 %v185
  %251 = vmatprep.subr.bf16.mxu0 0
  %252 = vmatpush2.bf16.msra.mxu0 %v184
  %253 = vmatprep.subr.bf16.mxu0 0
  %254 = vmatpush2.bf16.msra.mxu0 %v183
  %255 = vmatprep.mubr.bf16.mxu0 %v74
  %256 = vmatmul.mubr.bf16.gmra.mxu0 %v73
  %v257 = vpop.f32.mrf.mxu0
  %v258 = vadd.f32 0.0, %v257
  %v259 = vpop.f32.mrf.mxu0
  %v260 = vpop.f32.mrf.mxu0
  %v261 = vpop.f32.mrf.mxu0
  %262 = vdwg.mxu0
  %263 = vmatprep.subr.bf16.mxu0 0
  %264 = vmatpush1.bf16.msra.mxu0 %v198
  %265 = vmatprep.subr.bf16.mxu0 0
  %266 = vmatpush1.bf16.msra.mxu0 %v197
  %267 = vmatprep.subr.bf16.mxu0 0
  %268 = vmatpush1.bf16.msra.mxu0 %v196
  %269 = vmatprep.subr.bf16.mxu0 0
  %270 = vmatpush1.bf16.msra.mxu0 %v195
  %271 = vmatprep.subr.bf16.mxu0 0
  %272 = vmatpush1.bf16.msra.mxu0 %v194
  %273 = vmatprep.subr.bf16.mxu0 0
  %274 = vmatpush1.bf16.msra.mxu0 %v193
  %275 = vmatprep.subr.bf16.mxu0 0
  %276 = vmatpush1.bf16.msra.mxu0 %v192
  %277 = vmatprep.subr.bf16.mxu0 0
  %278 = vmatpush1.bf16.msra.mxu0 %v191
  %279 = vmatprep.subr.bf16.mxu0 0
  %280 = vmatpush2.bf16.msra.mxu0 0
  %281 = vmatprep.subr.bf16.mxu0 0
  %282 = vmatpush2.bf16.msra.mxu0 0
  %283 = vmatprep.subr.bf16.mxu0 0
  %284 = vmatpush2.bf16.msra.mxu0 0
  %285 = vmatprep.subr.bf16.mxu0 0
  %286 = vmatpush2.bf16.msra.mxu0 0
  %287 = vmatprep.subr.bf16.mxu0 0
  %288 = vmatpush2.bf16.msra.mxu0 0
  %289 = vmatprep.subr.bf16.mxu0 0
  %290 = vmatpush2.bf16.msra.mxu0 0
  %291 = vmatprep.subr.bf16.mxu0 0
  %292 = vmatpush2.bf16.msra.mxu0 0
  %293 = vmatprep.subr.bf16.mxu0 0
  %294 = vmatpush2.bf16.msra.mxu0 0
  %295 = vmatprep.mubr.bf16.mxu0 0
  %296 = vmatmul.mubr.bf16.gmra.mxu0 %v75
  %v297 = vpop.f32.mrf.mxu0
  %v298 = vadd.f32 %v258, %v297
  %v299 = vpop.f32.mrf.mxu0
  %v300 = vpop.f32.mrf.mxu0
  %v301 = vpop.f32.mrf.mxu0
  %302 = vdwg.mxu0
  %v303 = vld [vmem:[%s2] sm:$0x1]
  %v305 = vlaneseq
  %v306 = vshrl.u32 %v305, 7
  %v307 = vsub.s32 0, %v306
  %v308 = vrot.slane %v303, %v307
  %v310 = vmul.f32 %v298, %v308
  %v311 = vld [vmem:[%s3] sm:$0x1]
  %v313 = vlaneseq
  %v314 = vshrl.u32 %v313, 7
  %v315 = vsub.s32 0, %v314
  %v316 = vrot.slane %v311, %v315
  %v318 = vadd.f32 %v310, %v316
  %v319 = vmax.f32 %v318, 0.0
  %320 = vst [vmem:[%s4] sm:$0xff] %v319
  // Predicated region
  $region18: #{erfnet_ae_forward.133} parent=0 // pred_check
    _
  $region19: #{erfnet_ae_forward.133} parent=0 // pred_check_branch
    %322 = sbr.rel (0) target = $region21
  $region20: #{erfnet_ae_forward.133} parent=0 // pred_region
    _
  $region21: #{erfnet_ae_forward.133} parent=0 // pred_fallthru
    _
  // Predicated region
  $region22: #{erfnet_ae_forward.133} parent=0 // pred_check
    _
  $region23: #{erfnet_ae_forward.133} parent=0 // pred_check_branch
    %324 = sbr.rel (0) target = $region25
  $region24: #{erfnet_ae_forward.133} parent=0 // pred_region
    _
  $region25: #{erfnet_ae_forward.133} parent=0 // pred_fallthru
    _

// kernel: erfnet_ae_forward.197
$region0: #{erfnet_ae_forward.197}
  #allocation0 [shape = 'u32[]', space=smem, size = 0x4, offset = 0x4, fixed_abs, tag = 'smem constant byte address 0x4 - core index']
  #allocation1 [shape = 'u32[144,128]{1,0:T(1,128)}', space=vmem, size = 0x12000, scoped, tag = 'internal scratch']
  %s0 = inlined_call_operand.vmem [shape: bf16[32,1152], index: 0, kind: input, shape index: {}]
  %s1 = inlined_call_operand.vmem [shape: bf16[1152,128], index: 1, kind: input, shape index: {}]
  %s2 = inlined_call_operand.vmem [shape: f32[1,128], index: 2, kind: input, shape index: {}]
  %s3 = inlined_call_operand.vmem [shape: f32[1,128], index: 3, kind: input, shape index: {}]
  %s4 = inlined_call_operand.vmem [shape: f32[32,128], index: 4, kind: output, shape index: {}]
  %s5 = sld [smem:[#allocation0]]
  $region26: #{erfnet_ae_forward.197} parent=0
    _
  %s7 = ssub.s32 1, %s5
  %s8 = scalar_select 0, %s7, %s5
  // Predicated region
  $region2: #{erfnet_ae_forward.197} parent=0 // pred_check
    _
  $region3: #{erfnet_ae_forward.197} parent=0 // pred_check_branch
    %10 = sbr.rel (0) target = $region5
  $region4: #{erfnet_ae_forward.197} parent=0 // pred_region
    _
  $region5: #{erfnet_ae_forward.197} parent=0 // pred_fallthru
    _
  // Predicated region
  $region6: #{erfnet_ae_forward.197} parent=0 // pred_check
    _
  $region7: #{erfnet_ae_forward.197} parent=0 // pred_check_branch
    %12 = sbr.rel (0) target = $region9
  $region8: #{erfnet_ae_forward.197} parent=0 // pred_region
    _
  $region9: #{erfnet_ae_forward.197} parent=0 // pred_fallthru
    _
  // Predicated region
  $region10: #{erfnet_ae_forward.197} parent=0 // pred_check
    _
  $region11: #{erfnet_ae_forward.197} parent=0 // pred_check_branch
    %14 = sbr.rel (0) target = $region13
  $region12: #{erfnet_ae_forward.197} parent=0 // pred_region
    _
  $region13: #{erfnet_ae_forward.197} parent=0 // pred_fallthru
    _
  // Predicated region
  $region14: #{erfnet_ae_forward.197} parent=0 // pred_check
    _
  $region15: #{erfnet_ae_forward.197} parent=0 // pred_check_branch
    %16 = sbr.rel (0) target = $region17
  $region16: #{erfnet_ae_forward.197} parent=0 // pred_region
    _
  $region17: #{erfnet_ae_forward.197} parent=0 // pred_fallthru
    _
  %v18 = vld [vmem:[%s0] sm:$0xff]
  %v19 = vld [vmem:[%s0 + $0x8] sm:$0xff]
  %v20 = vld [vmem:[%s0 + $0x10] sm:$0xff]
  %v21 = vld [vmem:[%s0 + $0x18] sm:$0xff]
  %v22 = vld [vmem:[%s0 + $0x20] sm:$0xf]
  %v23 = vld [vmem:[%s0 + $0x24] sm:$0xff]
  %v24 = vld [vmem:[%s0 + $0x2c] sm:$0xff]
  %v25 = vld [vmem:[%s0 + $0x34] sm:$0xff]
  %v26 = vld [vmem:[%s0 + $0x3c] sm:$0xff]
  %v27 = vld [vmem:[%s0 + $0x44] sm:$0xf]
  %v28 = vld [vmem:[%s0 + $0x48] sm:$0xff]
  %v29 = vld [vmem:[%s0 + $0x50] sm:$0xff]
  %v30 = vld [vmem:[%s0 + $0x58] sm:$0xff]
  %v31 = vld [vmem:[%s0 + $0x60] sm:$0xff]
  %v32 = vld [vmem:[%s0 + $0x68] sm:$0xf]
  %v33 = vld [vmem:[%s0 + $0x6c] sm:$0xff]
  %v34 = vld [vmem:[%s0 + $0x74] sm:$0xff]
  %v35 = vld [vmem:[%s0 + $0x7c] sm:$0xff]
  %v36 = vld [vmem:[%s0 + $0x84] sm:$0xff]
  %v37 = vld [vmem:[%s0 + $0x8c] sm:$0xf]
  %v38 = vld [vmem:[%s1] sm:$0xf]
  %v39 = vld [vmem:[%s1 + $0x4] sm:$0xf]
  %v40 = vld [vmem:[%s1 + $0x8] sm:$0xf]
  %v41 = vld [vmem:[%s1 + $0xc] sm:$0xf]
  %v42 = vld [vmem:[%s1 + $0x10] sm:$0xf]
  %v43 = vld [vmem:[%s1 + $0x14] sm:$0xf]
  %v44 = vld [vmem:[%s1 + $0x18] sm:$0xf]
  %v45 = vld [vmem:[%s1 + $0x1c] sm:$0xf]
  %v46 = vld [vmem:[%s1 + $0x20] sm:$0xf]
  %v47 = vld [vmem:[%s1 + $0x24] sm:$0xf]
  %v48 = vld [vmem:[%s1 + $0x28] sm:$0xf]
  %v49 = vld [vmem:[%s1 + $0x2c] sm:$0xf]
  %v50 = vld [vmem:[%s1 + $0x30] sm:$0xf]
  %v51 = vld [vmem:[%s1 + $0x34] sm:$0xf]
  %v52 = vld [vmem:[%s1 + $0x38] sm:$0xf]
  %v53 = vld [vmem:[%s1 + $0x3c] sm:$0xf]
  %v54 = vld [vmem:[%s1 + $0x40] sm:$0xf]
  %v55 = vld [vmem:[%s1 + $0x44] sm:$0xf]
  %v56 = vld [vmem:[%s1 + $0x48] sm:$0xf]
  %v57 = vld [vmem:[%s1 + $0x4c] sm:$0xf]
  %v58 = vld [vmem:[%s1 + $0x50] sm:$0xf]
  %v59 = vld [vmem:[%s1 + $0x54] sm:$0xf]
  %v60 = vld [vmem:[%s1 + $0x58] sm:$0xf]
  %v61 = vld [vmem:[%s1 + $0x5c] sm:$0xf]
  %v62 = vld [vmem:[%s1 + $0x60] sm:$0xf]
  %v63 = vld [vmem:[%s1 + $0x64] sm:$0xf]
  %v64 = vld [vmem:[%s1 + $0x68] sm:$0xf]
  %v65 = vld [vmem:[%s1 + $0x6c] sm:$0xf]
  %v66 = vld [vmem:[%s1 + $0x70] sm:$0xf]
  %v67 = vld [vmem:[%s1 + $0x74] sm:$0xf]
  %v68 = vld [vmem:[%s1 + $0x78] sm:$0xf]
  %v69 = vld [vmem:[%s1 + $0x7c] sm:$0xf]
  %v70 = vld [vmem:[%s1 + $0x80] sm:$0xf]
  %v71 = vld [vmem:[%s1 + $0x84] sm:$0xf]
  %v72 = vld [vmem:[%s1 + $0x88] sm:$0xf]
  %v73 = vld [vmem:[%s1 + $0x8c] sm:$0xf]
  %v74 = vld [vmem:[%s1 + $0x90] sm:$0xf]
  %v75 = vld [vmem:[%s1 + $0x94] sm:$0xf]
  %v76 = vld [vmem:[%s1 + $0x98] sm:$0xf]
  %v77 = vld [vmem:[%s1 + $0x9c] sm:$0xf]
  %v78 = vld [vmem:[%s1 + $0xa0] sm:$0xf]
  %v79 = vld [vmem:[%s1 + $0xa4] sm:$0xf]
  %v80 = vld [vmem:[%s1 + $0xa8] sm:$0xf]
  %v81 = vld [vmem:[%s1 + $0xac] sm:$0xf]
  %v82 = vld [vmem:[%s1 + $0xb0] sm:$0xf]
  %v83 = vld [vmem:[%s1 + $0xb4] sm:$0xf]
  %v84 = vld [vmem:[%s1 + $0xb8] sm:$0xf]
  %v85 = vld [vmem:[%s1 + $0xbc] sm:$0xf]
  %v86 = vld [vmem:[%s1 + $0xc0] sm:$0xf]
  %v87 = vld [vmem:[%s1 + $0xc4] sm:$0xf]
  %v88 = vld [vmem:[%s1 + $0xc8] sm:$0xf]
  %v89 = vld [vmem:[%s1 + $0xcc] sm:$0xf]
  %v90 = vld [vmem:[%s1 + $0xd0] sm:$0xf]
  %v91 = vld [vmem:[%s1 + $0xd4] sm:$0xf]
  %v92 = vld [vmem:[%s1 + $0xd8] sm:$0xf]
  %v93 = vld [vmem:[%s1 + $0xdc] sm:$0xf]
  %v94 = vld [vmem:[%s1 + $0xe0] sm:$0xf]
  %v95 = vld [vmem:[%s1 + $0xe4] sm:$0xf]
  %v96 = vld [vmem:[%s1 + $0xe8] sm:$0xf]
  %v97 = vld [vmem:[%s1 + $0xec] sm:$0xf]
  %v98 = vld [vmem:[%s1 + $0xf0] sm:$0xf]
  %v99 = vld [vmem:[%s1 + $0xf4] sm:$0xf]
  %v100 = vld [vmem:[%s1 + $0xf8] sm:$0xf]
  %v101 = vld [vmem:[%s1 + $0xfc] sm:$0xf]
  %v102 = vld [vmem:[%s1 + $0x100] sm:$0xf]
  %v103 = vld [vmem:[%s1 + $0x104] sm:$0xf]
  %v104 = vld [vmem:[%s1 + $0x108] sm:$0xf]
  %v105 = vld [vmem:[%s1 + $0x10c] sm:$0xf]
  %v106 = vld [vmem:[%s1 + $0x110] sm:$0xf]
  %v107 = vld [vmem:[%s1 + $0x114] sm:$0xf]
  %v108 = vld [vmem:[%s1 + $0x118] sm:$0xf]
  %v109 = vld [vmem:[%s1 + $0x11c] sm:$0xf]
  %v110 = vld [vmem:[%s1 + $0x120] sm:$0xf]
  %v111 = vld [vmem:[%s1 + $0x124] sm:$0xf]
  %v112 = vld [vmem:[%s1 + $0x128] sm:$0xf]
  %v113 = vld [vmem:[%s1 + $0x12c] sm:$0xf]
  %v114 = vld [vmem:[%s1 + $0x130] sm:$0xf]
  %v115 = vld [vmem:[%s1 + $0x134] sm:$0xf]
  %v116 = vld [vmem:[%s1 + $0x138] sm:$0xf]
  %v117 = vld [vmem:[%s1 + $0x13c] sm:$0xf]
  %v118 = vld [vmem:[%s1 + $0x140] sm:$0xf]
  %v119 = vld [vmem:[%s1 + $0x144] sm:$0xf]
  %v120 = vld [vmem:[%s1 + $0x148] sm:$0xf]
  %v121 = vld [vmem:[%s1 + $0x14c] sm:$0xf]
  %v122 = vld [vmem:[%s1 + $0x150] sm:$0xf]
  %v123 = vld [vmem:[%s1 + $0x154] sm:$0xf]
  %v124 = vld [vmem:[%s1 + $0x158] sm:$0xf]
  %v125 = vld [vmem:[%s1 + $0x15c] sm:$0xf]
  %v126 = vld [vmem:[%s1 + $0x160] sm:$0xf]
  %v127 = vld [vmem:[%s1 + $0x164] sm:$0xf]
  %v128 = vld [vmem:[%s1 + $0x168] sm:$0xf]
  %v129 = vld [vmem:[%s1 + $0x16c] sm:$0xf]
  %v130 = vld [vmem:[%s1 + $0x170] sm:$0xf]
  %v131 = vld [vmem:[%s1 + $0x174] sm:$0xf]
  %v132 = vld [vmem:[%s1 + $0x178] sm:$0xf]
  %v133 = vld [vmem:[%s1 + $0x17c] sm:$0xf]
  %v134 = vld [vmem:[%s1 + $0x180] sm:$0xf]
  %v135 = vld [vmem:[%s1 + $0x184] sm:$0xf]
  %v136 = vld [vmem:[%s1 + $0x188] sm:$0xf]
  %v137 = vld [vmem:[%s1 + $0x18c] sm:$0xf]
  %v138 = vld [vmem:[%s1 + $0x190] sm:$0xf]
  %v139 = vld [vmem:[%s1 + $0x194] sm:$0xf]
  %v140 = vld [vmem:[%s1 + $0x198] sm:$0xf]
  %v141 = vld [vmem:[%s1 + $0x19c] sm:$0xf]
  %v142 = vld [vmem:[%s1 + $0x1a0] sm:$0xf]
  %v143 = vld [vmem:[%s1 + $0x1a4] sm:$0xf]
  %v144 = vld [vmem:[%s1 + $0x1a8] sm:$0xf]
  %v145 = vld [vmem:[%s1 + $0x1ac] sm:$0xf]
  %v146 = vld [vmem:[%s1 + $0x1b0] sm:$0xf]
  %v147 = vld [vmem:[%s1 + $0x1b4] sm:$0xf]
  %v148 = vld [vmem:[%s1 + $0x1b8] sm:$0xf]
  %v149 = vld [vmem:[%s1 + $0x1bc] sm:$0xf]
  %v150 = vld [vmem:[%s1 + $0x1c0] sm:$0xf]
  %v151 = vld [vmem:[%s1 + $0x1c4] sm:$0xf]
  %v152 = vld [vmem:[%s1 + $0x1c8] sm:$0xf]
  %v153 = vld [vmem:[%s1 + $0x1cc] sm:$0xf]
  %v154 = vld [vmem:[%s1 + $0x1d0] sm:$0xf]
  %v155 = vld [vmem:[%s1 + $0x1d4] sm:$0xf]
  %v156 = vld [vmem:[%s1 + $0x1d8] sm:$0xf]
  %v157 = vld [vmem:[%s1 + $0x1dc] sm:$0xf]
  %v158 = vld [vmem:[%s1 + $0x1e0] sm:$0xf]
  %v159 = vld [vmem:[%s1 + $0x1e4] sm:$0xf]
  %v160 = vld [vmem:[%s1 + $0x1e8] sm:$0xf]
  %v161 = vld [vmem:[%s1 + $0x1ec] sm:$0xf]
  %v162 = vld [vmem:[%s1 + $0x1f0] sm:$0xf]
  %v163 = vld [vmem:[%s1 + $0x1f4] sm:$0xf]
  %v164 = vld [vmem:[%s1 + $0x1f8] sm:$0xf]
  %v165 = vld [vmem:[%s1 + $0x1fc] sm:$0xf]
  %v166 = vld [vmem:[%s1 + $0x200] sm:$0xf]
  %v167 = vld [vmem:[%s1 + $0x204] sm:$0xf]
  %v168 = vld [vmem:[%s1 + $0x208] sm:$0xf]
  %v169 = vld [vmem:[%s1 + $0x20c] sm:$0xf]
  %v170 = vld [vmem:[%s1 + $0x210] sm:$0xf]
  %v171 = vld [vmem:[%s1 + $0x214] sm:$0xf]
  %v172 = vld [vmem:[%s1 + $0x218] sm:$0xf]
  %v173 = vld [vmem:[%s1 + $0x21c] sm:$0xf]
  %v174 = vld [vmem:[%s1 + $0x220] sm:$0xf]
  %v175 = vld [vmem:[%s1 + $0x224] sm:$0xf]
  %v176 = vld [vmem:[%s1 + $0x228] sm:$0xf]
  %v177 = vld [vmem:[%s1 + $0x22c] sm:$0xf]
  %v178 = vld [vmem:[%s1 + $0x230] sm:$0xf]
  %v179 = vld [vmem:[%s1 + $0x234] sm:$0xf]
  %v180 = vld [vmem:[%s1 + $0x238] sm:$0xf]
  %v181 = vld [vmem:[%s1 + $0x23c] sm:$0xf]
  %v202 = vunpack.c.l.b16 %v18
  %v203 = vunpack.c.h.b16 %v18
  %v204 = vunpack.c.l.b16 %v19
  %v205 = vunpack.c.h.b16 %v19
  %v206 = vunpack.c.l.b16 %v20
  %v207 = vunpack.c.h.b16 %v20
  %v208 = vunpack.c.l.b16 %v21
  %v209 = vunpack.c.h.b16 %v21
  %v210 = vunpack.c.l.b16 %v22
  %v211 = vunpack.c.l.b16 %v23
  %v212 = vunpack.c.h.b16 %v23
  %v213 = vunpack.c.l.b16 %v24
  %v214 = vunpack.c.h.b16 %v24
  %v215 = vunpack.c.l.b16 %v25
  %v216 = vunpack.c.h.b16 %v25
  %v217 = vunpack.c.l.b16 %v26
  %v218 = vunpack.c.h.b16 %v26
  %v219 = vunpack.c.l.b16 %v27
  %v220 = vunpack.c.l.b16 %v28
  %v221 = vunpack.c.h.b16 %v28
  %v222 = vunpack.c.l.b16 %v29
  %v223 = vunpack.c.h.b16 %v29
  %v224 = vunpack.c.l.b16 %v30
  %v225 = vunpack.c.h.b16 %v30
  %v226 = vunpack.c.l.b16 %v31
  %v227 = vunpack.c.h.b16 %v31
  %v228 = vunpack.c.l.b16 %v32
  %v229 = vunpack.c.l.b16 %v33
  %v230 = vunpack.c.h.b16 %v33
  %v231 = vunpack.c.l.b16 %v34
  %v232 = vunpack.c.h.b16 %v34
  %v233 = vunpack.c.l.b16 %v35
  %v234 = vunpack.c.h.b16 %v35
  %v235 = vunpack.c.l.b16 %v36
  %v236 = vunpack.c.h.b16 %v36
  %v237 = vunpack.c.l.b16 %v37
  %v238 = vpack.c.b16 %v211, %v202
  %v239 = vpack.c.b16 %v212, %v203
  %v240 = vpack.c.b16 %v213, %v204
  %v241 = vpack.c.b16 %v214, %v205
  %v242 = vpack.c.b16 %v215, %v206
  %v243 = vpack.c.b16 %v216, %v207
  %v244 = vpack.c.b16 %v217, %v208
  %v245 = vpack.c.b16 %v218, %v209
  %v246 = vpack.c.b16 %v219, %v210
  %v247 = vpack.c.b16 %v229, %v220
  %v248 = vpack.c.b16 %v230, %v221
  %v249 = vpack.c.b16 %v231, %v222
  %v250 = vpack.c.b16 %v232, %v223
  %v251 = vpack.c.b16 %v233, %v224
  %v252 = vpack.c.b16 %v234, %v225
  %v253 = vpack.c.b16 %v235, %v226
  %v254 = vpack.c.b16 %v236, %v227
  %v255 = vpack.c.b16 %v237, %v228
  %v418 = vunpack.c.l.b16 %v38
  %v419 = vunpack.c.l.b16 %v39
  %v420 = vunpack.c.l.b16 %v40
  %v421 = vunpack.c.l.b16 %v41
  %v422 = vunpack.c.l.b16 %v42
  %v423 = vunpack.c.l.b16 %v43
  %v424 = vunpack.c.l.b16 %v44
  %v425 = vunpack.c.l.b16 %v45
  %v426 = vunpack.c.l.b16 %v46
  %v427 = vunpack.c.l.b16 %v47
  %v428 = vunpack.c.l.b16 %v48
  %v429 = vunpack.c.l.b16 %v49
  %v430 = vunpack.c.l.b16 %v50
  %v431 = vunpack.c.l.b16 %v51
  %v432 = vunpack.c.l.b16 %v52
  %v433 = vunpack.c.l.b16 %v53
  %v434 = vunpack.c.l.b16 %v54
  %v435 = vunpack.c.l.b16 %v55
  %v436 = vunpack.c.l.b16 %v56
  %v437 = vunpack.c.l.b16 %v57
  %v438 = vunpack.c.l.b16 %v58
  %v439 = vunpack.c.l.b16 %v59
  %v440 = vunpack.c.l.b16 %v60
  %v441 = vunpack.c.l.b16 %v61
  %v442 = vunpack.c.l.b16 %v62
  %v443 = vunpack.c.l.b16 %v63
  %v444 = vunpack.c.l.b16 %v64
  %v445 = vunpack.c.l.b16 %v65
  %v446 = vunpack.c.l.b16 %v66
  %v447 = vunpack.c.l.b16 %v67
  %v448 = vunpack.c.l.b16 %v68
  %v449 = vunpack.c.l.b16 %v69
  %v450 = vunpack.c.l.b16 %v70
  %v451 = vunpack.c.l.b16 %v71
  %v452 = vunpack.c.l.b16 %v72
  %v453 = vunpack.c.l.b16 %v73
  %v454 = vunpack.c.l.b16 %v74
  %v455 = vunpack.c.l.b16 %v75
  %v456 = vunpack.c.l.b16 %v76
  %v457 = vunpack.c.l.b16 %v77
  %v458 = vunpack.c.l.b16 %v78
  %v459 = vunpack.c.l.b16 %v79
  %v460 = vunpack.c.l.b16 %v80
  %v461 = vunpack.c.l.b16 %v81
  %v462 = vunpack.c.l.b16 %v82
  %v463 = vunpack.c.l.b16 %v83
  %v464 = vunpack.c.l.b16 %v84
  %v465 = vunpack.c.l.b16 %v85
  %v466 = vunpack.c.l.b16 %v86
  %v467 = vunpack.c.l.b16 %v87
  %v468 = vunpack.c.l.b16 %v88
  %v469 = vunpack.c.l.b16 %v89
  %v470 = vunpack.c.l.b16 %v90
  %v471 = vunpack.c.l.b16 %v91
  %v472 = vunpack.c.l.b16 %v92
  %v473 = vunpack.c.l.b16 %v93
  %v474 = vunpack.c.l.b16 %v94
  %v475 = vunpack.c.l.b16 %v95
  %v476 = vunpack.c.l.b16 %v96
  %v477 = vunpack.c.l.b16 %v97
  %v478 = vunpack.c.l.b16 %v98
  %v479 = vunpack.c.l.b16 %v99
  %v480 = vunpack.c.l.b16 %v100
  %v481 = vunpack.c.l.b16 %v101
  %v482 = vunpack.c.l.b16 %v102
  %v483 = vunpack.c.l.b16 %v103
  %v484 = vunpack.c.l.b16 %v104
  %v485 = vunpack.c.l.b16 %v105
  %v486 = vunpack.c.l.b16 %v106
  %v487 = vunpack.c.l.b16 %v107
  %v488 = vunpack.c.l.b16 %v108
  %v489 = vunpack.c.l.b16 %v109
  %v490 = vunpack.c.l.b16 %v110
  %v491 = vunpack.c.l.b16 %v111
  %v492 = vunpack.c.l.b16 %v112
  %v493 = vunpack.c.l.b16 %v113
  %v494 = vunpack.c.l.b16 %v114
  %v495 = vunpack.c.l.b16 %v115
  %v496 = vunpack.c.l.b16 %v116
  %v497 = vunpack.c.l.b16 %v117
  %v498 = vunpack.c.l.b16 %v118
  %v499 = vunpack.c.l.b16 %v119
  %v500 = vunpack.c.l.b16 %v120
  %v501 = vunpack.c.l.b16 %v121
  %v502 = vunpack.c.l.b16 %v122
  %v503 = vunpack.c.l.b16 %v123
  %v504 = vunpack.c.l.b16 %v124
  %v505 = vunpack.c.l.b16 %v125
  %v506 = vunpack.c.l.b16 %v126
  %v507 = vunpack.c.l.b16 %v127
  %v508 = vunpack.c.l.b16 %v128
  %v509 = vunpack.c.l.b16 %v129
  %v510 = vunpack.c.l.b16 %v130
  %v511 = vunpack.c.l.b16 %v131
  %v512 = vunpack.c.l.b16 %v132
  %v513 = vunpack.c.l.b16 %v133
  %v514 = vunpack.c.l.b16 %v134
  %v515 = vunpack.c.l.b16 %v135
  %v516 = vunpack.c.l.b16 %v136
  %v517 = vunpack.c.l.b16 %v137
  %v518 = vunpack.c.l.b16 %v138
  %v519 = vunpack.c.l.b16 %v139
  %v520 = vunpack.c.l.b16 %v140
  %v521 = vunpack.c.l.b16 %v141
  %v522 = vunpack.c.l.b16 %v142
  %v523 = vunpack.c.l.b16 %v143
  %v524 = vunpack.c.l.b16 %v144
  %v525 = vunpack.c.l.b16 %v145
  %v526 = vunpack.c.l.b16 %v146
  %v527 = vunpack.c.l.b16 %v147
  %v528 = vunpack.c.l.b16 %v148
  %v529 = vunpack.c.l.b16 %v149
  %v530 = vunpack.c.l.b16 %v150
  %v531 = vunpack.c.l.b16 %v151
  %v532 = vunpack.c.l.b16 %v152
  %v533 = vunpack.c.l.b16 %v153
  %v534 = vunpack.c.l.b16 %v154
  %v535 = vunpack.c.l.b16 %v155
  %v536 = vunpack.c.l.b16 %v156
  %v537 = vunpack.c.l.b16 %v157
  %v538 = vunpack.c.l.b16 %v158
  %v539 = vunpack.c.l.b16 %v159
  %v540 = vunpack.c.l.b16 %v160
  %v541 = vunpack.c.l.b16 %v161
  %v542 = vunpack.c.l.b16 %v162
  %v543 = vunpack.c.l.b16 %v163
  %v544 = vunpack.c.l.b16 %v164
  %v545 = vunpack.c.l.b16 %v165
  %v546 = vunpack.c.l.b16 %v166
  %v547 = vunpack.c.l.b16 %v167
  %v548 = vunpack.c.l.b16 %v168
  %v549 = vunpack.c.l.b16 %v169
  %v550 = vunpack.c.l.b16 %v170
  %v551 = vunpack.c.l.b16 %v171
  %v552 = vunpack.c.l.b16 %v172
  %v553 = vunpack.c.l.b16 %v173
  %v554 = vunpack.c.l.b16 %v174
  %v555 = vunpack.c.l.b16 %v175
  %v556 = vunpack.c.l.b16 %v176
  %v557 = vunpack.c.l.b16 %v177
  %v558 = vunpack.c.l.b16 %v178
  %v559 = vunpack.c.l.b16 %v179
  %v560 = vunpack.c.l.b16 %v180
  %v561 = vunpack.c.l.b16 %v181
  %v562 = vpack.c.b16 %v419, %v418
  %v563 = vpack.c.b16 %v421, %v420
  %v564 = vpack.c.b16 %v423, %v422
  %v565 = vpack.c.b16 %v425, %v424
  %v566 = vpack.c.b16 %v427, %v426
  %v567 = vpack.c.b16 %v429, %v428
  %v568 = vpack.c.b16 %v431, %v430
  %v569 = vpack.c.b16 %v433, %v432
  %v570 = vpack.c.b16 %v435, %v434
  %v571 = vpack.c.b16 %v437, %v436
  %v572 = vpack.c.b16 %v439, %v438
  %v573 = vpack.c.b16 %v441, %v440
  %v574 = vpack.c.b16 %v443, %v442
  %v575 = vpack.c.b16 %v445, %v444
  %v576 = vpack.c.b16 %v447, %v446
  %v577 = vpack.c.b16 %v449, %v448
  %v578 = vpack.c.b16 %v451, %v450
  %v579 = vpack.c.b16 %v453, %v452
  %v580 = vpack.c.b16 %v455, %v454
  %v581 = vpack.c.b16 %v457, %v456
  %v582 = vpack.c.b16 %v459, %v458
  %v583 = vpack.c.b16 %v461, %v460
  %v584 = vpack.c.b16 %v463, %v462
  %v585 = vpack.c.b16 %v465, %v464
  %v586 = vpack.c.b16 %v467, %v466
  %v587 = vpack.c.b16 %v469, %v468
  %v588 = vpack.c.b16 %v471, %v470
  %v589 = vpack.c.b16 %v473, %v472
  %v590 = vpack.c.b16 %v475, %v474
  %v591 = vpack.c.b16 %v477, %v476
  %v592 = vpack.c.b16 %v479, %v478
  %v593 = vpack.c.b16 %v481, %v480
  %v594 = vpack.c.b16 %v483, %v482
  %v595 = vpack.c.b16 %v485, %v484
  %v596 = vpack.c.b16 %v487, %v486
  %v597 = vpack.c.b16 %v489, %v488
  %v598 = vpack.c.b16 %v491, %v490
  %v599 = vpack.c.b16 %v493, %v492
  %v600 = vpack.c.b16 %v495, %v494
  %v601 = vpack.c.b16 %v497, %v496
  %v602 = vpack.c.b16 %v499, %v498
  %v603 = vpack.c.b16 %v501, %v500
  %v604 = vpack.c.b16 %v503, %v502
  %v605 = vpack.c.b16 %v505, %v504
  %v606 = vpack.c.b16 %v507, %v506
  %v607 = vpack.c.b16 %v509, %v508
  %v608 = vpack.c.b16 %v511, %v510
  %v609 = vpack.c.b16 %v513, %v512
  %v610 = vpack.c.b16 %v515, %v514
  %v611 = vpack.c.b16 %v517, %v516
  %v612 = vpack.c.b16 %v519, %v518
  %v613 = vpack.c.b16 %v521, %v520
  %v614 = vpack.c.b16 %v523, %v522
  %v615 = vpack.c.b16 %v525, %v524
  %v616 = vpack.c.b16 %v527, %v526
  %v617 = vpack.c.b16 %v529, %v528
  %v618 = vpack.c.b16 %v531, %v530
  %v619 = vpack.c.b16 %v533, %v532
  %v620 = vpack.c.b16 %v535, %v534
  %v621 = vpack.c.b16 %v537, %v536
  %v622 = vpack.c.b16 %v539, %v538
  %v623 = vpack.c.b16 %v541, %v540
  %v624 = vpack.c.b16 %v543, %v542
  %v625 = vpack.c.b16 %v545, %v544
  %v626 = vpack.c.b16 %v547, %v546
  %v627 = vpack.c.b16 %v549, %v548
  %v628 = vpack.c.b16 %v551, %v550
  %v629 = vpack.c.b16 %v553, %v552
  %v630 = vpack.c.b16 %v555, %v554
  %v631 = vpack.c.b16 %v557, %v556
  %v632 = vpack.c.b16 %v559, %v558
  %v633 = vpack.c.b16 %v561, %v560
  %706 = vmatprep.subr.bf16.mxu0 0
  %707 = vmatpush1.bf16.msra.mxu0 %v569
  %708 = vmatprep.subr.bf16.mxu0 0
  %709 = vmatpush1.bf16.msra.mxu0 %v568
  %710 = vmatprep.subr.bf16.mxu0 0
  %711 = vmatpush1.bf16.msra.mxu0 %v567
  %712 = vmatprep.subr.bf16.mxu0 0
  %713 = vmatpush1.bf16.msra.mxu0 %v566
  %714 = vmatprep.subr.bf16.mxu0 0
  %715 = vmatpush1.bf16.msra.mxu0 %v565
  %716 = vmatprep.subr.bf16.mxu0 0
  %717 = vmatpush1.bf16.msra.mxu0 %v564
  %718 = vmatprep.subr.bf16.mxu0 0
  %719 = vmatpush1.bf16.msra.mxu0 %v563
  %720 = vmatprep.subr.bf16.mxu0 0
  %721 = vmatpush1.bf16.msra.mxu0 %v562
  %722 = vmatprep.subr.bf16.mxu0 0
  %723 = vmatpush2.bf16.msra.mxu0 %v577
  %724 = vmatprep.subr.bf16.mxu0 0
  %725 = vmatpush2.bf16.msra.mxu0 %v576
  %726 = vmatprep.subr.bf16.mxu0 0
  %727 = vmatpush2.bf16.msra.mxu0 %v575
  %728 = vmatprep.subr.bf16.mxu0 0
  %729 = vmatpush2.bf16.msra.mxu0 %v574
  %730 = vmatprep.subr.bf16.mxu0 0
  %731 = vmatpush2.bf16.msra.mxu0 %v573
  %732 = vmatprep.subr.bf16.mxu0 0
  %733 = vmatpush2.bf16.msra.mxu0 %v572
  %734 = vmatprep.subr.bf16.mxu0 0
  %735 = vmatpush2.bf16.msra.mxu0 %v571
  %736 = vmatprep.subr.bf16.mxu0 0
  %737 = vmatpush2.bf16.msra.mxu0 %v570
  %738 = vmatprep.mubr.bf16.mxu0 %v239
  %739 = vmatmul.mubr.bf16.gmra.mxu0 %v238
  %v740 = vpop.f32.mrf.mxu0
  %v741 = vadd.f32 0.0, %v740
  %v742 = vpop.f32.mrf.mxu0
  %v743 = vpop.f32.mrf.mxu0
  %v744 = vadd.f32 0.0, %v743
  %v745 = vpop.f32.mrf.mxu0
  %746 = vmatprep.mubr.bf16.mxu0 %v248
  %747 = vmatmul.mubr.bf16.gmra.mxu0 %v247
  %v748 = vpop.f32.mrf.mxu0
  %v749 = vadd.f32 0.0, %v748
  %v750 = vpop.f32.mrf.mxu0
  %v751 = vpop.f32.mrf.mxu0
  %v752 = vadd.f32 0.0, %v751
  %v753 = vpop.f32.mrf.mxu0
  %754 = vdwg.mxu0
  %755 = vmatprep.subr.bf16.mxu0 0
  %756 = vmatpush1.bf16.msra.mxu0 %v585
  %757 = vmatprep.subr.bf16.mxu0 0
  %758 = vmatpush1.bf16.msra.mxu0 %v584
  %759 = vmatprep.subr.bf16.mxu0 0
  %760 = vmatpush1.bf16.msra.mxu0 %v583
  %761 = vmatprep.subr.bf16.mxu0 0
  %762 = vmatpush1.bf16.msra.mxu0 %v582
  %763 = vmatprep.subr.bf16.mxu0 0
  %764 = vmatpush1.bf16.msra.mxu0 %v581
  %765 = vmatprep.subr.bf16.mxu0 0
  %766 = vmatpush1.bf16.msra.mxu0 %v580
  %767 = vmatprep.subr.bf16.mxu0 0
  %768 = vmatpush1.bf16.msra.mxu0 %v579
  %769 = vmatprep.subr.bf16.mxu0 0
  %770 = vmatpush1.bf16.msra.mxu0 %v578
  %771 = vmatprep.subr.bf16.mxu0 0
  %772 = vmatpush2.bf16.msra.mxu0 %v593
  %773 = vmatprep.subr.bf16.mxu0 0
  %774 = vmatpush2.bf16.msra.mxu0 %v592
  %775 = vmatprep.subr.bf16.mxu0 0
  %776 = vmatpush2.bf16.msra.mxu0 %v591
  %777 = vmatprep.subr.bf16.mxu0 0
  %778 = vmatpush2.bf16.msra.mxu0 %v590
  %779 = vmatprep.subr.bf16.mxu0 0
  %780 = vmatpush2.bf16.msra.mxu0 %v589
  %781 = vmatprep.subr.bf16.mxu0 0
  %782 = vmatpush2.bf16.msra.mxu0 %v588
  %783 = vmatprep.subr.bf16.mxu0 0
  %784 = vmatpush2.bf16.msra.mxu0 %v587
  %785 = vmatprep.subr.bf16.mxu0 0
  %786 = vmatpush2.bf16.msra.mxu0 %v586
  %787 = vmatprep.mubr.bf16.mxu0 %v241
  %788 = vmatmul.mubr.bf16.gmra.mxu0 %v240
  %v789 = vpop.f32.mrf.mxu0
  %v790 = vadd.f32 %v741, %v789
  %v791 = vpop.f32.mrf.mxu0
  %v792 = vpop.f32.mrf.mxu0
  %v793 = vadd.f32 %v744, %v792
  %v794 = vpop.f32.mrf.mxu0
  %795 = vmatprep.mubr.bf16.mxu0 %v250
  %796 = vmatmul.mubr.bf16.gmra.mxu0 %v249
  %v797 = vpop.f32.mrf.mxu0
  %v798 = vadd.f32 %v749, %v797
  %v799 = vpop.f32.mrf.mxu0
  %v800 = vpop.f32.mrf.mxu0
  %v801 = vadd.f32 %v752, %v800
  %v802 = vpop.f32.mrf.mxu0
  %803 = vdwg.mxu0
  %804 = vmatprep.subr.bf16.mxu0 0
  %805 = vmatpush1.bf16.msra.mxu0 %v601
  %806 = vmatprep.subr.bf16.mxu0 0
  %807 = vmatpush1.bf16.msra.mxu0 %v600
  %808 = vmatprep.subr.bf16.mxu0 0
  %809 = vmatpush1.bf16.msra.mxu0 %v599
  %810 = vmatprep.subr.bf16.mxu0 0
  %811 = vmatpush1.bf16.msra.mxu0 %v598
  %812 = vmatprep.subr.bf16.mxu0 0
  %813 = vmatpush1.bf16.msra.mxu0 %v597
  %814 = vmatprep.subr.bf16.mxu0 0
  %815 = vmatpush1.bf16.msra.mxu0 %v596
  %816 = vmatprep.subr.bf16.mxu0 0
  %817 = vmatpush1.bf16.msra.mxu0 %v595
  %818 = vmatprep.subr.bf16.mxu0 0
  %819 = vmatpush1.bf16.msra.mxu0 %v594
  %820 = vmatprep.subr.bf16.mxu0 0
  %821 = vmatpush2.bf16.msra.mxu0 %v609
  %822 = vmatprep.subr.bf16.mxu0 0
  %823 = vmatpush2.bf16.msra.mxu0 %v608
  %824 = vmatprep.subr.bf16.mxu0 0
  %825 = vmatpush2.bf16.msra.mxu0 %v607
  %826 = vmatprep.subr.bf16.mxu0 0
  %827 = vmatpush2.bf16.msra.mxu0 %v606
  %828 = vmatprep.subr.bf16.mxu0 0
  %829 = vmatpush2.bf16.msra.mxu0 %v605
  %830 = vmatprep.subr.bf16.mxu0 0
  %831 = vmatpush2.bf16.msra.mxu0 %v604
  %832 = vmatprep.subr.bf16.mxu0 0
  %833 = vmatpush2.bf16.msra.mxu0 %v603
  %834 = vmatprep.subr.bf16.mxu0 0
  %835 = vmatpush2.bf16.msra.mxu0 %v602
  %836 = vmatprep.mubr.bf16.mxu0 %v243
  %837 = vmatmul.mubr.bf16.gmra.mxu0 %v242
  %v838 = vpop.f32.mrf.mxu0
  %v839 = vadd.f32 %v790, %v838
  %v840 = vpop.f32.mrf.mxu0
  %v841 = vpop.f32.mrf.mxu0
  %v842 = vadd.f32 %v793, %v841
  %v843 = vpop.f32.mrf.mxu0
  %844 = vmatprep.mubr.bf16.mxu0 %v252
  %845 = vmatmul.mubr.bf16.gmra.mxu0 %v251
  %v846 = vpop.f32.mrf.mxu0
  %v847 = vadd.f32 %v798, %v846
  %v848 = vpop.f32.mrf.mxu0
  %v849 = vpop.f32.mrf.mxu0
  %v850 = vadd.f32 %v801, %v849
  %v851 = vpop.f32.mrf.mxu0
  %852 = vdwg.mxu0
  %853 = vmatprep.subr.bf16.mxu0 0
  %854 = vmatpush1.bf16.msra.mxu0 %v617
  %855 = vmatprep.subr.bf16.mxu0 0
  %856 = vmatpush1.bf16.msra.mxu0 %v616
  %857 = vmatprep.subr.bf16.mxu0 0
  %858 = vmatpush1.bf16.msra.mxu0 %v615
  %859 = vmatprep.subr.bf16.mxu0 0
  %860 = vmatpush1.bf16.msra.mxu0 %v614
  %861 = vmatprep.subr.bf16.mxu0 0
  %862 = vmatpush1.bf16.msra.mxu0 %v613
  %863 = vmatprep.subr.bf16.mxu0 0
  %864 = vmatpush1.bf16.msra.mxu0 %v612
  %865 = vmatprep.subr.bf16.mxu0 0
  %866 = vmatpush1.bf16.msra.mxu0 %v611
  %867 = vmatprep.subr.bf16.mxu0 0
  %868 = vmatpush1.bf16.msra.mxu0 %v610
  %869 = vmatprep.subr.bf16.mxu0 0
  %870 = vmatpush2.bf16.msra.mxu0 %v625
  %871 = vmatprep.subr.bf16.mxu0 0
  %872 = vmatpush2.bf16.msra.mxu0 %v624
  %873 = vmatprep.subr.bf16.mxu0 0
  %874 = vmatpush2.bf16.msra.mxu0 %v623
  %875 = vmatprep.subr.bf16.mxu0 0
  %876 = vmatpush2.bf16.msra.mxu0 %v622
  %877 = vmatprep.subr.bf16.mxu0 0
  %878 = vmatpush2.bf16.msra.mxu0 %v621
  %879 = vmatprep.subr.bf16.mxu0 0
  %880 = vmatpush2.bf16.msra.mxu0 %v620
  %881 = vmatprep.subr.bf16.mxu0 0
  %882 = vmatpush2.bf16.msra.mxu0 %v619
  %883 = vmatprep.subr.bf16.mxu0 0
  %884 = vmatpush2.bf16.msra.mxu0 %v618
  %885 = vmatprep.mubr.bf16.mxu0 %v245
  %886 = vmatmul.mubr.bf16.gmra.mxu0 %v244
  %v887 = vpop.f32.mrf.mxu0
  %v888 = vadd.f32 %v839, %v887
  %v889 = vpop.f32.mrf.mxu0
  %v890 = vpop.f32.mrf.mxu0
  %v891 = vadd.f32 %v842, %v890
  %v892 = vpop.f32.mrf.mxu0
  %893 = vmatprep.mubr.bf16.mxu0 %v254
  %894 = vmatmul.mubr.bf16.gmra.mxu0 %v253
  %v895 = vpop.f32.mrf.mxu0
  %v896 = vadd.f32 %v847, %v895
  %v897 = vpop.f32.mrf.mxu0
  %v898 = vpop.f32.mrf.mxu0
  %v899 = vadd.f32 %v850, %v898
  %v900 = vpop.f32.mrf.mxu0
  %901 = vdwg.mxu0
  %902 = vmatprep.subr.bf16.mxu0 0
  %903 = vmatpush1.bf16.msra.mxu0 %v633
  %904 = vmatprep.subr.bf16.mxu0 0
  %905 = vmatpush1.bf16.msra.mxu0 %v632
  %906 = vmatprep.subr.bf16.mxu0 0
  %907 = vmatpush1.bf16.msra.mxu0 %v631
  %908 = vmatprep.subr.bf16.mxu0 0
  %909 = vmatpush1.bf16.msra.mxu0 %v630
  %910 = vmatprep.subr.bf16.mxu0 0
  %911 = vmatpush1.bf16.msra.mxu0 %v629
  %912 = vmatprep.subr.bf16.mxu0 0
  %913 = vmatpush1.bf16.msra.mxu0 %v628
  %914 = vmatprep.subr.bf16.mxu0 0
  %915 = vmatpush1.bf16.msra.mxu0 %v627
  %916 = vmatprep.subr.bf16.mxu0 0
  %917 = vmatpush1.bf16.msra.mxu0 %v626
  %918 = vmatprep.subr.bf16.mxu0 0
  %919 = vmatpush2.bf16.msra.mxu0 0
  %920 = vmatprep.subr.bf16.mxu0 0
  %921 = vmatpush2.bf16.msra.mxu0 0
  %922 = vmatprep.subr.bf16.mxu0 0
  %923 = vmatpush2.bf16.msra.mxu0 0
  %924 = vmatprep.subr.bf16.mxu0 0
  %925 = vmatpush2.bf16.msra.mxu0 0
  %926 = vmatprep.subr.bf16.mxu0 0
  %927 = vmatpush2.bf16.msra.mxu0 0
  %928 = vmatprep.subr.bf16.mxu0 0
  %929 = vmatpush2.bf16.msra.mxu0 0
  %930 = vmatprep.subr.bf16.mxu0 0
  %931 = vmatpush2.bf16.msra.mxu0 0
  %932 = vmatprep.subr.bf16.mxu0 0
  %933 = vmatpush2.bf16.msra.mxu0 0
  %934 = vmatprep.mubr.bf16.mxu0 0
  %935 = vmatmul.mubr.bf16.gmra.mxu0 %v246
  %v936 = vpop.f32.mrf.mxu0
  %v937 = vadd.f32 %v888, %v936
  %v938 = vpop.f32.mrf.mxu0
  %v939 = vpop.f32.mrf.mxu0
  %v940 = vadd.f32 %v891, %v939
  %v941 = vpop.f32.mrf.mxu0
  %942 = vmatprep.mubr.bf16.mxu0 0
  %943 = vmatmul.mubr.bf16.gmra.mxu0 %v255
  %v944 = vpop.f32.mrf.mxu0
  %v945 = vadd.f32 %v896, %v944
  %v946 = vpop.f32.mrf.mxu0
  %v947 = vpop.f32.mrf.mxu0
  %v948 = vadd.f32 %v899, %v947
  %v949 = vpop.f32.mrf.mxu0
  %950 = vdwg.mxu0
  %v951 = vld [vmem:[%s2] sm:$0x1]
  %v953 = vlaneseq
  %v954 = vshrl.u32 %v953, 7
  %v955 = vsub.s32 0, %v954
  %v956 = vrot.slane %v951, %v955
  %v958 = vmul.f32 %v937, %v956
  %v959 = vmul.f32 %v940, %v956
  %v960 = vmul.f32 %v945, %v956
  %v961 = vmul.f32 %v948, %v956
  %v962 = vld [vmem:[%s3] sm:$0x1]
  %v964 = vlaneseq
  %v965 = vshrl.u32 %v964, 7
  %v966 = vsub.s32 0, %v965
  %v967 = vrot.slane %v962, %v966
  %v969 = vadd.f32 %v958, %v967
  %v970 = vadd.f32 %v959, %v967
  %v971 = vadd.f32 %v960, %v967
  %v972 = vadd.f32 %v961, %v967
  %v973 = vmax.f32 %v969, 0.0
  %v974 = vmax.f32 %v970, 0.0
  %v975 = vmax.f32 %v971, 0.0
  %v976 = vmax.f32 %v972, 0.0
  %977 = vst [vmem:[%s4] sm:$0xff] %v973
  %978 = vst [vmem:[%s4 + $0x8] sm:$0xff] %v974
  %979 = vst [vmem:[%s4 + $0x10] sm:$0xff] %v975
  %980 = vst [vmem:[%s4 + $0x18] sm:$0xff] %v976
  // Predicated region
  $region18: #{erfnet_ae_forward.197} parent=0 // pred_check
    _
  $region19: #{erfnet_ae_forward.197} parent=0 // pred_check_branch
    %982 = sbr.rel (0) target = $region21
  $region20: #{erfnet_ae_forward.197} parent=0 // pred_region
    _
  $region21: #{erfnet_ae_forward.197} parent=0 // pred_fallthru
    _
  // Predicated region
  $region22: #{erfnet_ae_forward.197} parent=0 // pred_check
    _
  $region23: #{erfnet_ae_forward.197} parent=0 // pred_check_branch
    %984 = sbr.rel (0) target = $region25
  $region24: #{erfnet_ae_forward.197} parent=0 // pred_region
    _
  $region25: #{erfnet_ae_forward.197} parent=0 // pred_fallthru
    _

// kernel: erfnet_ae_forward.218
$region0: #{erfnet_ae_forward.218}
  #allocation0 [shape = 'u32[]', space=smem, size = 0x4, offset = 0x4, fixed_abs, tag = 'smem constant byte address 0x4 - core index']
  #allocation1 [shape = 'u32[144,128]{1,0:T(1,128)}', space=vmem, size = 0x12000, scoped, tag = 'internal scratch']
  %s0 = inlined_call_operand.vmem [shape: bf16[128,576], index: 0, kind: input, shape index: {}]
  %s1 = inlined_call_operand.vmem [shape: bf16[576,128], index: 1, kind: input, shape index: {}]
  %s2 = inlined_call_operand.vmem [shape: f32[1,128], index: 2, kind: input, shape index: {}]
  %s3 = inlined_call_operand.vmem [shape: f32[1,128], index: 3, kind: input, shape index: {}]
  %s4 = inlined_call_operand.vmem [shape: f32[128,128], index: 4, kind: output, shape index: {}]
  %s5 = sld [smem:[#allocation0]]
  $region49: #{erfnet_ae_forward.218} parent=0
    _
  %s7 = ssub.s32 1, %s5
  %s8 = scalar_select 0, %s7, %s5
  loop: start=0, step=1, limit=4
  $region2: #{erfnet_ae_forward.218} parent=0 // loop_pre_header
    _
  $region3: #{erfnet_ae_forward.218} parent=0 // loop_header
    %s10 = sphi 0, %s14
    %p11 = scmp.ge.s32.totalorder %s10, 4
    %s20 = sphi 0, %s22
    %s23 = sphi 0, %s20
    %s24 = sphi 0, %s23
    %s40 = sphi 0, %s24
    %s44 = sphi 0, %s44
    %s46 = sphi 0, %s44
    %s47 = sphi 0, %s46
    %s61 = sphi 0, %s47
    %s65 = sphi 0, %s65
    %s67 = sphi 0, %s65
    %s68 = sphi 0, %s67
    %s82 = sphi 0, %s68
    %s86 = sphi 0, %s86
    %s88 = sphi 0, %s86
    %s89 = sphi 0, %s88
    %s103 = sphi 0, %s89
    %s109 = sphi 0, %s111
    %s112 = sphi 0, %s109
    %s113 = sphi 0, %s112
    %s129 = sphi 0, %s113
  $region4: #{erfnet_ae_forward.218} parent=0 // loop_header_branch
    %13 = sbr.rel (%p11) target = $region8
  $region5: #{erfnet_ae_forward.218} parent=0 // loop_body
    %s15 = ssub.s32 %s10, 1
    %s16 = ssub.s32 %s10, 2
    %s17 = sadd.s32 %s10, 1
    %s18 = ssub.s32 %s10, %s17
    %p19 = scmp.eq.s32.totalorder %s18, 0
    %s21 = sadd.s32 %s20, 1
    %s22 = scalar_select %p19, %s20, %s21
    %p25 = pneg %p19
    %p26 = scmp.eq.s32.totalorder %s10, 1
    %p27 = por %p25, %p26
    %p28 = scmp.ne.s32.totalorder %s20, %s23
    %p29 = scmp.eq.s32.totalorder %s10, 0
    %p30 = por %p28, %p29
    %p31 = scmp.ne.s32.totalorder %s20, %s23
    %p32 = scmp.eq.s32.totalorder %s15, 1
    %p33 = por %p31, %p32
    %p34 = scmp.ne.s32.totalorder %s23, %s24
    %p35 = scmp.eq.s32.totalorder %s15, 0
    %p36 = por %p34, %p35
    %p37 = scmp.ne.s32.totalorder %s23, %s24
    %p38 = scmp.eq.s32.totalorder %s16, 1
    %p39 = por %p37, %p38
    %p41 = scmp.ne.s32.totalorder %s24, %s40
    %p42 = scmp.eq.s32.totalorder %s16, 0
    %p43 = por %p41, %p42
    %s45 = sadd.s32 %s44, 1
    %p48 = scmp.eq.s32.totalorder %s10, 1
    %p49 = scmp.ne.s32.totalorder %s44, %s46
    %p50 = scmp.eq.s32.totalorder %s10, 0
    %p51 = por %p49, %p50
    %p52 = scmp.ne.s32.totalorder %s44, %s46
    %p53 = scmp.eq.s32.totalorder %s15, 1
    %p54 = por %p52, %p53
    %p55 = scmp.ne.s32.totalorder %s46, %s47
    %p56 = scmp.eq.s32.totalorder %s15, 0
    %p57 = por %p55, %p56
    %p58 = scmp.ne.s32.totalorder %s46, %s47
    %p59 = scmp.eq.s32.totalorder %s16, 1
    %p60 = por %p58, %p59
    %p62 = scmp.ne.s32.totalorder %s47, %s61
    %p63 = scmp.eq.s32.totalorder %s16, 0
    %p64 = por %p62, %p63
    %s66 = sadd.s32 %s65, 1
    %p69 = scmp.eq.s32.totalorder %s10, 1
    %p70 = scmp.ne.s32.totalorder %s65, %s67
    %p71 = scmp.eq.s32.totalorder %s10, 0
    %p72 = por %p70, %p71
    %p73 = scmp.ne.s32.totalorder %s65, %s67
    %p74 = scmp.eq.s32.totalorder %s15, 1
    %p75 = por %p73, %p74
    %p76 = scmp.ne.s32.totalorder %s67, %s68
    %p77 = scmp.eq.s32.totalorder %s15, 0
    %p78 = por %p76, %p77
    %p79 = scmp.ne.s32.totalorder %s67, %s68
    %p80 = scmp.eq.s32.totalorder %s16, 1
    %p81 = por %p79, %p80
    %p83 = scmp.ne.s32.totalorder %s68, %s82
    %p84 = scmp.eq.s32.totalorder %s16, 0
    %p85 = por %p83, %p84
    %s87 = sadd.s32 %s86, 1
    %p90 = scmp.eq.s32.totalorder %s10, 1
    %p91 = scmp.ne.s32.totalorder %s86, %s88
    %p92 = scmp.eq.s32.totalorder %s10, 0
    %p93 = por %p91, %p92
    %p94 = scmp.ne.s32.totalorder %s86, %s88
    %p95 = scmp.eq.s32.totalorder %s15, 1
    %p96 = por %p94, %p95
    %p97 = scmp.ne.s32.totalorder %s88, %s89
    %p98 = scmp.eq.s32.totalorder %s15, 0
    %p99 = por %p97, %p98
    %p100 = scmp.ne.s32.totalorder %s88, %s89
    %p101 = scmp.eq.s32.totalorder %s16, 1
    %p102 = por %p100, %p101
    %p104 = scmp.ne.s32.totalorder %s89, %s103
    %p105 = scmp.eq.s32.totalorder %s16, 0
    %p106 = por %p104, %p105
    %s107 = ssub.s32 %s10, %s17
    %p108 = scmp.eq.s32.totalorder %s107, 0
    %s110 = sadd.s32 %s109, 1
    %s111 = scalar_select %p108, %s109, %s110
    %p114 = pneg %p108
    %p115 = scmp.eq.s32.totalorder %s10, 1
    %p116 = por %p114, %p115
    %p117 = scmp.ne.s32.totalorder %s109, %s112
    %p118 = scmp.eq.s32.totalorder %s10, 0
    %p119 = por %p117, %p118
    %p120 = scmp.ne.s32.totalorder %s109, %s112
    %p121 = scmp.eq.s32.totalorder %s15, 1
    %p122 = por %p120, %p121
    %p123 = scmp.ne.s32.totalorder %s112, %s113
    %p124 = scmp.eq.s32.totalorder %s15, 0
    %p125 = por %p123, %p124
    %p126 = scmp.ne.s32.totalorder %s112, %s113
    %p127 = scmp.eq.s32.totalorder %s16, 1
    %p128 = por %p126, %p127
    %p130 = scmp.ne.s32.totalorder %s113, %s129
    %p131 = scmp.eq.s32.totalorder %s16, 0
    %p132 = por %p130, %p131
    %p133 = scmp.le.s32.totalorder 1, %s10
    %p134 = scmp.lt.s32.totalorder %s10, 3
    %p135 = pnand %p133, %p134
    %p136 = pneg %p135
    // Predicated region
    $region9: #{erfnet_ae_forward.218} parent=5 // pred_check
      _
    $region10: #{erfnet_ae_forward.218} parent=5 // pred_check_branch
      %138 = sbr.rel (%p135) target = $region12
    $region11: #{erfnet_ae_forward.218} parent=5 // pred_region
      %s139 = ssub.s32 %s10, 1
      // Predicated region
      $region13: #{erfnet_ae_forward.218} parent=11 // pred_check
        %p140 = pneg %p57
      $region14: #{erfnet_ae_forward.218} parent=11 // pred_check_branch
        %142 = sbr.rel (%p140) target = $region16
      $region15: #{erfnet_ae_forward.218} parent=11 // pred_region
        _
      $region16: #{erfnet_ae_forward.218} parent=11 // pred_fallthru
        _
      // Predicated region
      $region17: #{erfnet_ae_forward.218} parent=11 // pred_check
        %p143 = pneg %p78
      $region18: #{erfnet_ae_forward.218} parent=11 // pred_check_branch
        %145 = sbr.rel (%p143) target = $region20
      $region19: #{erfnet_ae_forward.218} parent=11 // pred_region
        _
      $region20: #{erfnet_ae_forward.218} parent=11 // pred_fallthru
        _
      // Predicated region
      $region21: #{erfnet_ae_forward.218} parent=11 // pred_check
        %p146 = pneg %p99
      $region22: #{erfnet_ae_forward.218} parent=11 // pred_check_branch
        %148 = sbr.rel (%p146) target = $region24
      $region23: #{erfnet_ae_forward.218} parent=11 // pred_region
        _
      $region24: #{erfnet_ae_forward.218} parent=11 // pred_fallthru
        _
    $region12: #{erfnet_ae_forward.218} parent=5 // pred_fallthru
      _
    %p149 = scmp.lt.s32.totalorder %s10, 2
    // Predicated region
    $region25: #{erfnet_ae_forward.218} parent=5 // pred_check
      %p150 = pneg %p149
    $region26: #{erfnet_ae_forward.218} parent=5 // pred_check_branch
      %152 = sbr.rel (%p150) target = $region28
    $region27: #{erfnet_ae_forward.218} parent=5 // pred_region
      // Predicated region
      $region29: #{erfnet_ae_forward.218} parent=27 // pred_check
        %p153 = pneg %p30
      $region30: #{erfnet_ae_forward.218} parent=27 // pred_check_branch
        %155 = sbr.rel (%p153) target = $region32
      $region31: #{erfnet_ae_forward.218} parent=27 // pred_region
        %s156 = smul.u32 8, %s10
        %p157 = scmp.lt.s32.totalorder %s156, 15
        %s158 = scalar_select %p157, %s156, 15
        %s159 = smul.addr %s158, 5
        %s160 = smul.addr %s159, 4
        %s161 = scalar_lea.vmem %s0, %s160
        %s162 = smul.u32 8, %s10
      $region32: #{erfnet_ae_forward.218} parent=27 // pred_fallthru
        _
    $region28: #{erfnet_ae_forward.218} parent=5 // pred_fallthru
      _
    %p163 = scmp.le.s32.totalorder 1, %s10
    %p164 = scmp.lt.s32.totalorder %s10, 3
    %p165 = pnand %p163, %p164
    %p166 = pneg %p165
    // Predicated region
    $region33: #{erfnet_ae_forward.218} parent=5 // pred_check
      _
    $region34: #{erfnet_ae_forward.218} parent=5 // pred_check_branch
      %168 = sbr.rel (%p165) target = $region36
    $region35: #{erfnet_ae_forward.218} parent=5 // pred_region
      %s169 = ssub.s32 %s10, 1
      %s170 = smul.u32 8, %s15
      %p171 = scmp.lt.s32.totalorder %s170, 15
      %s172 = scalar_select %p171, %s170, 15
      %s173 = smul.addr %s172, 5
      %s174 = smul.addr %s173, 4
      %s175 = scalar_lea.vmem %s0, %s174
      %p176 = pneg %p36
      %p177 = pneg %p33
      %p178 = pneg %p57
      %p179 = pneg %p54
      %p180 = pneg %p78
      %p181 = pneg %p75
      %p182 = pneg %p99
      %p183 = pneg %p96
      %p184 = pneg %p125
      %p185 = pneg %p122
      %s186 = smul.u32 8, %s15
      %p187 = scmp.lt.s32.totalorder %s186, 15
      %s188 = scalar_select %p187, %s186, 15
      %s189 = smul.addr %s188, 8
      %s190 = scalar_lea.vmem %s4, %s189
      %s191 = smul.u32 8, %s15
      %p192 = scmp.lt.s32.totalorder %s191, 15
      %s193 = scalar_select %p192, %s191, 15
      %s194 = smul.addr %s193, 5
      %s195 = smul.addr %s194, 4
      %s196 = scalar_lea.vmem %s0, %s195
      %s197 = smul.u32 8, %s15
      %s198 = smul.u32 8, %s15
      %p199 = scmp.lt.s32.totalorder %s198, 15
      %s200 = scalar_select %p199, %s198, 15
      %s201 = smul.addr %s200, 8
      %s202 = scalar_lea.vmem %s4, %s201
      %s203 = smul.u32 8, %s15
      %v205 = vld [vmem:[%s196] sm:$0xff]
      %v206 = vld [vmem:[%s196 + $0x8] sm:$0xff]
      %v207 = vld [vmem:[%s196 + $0x10] sm:$0xf]
      %v208 = vld [vmem:[%s196 + $0x14] sm:$0xff]
      %v209 = vld [vmem:[%s196 + $0x1c] sm:$0xff]
      %v210 = vld [vmem:[%s196 + $0x24] sm:$0xf]
      %v211 = vld [vmem:[%s196 + $0x28] sm:$0xff]
      %v212 = vld [vmem:[%s196 + $0x30] sm:$0xff]
      %v213 = vld [vmem:[%s196 + $0x38] sm:$0xf]
      %v214 = vld [vmem:[%s196 + $0x3c] sm:$0xff]
      %v215 = vld [vmem:[%s196 + $0x44] sm:$0xff]
      %v216 = vld [vmem:[%s196 + $0x4c] sm:$0xf]
      %v217 = vld [vmem:[%s196 + $0x50] sm:$0xff]
      %v218 = vld [vmem:[%s196 + $0x58] sm:$0xff]
      %v219 = vld [vmem:[%s196 + $0x60] sm:$0xf]
      %v220 = vld [vmem:[%s196 + $0x64] sm:$0xff]
      %v221 = vld [vmem:[%s196 + $0x6c] sm:$0xff]
      %v222 = vld [vmem:[%s196 + $0x74] sm:$0xf]
      %v223 = vld [vmem:[%s196 + $0x78] sm:$0xff]
      %v224 = vld [vmem:[%s196 + $0x80] sm:$0xff]
      %v225 = vld [vmem:[%s196 + $0x88] sm:$0xf]
      %v226 = vld [vmem:[%s196 + $0x8c] sm:$0xff]
      %v227 = vld [vmem:[%s196 + $0x94] sm:$0xff]
      %v228 = vld [vmem:[%s196 + $0x9c] sm:$0xf]
      %v229 = vld [vmem:[%s1] sm:$0xf]
      %v230 = vld [vmem:[%s1 + $0x4] sm:$0xf]
      %v231 = vld [vmem:[%s1 + $0x8] sm:$0xf]
      %v232 = vld [vmem:[%s1 + $0xc] sm:$0xf]
      %v233 = vld [vmem:[%s1 + $0x10] sm:$0xf]
      %v234 = vld [vmem:[%s1 + $0x14] sm:$0xf]
      %v235 = vld [vmem:[%s1 + $0x18] sm:$0xf]
      %v236 = vld [vmem:[%s1 + $0x1c] sm:$0xf]
      %v237 = vld [vmem:[%s1 + $0x20] sm:$0xf]
      %v238 = vld [vmem:[%s1 + $0x24] sm:$0xf]
      %v239 = vld [vmem:[%s1 + $0x28] sm:$0xf]
      %v240 = vld [vmem:[%s1 + $0x2c] sm:$0xf]
      %v241 = vld [vmem:[%s1 + $0x30] sm:$0xf]
      %v242 = vld [vmem:[%s1 + $0x34] sm:$0xf]
      %v243 = vld [vmem:[%s1 + $0x38] sm:$0xf]
      %v244 = vld [vmem:[%s1 + $0x3c] sm:$0xf]
      %v245 = vld [vmem:[%s1 + $0x40] sm:$0xf]
      %v246 = vld [vmem:[%s1 + $0x44] sm:$0xf]
      %v247 = vld [vmem:[%s1 + $0x48] sm:$0xf]
      %v248 = vld [vmem:[%s1 + $0x4c] sm:$0xf]
      %v249 = vld [vmem:[%s1 + $0x50] sm:$0xf]
      %v250 = vld [vmem:[%s1 + $0x54] sm:$0xf]
      %v251 = vld [vmem:[%s1 + $0x58] sm:$0xf]
      %v252 = vld [vmem:[%s1 + $0x5c] sm:$0xf]
      %v253 = vld [vmem:[%s1 + $0x60] sm:$0xf]
      %v254 = vld [vmem:[%s1 + $0x64] sm:$0xf]
      %v255 = vld [vmem:[%s1 + $0x68] sm:$0xf]
      %v256 = vld [vmem:[%s1 + $0x6c] sm:$0xf]
      %v257 = vld [vmem:[%s1 + $0x70] sm:$0xf]
      %v258 = vld [vmem:[%s1 + $0x74] sm:$0xf]
      %v259 = vld [vmem:[%s1 + $0x78] sm:$0xf]
      %v260 = vld [vmem:[%s1 + $0x7c] sm:$0xf]
      %v261 = vld [vmem:[%s1 + $0x80] sm:$0xf]
      %v262 = vld [vmem:[%s1 + $0x84] sm:$0xf]
      %v263 = vld [vmem:[%s1 + $0x88] sm:$0xf]
      %v264 = vld [vmem:[%s1 + $0x8c] sm:$0xf]
      %v265 = vld [vmem:[%s1 + $0x90] sm:$0xf]
      %v266 = vld [vmem:[%s1 + $0x94] sm:$0xf]
      %v267 = vld [vmem:[%s1 + $0x98] sm:$0xf]
      %v268 = vld [vmem:[%s1 + $0x9c] sm:$0xf]
      %v269 = vld [vmem:[%s1 + $0xa0] sm:$0xf]
      %v270 = vld [vmem:[%s1 + $0xa4] sm:$0xf]
      %v271 = vld [vmem:[%s1 + $0xa8] sm:$0xf]
      %v272 = vld [vmem:[%s1 + $0xac] sm:$0xf]
      %v273 = vld [vmem:[%s1 + $0xb0] sm:$0xf]
      %v274 = vld [vmem:[%s1 + $0xb4] sm:$0xf]
      %v275 = vld [vmem:[%s1 + $0xb8] sm:$0xf]
      %v276 = vld [vmem:[%s1 + $0xbc] sm:$0xf]
      %v277 = vld [vmem:[%s1 + $0xc0] sm:$0xf]
      %v278 = vld [vmem:[%s1 + $0xc4] sm:$0xf]
      %v279 = vld [vmem:[%s1 + $0xc8] sm:$0xf]
      %v280 = vld [vmem:[%s1 + $0xcc] sm:$0xf]
      %v281 = vld [vmem:[%s1 + $0xd0] sm:$0xf]
      %v282 = vld [vmem:[%s1 + $0xd4] sm:$0xf]
      %v283 = vld [vmem:[%s1 + $0xd8] sm:$0xf]
      %v284 = vld [vmem:[%s1 + $0xdc] sm:$0xf]
      %v285 = vld [vmem:[%s1 + $0xe0] sm:$0xf]
      %v286 = vld [vmem:[%s1 + $0xe4] sm:$0xf]
      %v287 = vld [vmem:[%s1 + $0xe8] sm:$0xf]
      %v288 = vld [vmem:[%s1 + $0xec] sm:$0xf]
      %v289 = vld [vmem:[%s1 + $0xf0] sm:$0xf]
      %v290 = vld [vmem:[%s1 + $0xf4] sm:$0xf]
      %v291 = vld [vmem:[%s1 + $0xf8] sm:$0xf]
      %v292 = vld [vmem:[%s1 + $0xfc] sm:$0xf]
      %v293 = vld [vmem:[%s1 + $0x100] sm:$0xf]
      %v294 = vld [vmem:[%s1 + $0x104] sm:$0xf]
      %v295 = vld [vmem:[%s1 + $0x108] sm:$0xf]
      %v296 = vld [vmem:[%s1 + $0x10c] sm:$0xf]
      %v297 = vld [vmem:[%s1 + $0x110] sm:$0xf]
      %v298 = vld [vmem:[%s1 + $0x114] sm:$0xf]
      %v299 = vld [vmem:[%s1 + $0x118] sm:$0xf]
      %v300 = vld [vmem:[%s1 + $0x11c] sm:$0xf]
      %v325 = vunpack.c.l.b16 %v205
      %v326 = vunpack.c.h.b16 %v205
      %v327 = vunpack.c.l.b16 %v206
      %v328 = vunpack.c.h.b16 %v206
      %v329 = vunpack.c.l.b16 %v207
      %v330 = vunpack.c.l.b16 %v208
      %v331 = vunpack.c.h.b16 %v208
      %v332 = vunpack.c.l.b16 %v209
      %v333 = vunpack.c.h.b16 %v209
      %v334 = vunpack.c.l.b16 %v210
      %v335 = vunpack.c.l.b16 %v211
      %v336 = vunpack.c.h.b16 %v211
      %v337 = vunpack.c.l.b16 %v212
      %v338 = vunpack.c.h.b16 %v212
      %v339 = vunpack.c.l.b16 %v213
      %v340 = vunpack.c.l.b16 %v214
      %v341 = vunpack.c.h.b16 %v214
      %v342 = vunpack.c.l.b16 %v215
      %v343 = vunpack.c.h.b16 %v215
      %v344 = vunpack.c.l.b16 %v216
      %v345 = vunpack.c.l.b16 %v217
      %v346 = vunpack.c.h.b16 %v217
      %v347 = vunpack.c.l.b16 %v218
      %v348 = vunpack.c.h.b16 %v218
      %v349 = vunpack.c.l.b16 %v219
      %v350 = vunpack.c.l.b16 %v220
      %v351 = vunpack.c.h.b16 %v220
      %v352 = vunpack.c.l.b16 %v221
      %v353 = vunpack.c.h.b16 %v221
      %v354 = vunpack.c.l.b16 %v222
      %v355 = vunpack.c.l.b16 %v223
      %v356 = vunpack.c.h.b16 %v223
      %v357 = vunpack.c.l.b16 %v224
      %v358 = vunpack.c.h.b16 %v224
      %v359 = vunpack.c.l.b16 %v225
      %v360 = vunpack.c.l.b16 %v226
      %v361 = vunpack.c.h.b16 %v226
      %v362 = vunpack.c.l.b16 %v227
      %v363 = vunpack.c.h.b16 %v227
      %v364 = vunpack.c.l.b16 %v228
      %v365 = vpack.c.b16 %v330, %v325
      %v366 = vpack.c.b16 %v331, %v326
      %v367 = vpack.c.b16 %v332, %v327
      %v368 = vpack.c.b16 %v333, %v328
      %v369 = vpack.c.b16 %v334, %v329
      %v370 = vpack.c.b16 %v340, %v335
      %v371 = vpack.c.b16 %v341, %v336
      %v372 = vpack.c.b16 %v342, %v337
      %v373 = vpack.c.b16 %v343, %v338
      %v374 = vpack.c.b16 %v344, %v339
      %v375 = vpack.c.b16 %v350, %v345
      %v376 = vpack.c.b16 %v351, %v346
      %v377 = vpack.c.b16 %v352, %v347
      %v378 = vpack.c.b16 %v353, %v348
      %v379 = vpack.c.b16 %v354, %v349
      %v380 = vpack.c.b16 %v360, %v355
      %v381 = vpack.c.b16 %v361, %v356
      %v382 = vpack.c.b16 %v362, %v357
      %v383 = vpack.c.b16 %v363, %v358
      %v384 = vpack.c.b16 %v364, %v359
      %v473 = vunpack.c.l.b16 %v229
      %v474 = vunpack.c.l.b16 %v230
      %v475 = vunpack.c.l.b16 %v231
      %v476 = vunpack.c.l.b16 %v232
      %v477 = vunpack.c.l.b16 %v233
      %v478 = vunpack.c.l.b16 %v234
      %v479 = vunpack.c.l.b16 %v235
      %v480 = vunpack.c.l.b16 %v236
      %v481 = vunpack.c.l.b16 %v237
      %v482 = vunpack.c.l.b16 %v238
      %v483 = vunpack.c.l.b16 %v239
      %v484 = vunpack.c.l.b16 %v240
      %v485 = vunpack.c.l.b16 %v241
      %v486 = vunpack.c.l.b16 %v242
      %v487 = vunpack.c.l.b16 %v243
      %v488 = vunpack.c.l.b16 %v244
      %v489 = vunpack.c.l.b16 %v245
      %v490 = vunpack.c.l.b16 %v246
      %v491 = vunpack.c.l.b16 %v247
      %v492 = vunpack.c.l.b16 %v248
      %v493 = vunpack.c.l.b16 %v249
      %v494 = vunpack.c.l.b16 %v250
      %v495 = vunpack.c.l.b16 %v251
      %v496 = vunpack.c.l.b16 %v252
      %v497 = vunpack.c.l.b16 %v253
      %v498 = vunpack.c.l.b16 %v254
      %v499 = vunpack.c.l.b16 %v255
      %v500 = vunpack.c.l.b16 %v256
      %v501 = vunpack.c.l.b16 %v257
      %v502 = vunpack.c.l.b16 %v258
      %v503 = vunpack.c.l.b16 %v259
      %v504 = vunpack.c.l.b16 %v260
      %v505 = vunpack.c.l.b16 %v261
      %v506 = vunpack.c.l.b16 %v262
      %v507 = vunpack.c.l.b16 %v263
      %v508 = vunpack.c.l.b16 %v264
      %v509 = vunpack.c.l.b16 %v265
      %v510 = vunpack.c.l.b16 %v266
      %v511 = vunpack.c.l.b16 %v267
      %v512 = vunpack.c.l.b16 %v268
      %v513 = vunpack.c.l.b16 %v269
      %v514 = vunpack.c.l.b16 %v270
      %v515 = vunpack.c.l.b16 %v271
      %v516 = vunpack.c.l.b16 %v272
      %v517 = vunpack.c.l.b16 %v273
      %v518 = vunpack.c.l.b16 %v274
      %v519 = vunpack.c.l.b16 %v275
      %v520 = vunpack.c.l.b16 %v276
      %v521 = vunpack.c.l.b16 %v277
      %v522 = vunpack.c.l.b16 %v278
      %v523 = vunpack.c.l.b16 %v279
      %v524 = vunpack.c.l.b16 %v280
      %v525 = vunpack.c.l.b16 %v281
      %v526 = vunpack.c.l.b16 %v282
      %v527 = vunpack.c.l.b16 %v283
      %v528 = vunpack.c.l.b16 %v284
      %v529 = vunpack.c.l.b16 %v285
      %v530 = vunpack.c.l.b16 %v286
      %v531 = vunpack.c.l.b16 %v287
      %v532 = vunpack.c.l.b16 %v288
      %v533 = vunpack.c.l.b16 %v289
      %v534 = vunpack.c.l.b16 %v290
      %v535 = vunpack.c.l.b16 %v291
      %v536 = vunpack.c.l.b16 %v292
      %v537 = vunpack.c.l.b16 %v293
      %v538 = vunpack.c.l.b16 %v294
      %v539 = vunpack.c.l.b16 %v295
      %v540 = vunpack.c.l.b16 %v296
      %v541 = vunpack.c.l.b16 %v297
      %v542 = vunpack.c.l.b16 %v298
      %v543 = vunpack.c.l.b16 %v299
      %v544 = vunpack.c.l.b16 %v300
      %v545 = vpack.c.b16 %v474, %v473
      %v546 = vpack.c.b16 %v476, %v475
      %v547 = vpack.c.b16 %v478, %v477
      %v548 = vpack.c.b16 %v480, %v479
      %v549 = vpack.c.b16 %v482, %v481
      %v550 = vpack.c.b16 %v484, %v483
      %v551 = vpack.c.b16 %v486, %v485
      %v552 = vpack.c.b16 %v488, %v487
      %v553 = vpack.c.b16 %v490, %v489
      %v554 = vpack.c.b16 %v492, %v491
      %v555 = vpack.c.b16 %v494, %v493
      %v556 = vpack.c.b16 %v496, %v495
      %v557 = vpack.c.b16 %v498, %v497
      %v558 = vpack.c.b16 %v500, %v499
      %v559 = vpack.c.b16 %v502, %v501
      %v560 = vpack.c.b16 %v504, %v503
      %v561 = vpack.c.b16 %v506, %v505
      %v562 = vpack.c.b16 %v508, %v507
      %v563 = vpack.c.b16 %v510, %v509
      %v564 = vpack.c.b16 %v512, %v511
      %v565 = vpack.c.b16 %v514, %v513
      %v566 = vpack.c.b16 %v516, %v515
      %v567 = vpack.c.b16 %v518, %v517
      %v568 = vpack.c.b16 %v520, %v519
      %v569 = vpack.c.b16 %v522, %v521
      %v570 = vpack.c.b16 %v524, %v523
      %v571 = vpack.c.b16 %v526, %v525
      %v572 = vpack.c.b16 %v528, %v527
      %v573 = vpack.c.b16 %v530, %v529
      %v574 = vpack.c.b16 %v532, %v531
      %v575 = vpack.c.b16 %v534, %v533
      %v576 = vpack.c.b16 %v536, %v535
      %v577 = vpack.c.b16 %v538, %v537
      %v578 = vpack.c.b16 %v540, %v539
      %v579 = vpack.c.b16 %v542, %v541
      %v580 = vpack.c.b16 %v544, %v543
      %vm617 = vcmask 523264
      %v619 = vsel %vm617, %v369, 0
      %v622 = vsel %vm617, %v374, 0
      %v625 = vsel %vm617, %v379, 0
      %v628 = vsel %vm617, %v384, 0
      %630 = vmatprep.subr.bf16.mxu0 0
      %631 = vmatpush1.bf16.msra.mxu0 %v552
      %632 = vmatprep.subr.bf16.mxu0 0
      %633 = vmatpush1.bf16.msra.mxu0 %v551
      %634 = vmatprep.subr.bf16.mxu0 0
      %635 = vmatpush1.bf16.msra.mxu0 %v550
      %636 = vmatprep.subr.bf16.mxu0 0
      %637 = vmatpush1.bf16.msra.mxu0 %v549
      %638 = vmatprep.subr.bf16.mxu0 0
      %639 = vmatpush1.bf16.msra.mxu0 %v548
      %640 = vmatprep.subr.bf16.mxu0 0
      %641 = vmatpush1.bf16.msra.mxu0 %v547
      %642 = vmatprep.subr.bf16.mxu0 0
      %643 = vmatpush1.bf16.msra.mxu0 %v546
      %644 = vmatprep.subr.bf16.mxu0 0
      %645 = vmatpush1.bf16.msra.mxu0 %v545
      %646 = vmatprep.subr.bf16.mxu0 0
      %647 = vmatpush2.bf16.msra.mxu0 %v560
      %648 = vmatprep.subr.bf16.mxu0 0
      %649 = vmatpush2.bf16.msra.mxu0 %v559
      %650 = vmatprep.subr.bf16.mxu0 0
      %651 = vmatpush2.bf16.msra.mxu0 %v558
      %652 = vmatprep.subr.bf16.mxu0 0
      %653 = vmatpush2.bf16.msra.mxu0 %v557
      %654 = vmatprep.subr.bf16.mxu0 0
      %655 = vmatpush2.bf16.msra.mxu0 %v556
      %656 = vmatprep.subr.bf16.mxu0 0
      %657 = vmatpush2.bf16.msra.mxu0 %v555
      %658 = vmatprep.subr.bf16.mxu0 0
      %659 = vmatpush2.bf16.msra.mxu0 %v554
      %660 = vmatprep.subr.bf16.mxu0 0
      %661 = vmatpush2.bf16.msra.mxu0 %v553
      %662 = vmatprep.mubr.bf16.mxu0 %v366
      %663 = vmatmul.mubr.bf16.gmra.mxu0 %v365
      %v664 = vpop.f32.mrf.mxu0
      %v665 = vadd.f32 0.0, %v664
      %v666 = vpop.f32.mrf.mxu0
      %v667 = vpop.f32.mrf.mxu0
      %v668 = vadd.f32 0.0, %v667
      %v669 = vpop.f32.mrf.mxu0
      %670 = vmatprep.mubr.bf16.mxu0 %v371
      %671 = vmatmul.mubr.bf16.gmra.mxu0 %v370
      %v672 = vpop.f32.mrf.mxu0
      %v673 = vadd.f32 0.0, %v672
      %v674 = vpop.f32.mrf.mxu0
      %v675 = vpop.f32.mrf.mxu0
      %v676 = vadd.f32 0.0, %v675
      %v677 = vpop.f32.mrf.mxu0
      %678 = vmatprep.mubr.bf16.mxu0 %v376
      %679 = vmatmul.mubr.bf16.gmra.mxu0 %v375
      %v680 = vpop.f32.mrf.mxu0
      %v681 = vadd.f32 0.0, %v680
      %v682 = vpop.f32.mrf.mxu0
      %v683 = vpop.f32.mrf.mxu0
      %v684 = vadd.f32 0.0, %v683
      %v685 = vpop.f32.mrf.mxu0
      %686 = vmatprep.mubr.bf16.mxu0 %v381
      %687 = vmatmul.mubr.bf16.gmra.mxu0 %v380
      %v688 = vpop.f32.mrf.mxu0
      %v689 = vadd.f32 0.0, %v688
      %v690 = vpop.f32.mrf.mxu0
      %v691 = vpop.f32.mrf.mxu0
      %v692 = vadd.f32 0.0, %v691
      %v693 = vpop.f32.mrf.mxu0
      %694 = vdwg.mxu0
      %695 = vmatprep.subr.bf16.mxu0 0
      %696 = vmatpush1.bf16.msra.mxu0 %v568
      %697 = vmatprep.subr.bf16.mxu0 0
      %698 = vmatpush1.bf16.msra.mxu0 %v567
      %699 = vmatprep.subr.bf16.mxu0 0
      %700 = vmatpush1.bf16.msra.mxu0 %v566
      %701 = vmatprep.subr.bf16.mxu0 0
      %702 = vmatpush1.bf16.msra.mxu0 %v565
      %703 = vmatprep.subr.bf16.mxu0 0
      %704 = vmatpush1.bf16.msra.mxu0 %v564
      %705 = vmatprep.subr.bf16.mxu0 0
      %706 = vmatpush1.bf16.msra.mxu0 %v563
      %707 = vmatprep.subr.bf16.mxu0 0
      %708 = vmatpush1.bf16.msra.mxu0 %v562
      %709 = vmatprep.subr.bf16.mxu0 0
      %710 = vmatpush1.bf16.msra.mxu0 %v561
      %711 = vmatprep.subr.bf16.mxu0 0
      %712 = vmatpush2.bf16.msra.mxu0 %v576
      %713 = vmatprep.subr.bf16.mxu0 0
      %714 = vmatpush2.bf16.msra.mxu0 %v575
      %715 = vmatprep.subr.bf16.mxu0 0
      %716 = vmatpush2.bf16.msra.mxu0 %v574
      %717 = vmatprep.subr.bf16.mxu0 0
      %718 = vmatpush2.bf16.msra.mxu0 %v573
      %719 = vmatprep.subr.bf16.mxu0 0
      %720 = vmatpush2.bf16.msra.mxu0 %v572
      %721 = vmatprep.subr.bf16.mxu0 0
      %722 = vmatpush2.bf16.msra.mxu0 %v571
      %723 = vmatprep.subr.bf16.mxu0 0
      %724 = vmatpush2.bf16.msra.mxu0 %v570
      %725 = vmatprep.subr.bf16.mxu0 0
      %726 = vmatpush2.bf16.msra.mxu0 %v569
      %727 = vmatprep.mubr.bf16.mxu0 %v368
      %728 = vmatmul.mubr.bf16.gmra.mxu0 %v367
      %v729 = vpop.f32.mrf.mxu0
      %v730 = vadd.f32 %v665, %v729
      %v731 = vpop.f32.mrf.mxu0
      %v732 = vpop.f32.mrf.mxu0
      %v733 = vadd.f32 %v668, %v732
      %v734 = vpop.f32.mrf.mxu0
      %735 = vmatprep.mubr.bf16.mxu0 %v373
      %736 = vmatmul.mubr.bf16.gmra.mxu0 %v372
      %v737 = vpop.f32.mrf.mxu0
      %v738 = vadd.f32 %v673, %v737
      %v739 = vpop.f32.mrf.mxu0
      %v740 = vpop.f32.mrf.mxu0
      %v741 = vadd.f32 %v676, %v740
      %v742 = vpop.f32.mrf.mxu0
      %743 = vmatprep.mubr.bf16.mxu0 %v378
      %744 = vmatmul.mubr.bf16.gmra.mxu0 %v377
      %v745 = vpop.f32.mrf.mxu0
      %v746 = vadd.f32 %v681, %v745
      %v747 = vpop.f32.mrf.mxu0
      %v748 = vpop.f32.mrf.mxu0
      %v749 = vadd.f32 %v684, %v748
      %v750 = vpop.f32.mrf.mxu0
      %751 = vmatprep.mubr.bf16.mxu0 %v383
      %752 = vmatmul.mubr.bf16.gmra.mxu0 %v382
      %v753 = vpop.f32.mrf.mxu0
      %v754 = vadd.f32 %v689, %v753
      %v755 = vpop.f32.mrf.mxu0
      %v756 = vpop.f32.mrf.mxu0
      %v757 = vadd.f32 %v692, %v756
      %v758 = vpop.f32.mrf.mxu0
      %759 = vdwg.mxu0
      %760 = vmatprep.subr.bf16.mxu0 0
      %761 = vmatpush1.bf16.msra.mxu0 0
      %762 = vmatprep.subr.bf16.mxu0 0
      %763 = vmatpush1.bf16.msra.mxu0 0
      %764 = vmatprep.subr.bf16.mxu0 0
      %765 = vmatpush1.bf16.msra.mxu0 0
      %766 = vmatprep.subr.bf16.mxu0 0
      %767 = vmatpush1.bf16.msra.mxu0 0
      %768 = vmatprep.subr.bf16.mxu0 0
      %769 = vmatpush1.bf16.msra.mxu0 %v580
      %770 = vmatprep.subr.bf16.mxu0 0
      %771 = vmatpush1.bf16.msra.mxu0 %v579
      %772 = vmatprep.subr.bf16.mxu0 0
      %773 = vmatpush1.bf16.msra.mxu0 %v578
      %774 = vmatprep.subr.bf16.mxu0 0
      %775 = vmatpush1.bf16.msra.mxu0 %v577
      %776 = vmatprep.subr.bf16.mxu0 0
      %777 = vmatpush2.bf16.msra.mxu0 0
      %778 = vmatprep.subr.bf16.mxu0 0
      %779 = vmatpush2.bf16.msra.mxu0 0
      %780 = vmatprep.subr.bf16.mxu0 0
      %781 = vmatpush2.bf16.msra.mxu0 0
      %782 = vmatprep.subr.bf16.mxu0 0
      %783 = vmatpush2.bf16.msra.mxu0 0
      %784 = vmatprep.subr.bf16.mxu0 0
      %785 = vmatpush2.bf16.msra.mxu0 0
      %786 = vmatprep.subr.bf16.mxu0 0
      %787 = vmatpush2.bf16.msra.mxu0 0
      %788 = vmatprep.subr.bf16.mxu0 0
      %789 = vmatpush2.bf16.msra.mxu0 0
      %790 = vmatprep.subr.bf16.mxu0 0
      %791 = vmatpush2.bf16.msra.mxu0 0
      %792 = vmatprep.mubr.bf16.mxu0 0
      %793 = vmatmul.mubr.bf16.gmra.mxu0 %v619
      %v794 = vpop.f32.mrf.mxu0
      %v795 = vadd.f32 %v730, %v794
      %v796 = vpop.f32.mrf.mxu0
      %v797 = vpop.f32.mrf.mxu0
      %v798 = vadd.f32 %v733, %v797
      %v799 = vpop.f32.mrf.mxu0
      %800 = vmatprep.mubr.bf16.mxu0 0
      %801 = vmatmul.mubr.bf16.gmra.mxu0 %v622
      %v802 = vpop.f32.mrf.mxu0
      %v803 = vadd.f32 %v738, %v802
      %v804 = vpop.f32.mrf.mxu0
      %v805 = vpop.f32.mrf.mxu0
      %v806 = vadd.f32 %v741, %v805
      %v807 = vpop.f32.mrf.mxu0
      %808 = vmatprep.mubr.bf16.mxu0 0
      %809 = vmatmul.mubr.bf16.gmra.mxu0 %v625
      %v810 = vpop.f32.mrf.mxu0
      %v811 = vadd.f32 %v746, %v810
      %v812 = vpop.f32.mrf.mxu0
      %v813 = vpop.f32.mrf.mxu0
      %v814 = vadd.f32 %v749, %v813
      %v815 = vpop.f32.mrf.mxu0
      %816 = vmatprep.mubr.bf16.mxu0 0
      %817 = vmatmul.mubr.bf16.gmra.mxu0 %v628
      %v818 = vpop.f32.mrf.mxu0
      %v819 = vadd.f32 %v754, %v818
      %v820 = vpop.f32.mrf.mxu0
      %v821 = vpop.f32.mrf.mxu0
      %v822 = vadd.f32 %v757, %v821
      %v823 = vpop.f32.mrf.mxu0
      %824 = vdwg.mxu0
      %v825 = vld [vmem:[%s2] sm:$0x1]
      %v827 = vlaneseq
      %v828 = vshrl.u32 %v827, 7
      %v829 = vsub.s32 0, %v828
      %v830 = vrot.slane %v825, %v829
      %v832 = vmul.f32 %v795, %v830
      %v833 = vmul.f32 %v798, %v830
      %v834 = vmul.f32 %v803, %v830
      %v835 = vmul.f32 %v806, %v830
      %v836 = vmul.f32 %v811, %v830
      %v837 = vmul.f32 %v814, %v830
      %v838 = vmul.f32 %v819, %v830
      %v839 = vmul.f32 %v822, %v830
      %v840 = vld [vmem:[%s3] sm:$0x1]
      %v842 = vlaneseq
      %v843 = vshrl.u32 %v842, 7
      %v844 = vsub.s32 0, %v843
      %v845 = vrot.slane %v840, %v844
      %v847 = vadd.f32 %v832, %v845
      %v848 = vadd.f32 %v833, %v845
      %v849 = vadd.f32 %v834, %v845
      %v850 = vadd.f32 %v835, %v845
      %v851 = vadd.f32 %v836, %v845
      %v852 = vadd.f32 %v837, %v845
      %v853 = vadd.f32 %v838, %v845
      %v854 = vadd.f32 %v839, %v845
      %v855 = vmax.f32 %v847, 0.0
      %v856 = vmax.f32 %v848, 0.0
      %v857 = vmax.f32 %v849, 0.0
      %v858 = vmax.f32 %v850, 0.0
      %v859 = vmax.f32 %v851, 0.0
      %v860 = vmax.f32 %v852, 0.0
      %v861 = vmax.f32 %v853, 0.0
      %v862 = vmax.f32 %v854, 0.0
      %863 = vst [vmem:[%s202] sm:$0xff] %v855
      %864 = vst [vmem:[%s202 + $0x8] sm:$0xff] %v856
      %865 = vst [vmem:[%s202 + $0x10] sm:$0xff] %v857
      %866 = vst [vmem:[%s202 + $0x18] sm:$0xff] %v858
      %867 = vst [vmem:[%s202 + $0x20] sm:$0xff] %v859
      %868 = vst [vmem:[%s202 + $0x28] sm:$0xff] %v860
      %869 = vst [vmem:[%s202 + $0x30] sm:$0xff] %v861
      %870 = vst [vmem:[%s202 + $0x38] sm:$0xff] %v862
      %s871 = smul.u32 8, %s15
      %p872 = scmp.lt.s32.totalorder %s871, 15
      %s873 = scalar_select %p872, %s871, 15
      %s874 = smul.addr %s873, 8
      %s875 = scalar_lea.vmem %s4, %s874
      // Predicated region
      $region37: #{erfnet_ae_forward.218} parent=35 // pred_check
        %p876 = pneg %p122
      $region38: #{erfnet_ae_forward.218} parent=35 // pred_check_branch
        %878 = sbr.rel (%p876) target = $region40
      $region39: #{erfnet_ae_forward.218} parent=35 // pred_region
        %s879 = smul.u32 8, %s15
      $region40: #{erfnet_ae_forward.218} parent=35 // pred_fallthru
        _
    $region36: #{erfnet_ae_forward.218} parent=5 // pred_fallthru
      _
    %p880 = scmp.le.s32.totalorder 2, %s10
    // Predicated region
    $region41: #{erfnet_ae_forward.218} parent=5 // pred_check
      %p881 = pneg %p880
    $region42: #{erfnet_ae_forward.218} parent=5 // pred_check_branch
      %883 = sbr.rel (%p881) target = $region44
    $region43: #{erfnet_ae_forward.218} parent=5 // pred_region
      %s884 = ssub.s32 %s10, 2
      // Predicated region
      $region45: #{erfnet_ae_forward.218} parent=43 // pred_check
        %p885 = pneg %p128
      $region46: #{erfnet_ae_forward.218} parent=43 // pred_check_branch
        %887 = sbr.rel (%p885) target = $region48
      $region47: #{erfnet_ae_forward.218} parent=43 // pred_region
        %s888 = smul.u32 8, %s16
        %p889 = scmp.lt.s32.totalorder %s888, 15
        %s890 = scalar_select %p889, %s888, 15
        %s891 = smul.addr %s890, 8
        %s892 = scalar_lea.vmem %s4, %s891
      $region48: #{erfnet_ae_forward.218} parent=43 // pred_fallthru
        _
    $region44: #{erfnet_ae_forward.218} parent=5 // pred_fallthru
      _
  $region6: #{erfnet_ae_forward.218} parent=0 // loop_footer
    %s14 = sadd.s32 1, %s10
  $region7: #{erfnet_ae_forward.218} parent=0 // loop_footer_branch
    %9 = sbr.rel target = $region3
  $region8: #{erfnet_ae_forward.218} parent=0 // loop_exit
    _

// kernel: erfnet_ae_forward.219
$region0: #{erfnet_ae_forward.219}
  #allocation0 [shape = 'u32[]', space=smem, size = 0x4, offset = 0x4, fixed_abs, tag = 'smem constant byte address 0x4 - core index']
  #allocation1 [shape = 'u32[144,128]{1,0:T(1,128)}', space=vmem, size = 0x12000, scoped, tag = 'internal scratch']
  %s0 = inlined_call_operand.vmem [shape: bf16[512,144], index: 0, kind: input, shape index: {}]
  %s1 = inlined_call_operand.vmem [shape: bf16[144,128], index: 1, kind: input, shape index: {}]
  %s2 = inlined_call_operand.vmem [shape: f32[1,128], index: 2, kind: input, shape index: {}]
  %s3 = inlined_call_operand.vmem [shape: f32[1,128], index: 3, kind: input, shape index: {}]
  %s4 = inlined_call_operand.vmem [shape: f32[512,128], index: 4, kind: output, shape index: {}]
  %s5 = sld [smem:[#allocation0]]
  $region49: #{erfnet_ae_forward.219} parent=0
    _
  %s7 = ssub.s32 1, %s5
  %s8 = scalar_select 0, %s7, %s5
  loop: start=0, step=1, limit=6
  $region2: #{erfnet_ae_forward.219} parent=0 // loop_pre_header
    _
  $region3: #{erfnet_ae_forward.219} parent=0 // loop_header
    %s10 = sphi 0, %s14
    %p11 = scmp.ge.s32.totalorder %s10, 6
    %s20 = sphi 0, %s22
    %s23 = sphi 0, %s20
    %s24 = sphi 0, %s23
    %s40 = sphi 0, %s24
    %s44 = sphi 0, %s44
    %s46 = sphi 0, %s44
    %s47 = sphi 0, %s46
    %s61 = sphi 0, %s47
    %s65 = sphi 0, %s65
    %s67 = sphi 0, %s65
    %s68 = sphi 0, %s67
    %s82 = sphi 0, %s68
    %s86 = sphi 0, %s86
    %s88 = sphi 0, %s86
    %s89 = sphi 0, %s88
    %s103 = sphi 0, %s89
    %s109 = sphi 0, %s111
    %s112 = sphi 0, %s109
    %s113 = sphi 0, %s112
    %s129 = sphi 0, %s113
  $region4: #{erfnet_ae_forward.219} parent=0 // loop_header_branch
    %13 = sbr.rel (%p11) target = $region8
  $region5: #{erfnet_ae_forward.219} parent=0 // loop_body
    %s15 = ssub.s32 %s10, 1
    %s16 = ssub.s32 %s10, 2
    %s17 = sadd.s32 %s10, 1
    %s18 = ssub.s32 %s10, %s17
    %p19 = scmp.eq.s32.totalorder %s18, 0
    %s21 = sadd.s32 %s20, 1
    %s22 = scalar_select %p19, %s20, %s21
    %p25 = pneg %p19
    %p26 = scmp.eq.s32.totalorder %s10, 3
    %p27 = por %p25, %p26
    %p28 = scmp.ne.s32.totalorder %s20, %s23
    %p29 = scmp.eq.s32.totalorder %s10, 0
    %p30 = por %p28, %p29
    %p31 = scmp.ne.s32.totalorder %s20, %s23
    %p32 = scmp.eq.s32.totalorder %s15, 3
    %p33 = por %p31, %p32
    %p34 = scmp.ne.s32.totalorder %s23, %s24
    %p35 = scmp.eq.s32.totalorder %s15, 0
    %p36 = por %p34, %p35
    %p37 = scmp.ne.s32.totalorder %s23, %s24
    %p38 = scmp.eq.s32.totalorder %s16, 3
    %p39 = por %p37, %p38
    %p41 = scmp.ne.s32.totalorder %s24, %s40
    %p42 = scmp.eq.s32.totalorder %s16, 0
    %p43 = por %p41, %p42
    %s45 = sadd.s32 %s44, 1
    %p48 = scmp.eq.s32.totalorder %s10, 3
    %p49 = scmp.ne.s32.totalorder %s44, %s46
    %p50 = scmp.eq.s32.totalorder %s10, 0
    %p51 = por %p49, %p50
    %p52 = scmp.ne.s32.totalorder %s44, %s46
    %p53 = scmp.eq.s32.totalorder %s15, 3
    %p54 = por %p52, %p53
    %p55 = scmp.ne.s32.totalorder %s46, %s47
    %p56 = scmp.eq.s32.totalorder %s15, 0
    %p57 = por %p55, %p56
    %p58 = scmp.ne.s32.totalorder %s46, %s47
    %p59 = scmp.eq.s32.totalorder %s16, 3
    %p60 = por %p58, %p59
    %p62 = scmp.ne.s32.totalorder %s47, %s61
    %p63 = scmp.eq.s32.totalorder %s16, 0
    %p64 = por %p62, %p63
    %s66 = sadd.s32 %s65, 1
    %p69 = scmp.eq.s32.totalorder %s10, 3
    %p70 = scmp.ne.s32.totalorder %s65, %s67
    %p71 = scmp.eq.s32.totalorder %s10, 0
    %p72 = por %p70, %p71
    %p73 = scmp.ne.s32.totalorder %s65, %s67
    %p74 = scmp.eq.s32.totalorder %s15, 3
    %p75 = por %p73, %p74
    %p76 = scmp.ne.s32.totalorder %s67, %s68
    %p77 = scmp.eq.s32.totalorder %s15, 0
    %p78 = por %p76, %p77
    %p79 = scmp.ne.s32.totalorder %s67, %s68
    %p80 = scmp.eq.s32.totalorder %s16, 3
    %p81 = por %p79, %p80
    %p83 = scmp.ne.s32.totalorder %s68, %s82
    %p84 = scmp.eq.s32.totalorder %s16, 0
    %p85 = por %p83, %p84
    %s87 = sadd.s32 %s86, 1
    %p90 = scmp.eq.s32.totalorder %s10, 3
    %p91 = scmp.ne.s32.totalorder %s86, %s88
    %p92 = scmp.eq.s32.totalorder %s10, 0
    %p93 = por %p91, %p92
    %p94 = scmp.ne.s32.totalorder %s86, %s88
    %p95 = scmp.eq.s32.totalorder %s15, 3
    %p96 = por %p94, %p95
    %p97 = scmp.ne.s32.totalorder %s88, %s89
    %p98 = scmp.eq.s32.totalorder %s15, 0
    %p99 = por %p97, %p98
    %p100 = scmp.ne.s32.totalorder %s88, %s89
    %p101 = scmp.eq.s32.totalorder %s16, 3
    %p102 = por %p100, %p101
    %p104 = scmp.ne.s32.totalorder %s89, %s103
    %p105 = scmp.eq.s32.totalorder %s16, 0
    %p106 = por %p104, %p105
    %s107 = ssub.s32 %s10, %s17
    %p108 = scmp.eq.s32.totalorder %s107, 0
    %s110 = sadd.s32 %s109, 1
    %s111 = scalar_select %p108, %s109, %s110
    %p114 = pneg %p108
    %p115 = scmp.eq.s32.totalorder %s10, 3
    %p116 = por %p114, %p115
    %p117 = scmp.ne.s32.totalorder %s109, %s112
    %p118 = scmp.eq.s32.totalorder %s10, 0
    %p119 = por %p117, %p118
    %p120 = scmp.ne.s32.totalorder %s109, %s112
    %p121 = scmp.eq.s32.totalorder %s15, 3
    %p122 = por %p120, %p121
    %p123 = scmp.ne.s32.totalorder %s112, %s113
    %p124 = scmp.eq.s32.totalorder %s15, 0
    %p125 = por %p123, %p124
    %p126 = scmp.ne.s32.totalorder %s112, %s113
    %p127 = scmp.eq.s32.totalorder %s16, 3
    %p128 = por %p126, %p127
    %p130 = scmp.ne.s32.totalorder %s113, %s129
    %p131 = scmp.eq.s32.totalorder %s16, 0
    %p132 = por %p130, %p131
    %p133 = scmp.le.s32.totalorder 1, %s10
    %p134 = scmp.lt.s32.totalorder %s10, 5
    %p135 = pnand %p133, %p134
    %p136 = pneg %p135
    // Predicated region
    $region9: #{erfnet_ae_forward.219} parent=5 // pred_check
      _
    $region10: #{erfnet_ae_forward.219} parent=5 // pred_check_branch
      %138 = sbr.rel (%p135) target = $region12
    $region11: #{erfnet_ae_forward.219} parent=5 // pred_region
      %s139 = ssub.s32 %s10, 1
      // Predicated region
      $region13: #{erfnet_ae_forward.219} parent=11 // pred_check
        %p140 = pneg %p57
      $region14: #{erfnet_ae_forward.219} parent=11 // pred_check_branch
        %142 = sbr.rel (%p140) target = $region16
      $region15: #{erfnet_ae_forward.219} parent=11 // pred_region
        _
      $region16: #{erfnet_ae_forward.219} parent=11 // pred_fallthru
        _
      // Predicated region
      $region17: #{erfnet_ae_forward.219} parent=11 // pred_check
        %p143 = pneg %p78
      $region18: #{erfnet_ae_forward.219} parent=11 // pred_check_branch
        %145 = sbr.rel (%p143) target = $region20
      $region19: #{erfnet_ae_forward.219} parent=11 // pred_region
        _
      $region20: #{erfnet_ae_forward.219} parent=11 // pred_fallthru
        _
      // Predicated region
      $region21: #{erfnet_ae_forward.219} parent=11 // pred_check
        %p146 = pneg %p99
      $region22: #{erfnet_ae_forward.219} parent=11 // pred_check_branch
        %148 = sbr.rel (%p146) target = $region24
      $region23: #{erfnet_ae_forward.219} parent=11 // pred_region
        _
      $region24: #{erfnet_ae_forward.219} parent=11 // pred_fallthru
        _
    $region12: #{erfnet_ae_forward.219} parent=5 // pred_fallthru
      _
    %p149 = scmp.lt.s32.totalorder %s10, 4
    // Predicated region
    $region25: #{erfnet_ae_forward.219} parent=5 // pred_check
      %p150 = pneg %p149
    $region26: #{erfnet_ae_forward.219} parent=5 // pred_check_branch
      %152 = sbr.rel (%p150) target = $region28
    $region27: #{erfnet_ae_forward.219} parent=5 // pred_region
      // Predicated region
      $region29: #{erfnet_ae_forward.219} parent=27 // pred_check
        %p153 = pneg %p30
      $region30: #{erfnet_ae_forward.219} parent=27 // pred_check_branch
        %155 = sbr.rel (%p153) target = $region32
      $region31: #{erfnet_ae_forward.219} parent=27 // pred_region
        %s156 = smul.u32 16, %s10
        %p157 = scmp.lt.s32.totalorder %s156, 63
        %s158 = scalar_select %p157, %s156, 63
        %s159 = smul.addr %s158, 2
        %s160 = smul.addr %s159, 4
        %s161 = scalar_lea.vmem %s0, %s160
        %s162 = smul.u32 16, %s10
      $region32: #{erfnet_ae_forward.219} parent=27 // pred_fallthru
        _
    $region28: #{erfnet_ae_forward.219} parent=5 // pred_fallthru
      _
    %p163 = scmp.le.s32.totalorder 1, %s10
    %p164 = scmp.lt.s32.totalorder %s10, 5
    %p165 = pnand %p163, %p164
    %p166 = pneg %p165
    // Predicated region
    $region33: #{erfnet_ae_forward.219} parent=5 // pred_check
      _
    $region34: #{erfnet_ae_forward.219} parent=5 // pred_check_branch
      %168 = sbr.rel (%p165) target = $region36
    $region35: #{erfnet_ae_forward.219} parent=5 // pred_region
      %s169 = ssub.s32 %s10, 1
      %s170 = smul.u32 16, %s15
      %p171 = scmp.lt.s32.totalorder %s170, 63
      %s172 = scalar_select %p171, %s170, 63
      %s173 = smul.addr %s172, 2
      %s174 = smul.addr %s173, 4
      %s175 = scalar_lea.vmem %s0, %s174
      %p176 = pneg %p36
      %p177 = pneg %p33
      %p178 = pneg %p57
      %p179 = pneg %p54
      %p180 = pneg %p78
      %p181 = pneg %p75
      %p182 = pneg %p99
      %p183 = pneg %p96
      %p184 = pneg %p125
      %p185 = pneg %p122
      %s186 = smul.u32 16, %s15
      %p187 = scmp.lt.s32.totalorder %s186, 63
      %s188 = scalar_select %p187, %s186, 63
      %s189 = smul.addr %s188, 8
      %s190 = scalar_lea.vmem %s4, %s189
      %s191 = smul.u32 16, %s15
      %p192 = scmp.lt.s32.totalorder %s191, 63
      %s193 = scalar_select %p192, %s191, 63
      %s194 = smul.addr %s193, 2
      %s195 = smul.addr %s194, 4
      %s196 = scalar_lea.vmem %s0, %s195
      %s197 = smul.u32 16, %s15
      %s198 = smul.u32 16, %s15
      %p199 = scmp.lt.s32.totalorder %s198, 63
      %s200 = scalar_select %p199, %s198, 63
      %s201 = smul.addr %s200, 8
      %s202 = scalar_lea.vmem %s4, %s201
      %s203 = smul.u32 16, %s15
      %v205 = vld [vmem:[%s196] sm:$0xff]
      %v206 = vld [vmem:[%s196 + $0x8] sm:$0xff]
      %v207 = vld [vmem:[%s196 + $0x10] sm:$0xff]
      %v208 = vld [vmem:[%s196 + $0x18] sm:$0xff]
      %v209 = vld [vmem:[%s196 + $0x20] sm:$0xff]
      %v210 = vld [vmem:[%s196 + $0x28] sm:$0xff]
      %v211 = vld [vmem:[%s196 + $0x30] sm:$0xff]
      %v212 = vld [vmem:[%s196 + $0x38] sm:$0xff]
      %v213 = vld [vmem:[%s196 + $0x40] sm:$0xff]
      %v214 = vld [vmem:[%s196 + $0x48] sm:$0xff]
      %v215 = vld [vmem:[%s196 + $0x50] sm:$0xff]
      %v216 = vld [vmem:[%s196 + $0x58] sm:$0xff]
      %v217 = vld [vmem:[%s196 + $0x60] sm:$0xff]
      %v218 = vld [vmem:[%s196 + $0x68] sm:$0xff]
      %v219 = vld [vmem:[%s196 + $0x70] sm:$0xff]
      %v220 = vld [vmem:[%s196 + $0x78] sm:$0xff]
      %v221 = vld [vmem:[%s1] sm:$0xf]
      %v222 = vld [vmem:[%s1 + $0x4] sm:$0xf]
      %v223 = vld [vmem:[%s1 + $0x8] sm:$0xf]
      %v224 = vld [vmem:[%s1 + $0xc] sm:$0xf]
      %v225 = vld [vmem:[%s1 + $0x10] sm:$0xf]
      %v226 = vld [vmem:[%s1 + $0x14] sm:$0xf]
      %v227 = vld [vmem:[%s1 + $0x18] sm:$0xf]
      %v228 = vld [vmem:[%s1 + $0x1c] sm:$0xf]
      %v229 = vld [vmem:[%s1 + $0x20] sm:$0xf]
      %v230 = vld [vmem:[%s1 + $0x24] sm:$0xf]
      %v231 = vld [vmem:[%s1 + $0x28] sm:$0xf]
      %v232 = vld [vmem:[%s1 + $0x2c] sm:$0xf]
      %v233 = vld [vmem:[%s1 + $0x30] sm:$0xf]
      %v234 = vld [vmem:[%s1 + $0x34] sm:$0xf]
      %v235 = vld [vmem:[%s1 + $0x38] sm:$0xf]
      %v236 = vld [vmem:[%s1 + $0x3c] sm:$0xf]
      %v237 = vld [vmem:[%s1 + $0x40] sm:$0xf]
      %v238 = vld [vmem:[%s1 + $0x44] sm:$0xf]
      %v255 = vunpack.c.l.b16 %v205
      %v256 = vunpack.c.h.b16 %v205
      %v257 = vunpack.c.l.b16 %v206
      %v258 = vunpack.c.h.b16 %v206
      %v259 = vunpack.c.l.b16 %v207
      %v260 = vunpack.c.h.b16 %v207
      %v261 = vunpack.c.l.b16 %v208
      %v262 = vunpack.c.h.b16 %v208
      %v263 = vunpack.c.l.b16 %v209
      %v264 = vunpack.c.h.b16 %v209
      %v265 = vunpack.c.l.b16 %v210
      %v266 = vunpack.c.h.b16 %v210
      %v267 = vunpack.c.l.b16 %v211
      %v268 = vunpack.c.h.b16 %v211
      %v269 = vunpack.c.l.b16 %v212
      %v270 = vunpack.c.h.b16 %v212
      %v271 = vunpack.c.l.b16 %v213
      %v272 = vunpack.c.h.b16 %v213
      %v273 = vunpack.c.l.b16 %v214
      %v274 = vunpack.c.h.b16 %v214
      %v275 = vunpack.c.l.b16 %v215
      %v276 = vunpack.c.h.b16 %v215
      %v277 = vunpack.c.l.b16 %v216
      %v278 = vunpack.c.h.b16 %v216
      %v279 = vunpack.c.l.b16 %v217
      %v280 = vunpack.c.h.b16 %v217
      %v281 = vunpack.c.l.b16 %v218
      %v282 = vunpack.c.h.b16 %v218
      %v283 = vunpack.c.l.b16 %v219
      %v284 = vunpack.c.h.b16 %v219
      %v285 = vunpack.c.l.b16 %v220
      %v286 = vunpack.c.h.b16 %v220
      %v287 = vpack.c.b16 %v257, %v255
      %v288 = vpack.c.b16 %v258, %v256
      %v289 = vpack.c.b16 %v261, %v259
      %v290 = vpack.c.b16 %v262, %v260
      %v291 = vpack.c.b16 %v265, %v263
      %v292 = vpack.c.b16 %v266, %v264
      %v293 = vpack.c.b16 %v269, %v267
      %v294 = vpack.c.b16 %v270, %v268
      %v295 = vpack.c.b16 %v273, %v271
      %v296 = vpack.c.b16 %v274, %v272
      %v297 = vpack.c.b16 %v277, %v275
      %v298 = vpack.c.b16 %v278, %v276
      %v299 = vpack.c.b16 %v281, %v279
      %v300 = vpack.c.b16 %v282, %v280
      %v301 = vpack.c.b16 %v285, %v283
      %v302 = vpack.c.b16 %v286, %v284
      %v329 = vunpack.c.l.b16 %v221
      %v330 = vunpack.c.l.b16 %v222
      %v331 = vunpack.c.l.b16 %v223
      %v332 = vunpack.c.l.b16 %v224
      %v333 = vunpack.c.l.b16 %v225
      %v334 = vunpack.c.l.b16 %v226
      %v335 = vunpack.c.l.b16 %v227
      %v336 = vunpack.c.l.b16 %v228
      %v337 = vunpack.c.l.b16 %v229
      %v338 = vunpack.c.l.b16 %v230
      %v339 = vunpack.c.l.b16 %v231
      %v340 = vunpack.c.l.b16 %v232
      %v341 = vunpack.c.l.b16 %v233
      %v342 = vunpack.c.l.b16 %v234
      %v343 = vunpack.c.l.b16 %v235
      %v344 = vunpack.c.l.b16 %v236
      %v345 = vunpack.c.l.b16 %v237
      %v346 = vunpack.c.l.b16 %v238
      %v347 = vpack.c.b16 %v330, %v329
      %v348 = vpack.c.b16 %v332, %v331
      %v349 = vpack.c.b16 %v334, %v333
      %v350 = vpack.c.b16 %v336, %v335
      %v351 = vpack.c.b16 %v338, %v337
      %v352 = vpack.c.b16 %v340, %v339
      %v353 = vpack.c.b16 %v342, %v341
      %v354 = vpack.c.b16 %v344, %v343
      %v355 = vpack.c.b16 %v346, %v345
      %vm365 = vcmask 130048
      %v367 = vsel %vm365, %v288, 0
      %v370 = vsel %vm365, %v290, 0
      %v373 = vsel %vm365, %v292, 0
      %v376 = vsel %vm365, %v294, 0
      %v379 = vsel %vm365, %v296, 0
      %v382 = vsel %vm365, %v298, 0
      %v385 = vsel %vm365, %v300, 0
      %v388 = vsel %vm365, %v302, 0
      %390 = vmatprep.subr.bf16.mxu0 0
      %391 = vmatpush1.bf16.msra.mxu0 %v354
      %392 = vmatprep.subr.bf16.mxu0 0
      %393 = vmatpush1.bf16.msra.mxu0 %v353
      %394 = vmatprep.subr.bf16.mxu0 0
      %395 = vmatpush1.bf16.msra.mxu0 %v352
      %396 = vmatprep.subr.bf16.mxu0 0
      %397 = vmatpush1.bf16.msra.mxu0 %v351
      %398 = vmatprep.subr.bf16.mxu0 0
      %399 = vmatpush1.bf16.msra.mxu0 %v350
      %400 = vmatprep.subr.bf16.mxu0 0
      %401 = vmatpush1.bf16.msra.mxu0 %v349
      %402 = vmatprep.subr.bf16.mxu0 0
      %403 = vmatpush1.bf16.msra.mxu0 %v348
      %404 = vmatprep.subr.bf16.mxu0 0
      %405 = vmatpush1.bf16.msra.mxu0 %v347
      %406 = vmatprep.subr.bf16.mxu0 0
      %407 = vmatpush2.bf16.msra.mxu0 0
      %408 = vmatprep.subr.bf16.mxu0 0
      %409 = vmatpush2.bf16.msra.mxu0 0
      %410 = vmatprep.subr.bf16.mxu0 0
      %411 = vmatpush2.bf16.msra.mxu0 0
      %412 = vmatprep.subr.bf16.mxu0 0
      %413 = vmatpush2.bf16.msra.mxu0 0
      %414 = vmatprep.subr.bf16.mxu0 0
      %415 = vmatpush2.bf16.msra.mxu0 0
      %416 = vmatprep.subr.bf16.mxu0 0
      %417 = vmatpush2.bf16.msra.mxu0 0
      %418 = vmatprep.subr.bf16.mxu0 0
      %419 = vmatpush2.bf16.msra.mxu0 0
      %420 = vmatprep.subr.bf16.mxu0 0
      %421 = vmatpush2.bf16.msra.mxu0 %v355
      %422 = vmatprep.mubr.bf16.mxu0 %v367
      %423 = vmatmul.mubr.bf16.gmra.mxu0 %v287
      %v424 = vpop.f32.mrf.mxu0
      %v425 = vadd.f32 0.0, %v424
      %v426 = vpop.f32.mrf.mxu0
      %v427 = vpop.f32.mrf.mxu0
      %v428 = vadd.f32 0.0, %v427
      %v429 = vpop.f32.mrf.mxu0
      %430 = vmatprep.mubr.bf16.mxu0 %v370
      %431 = vmatmul.mubr.bf16.gmra.mxu0 %v289
      %v432 = vpop.f32.mrf.mxu0
      %v433 = vadd.f32 0.0, %v432
      %v434 = vpop.f32.mrf.mxu0
      %v435 = vpop.f32.mrf.mxu0
      %v436 = vadd.f32 0.0, %v435
      %v437 = vpop.f32.mrf.mxu0
      %438 = vmatprep.mubr.bf16.mxu0 %v373
      %439 = vmatmul.mubr.bf16.gmra.mxu0 %v291
      %v440 = vpop.f32.mrf.mxu0
      %v441 = vadd.f32 0.0, %v440
      %v442 = vpop.f32.mrf.mxu0
      %v443 = vpop.f32.mrf.mxu0
      %v444 = vadd.f32 0.0, %v443
      %v445 = vpop.f32.mrf.mxu0
      %446 = vmatprep.mubr.bf16.mxu0 %v376
      %447 = vmatmul.mubr.bf16.gmra.mxu0 %v293
      %v448 = vpop.f32.mrf.mxu0
      %v449 = vadd.f32 0.0, %v448
      %v450 = vpop.f32.mrf.mxu0
      %v451 = vpop.f32.mrf.mxu0
      %v452 = vadd.f32 0.0, %v451
      %v453 = vpop.f32.mrf.mxu0
      %454 = vmatprep.mubr.bf16.mxu0 %v379
      %455 = vmatmul.mubr.bf16.gmra.mxu0 %v295
      %v456 = vpop.f32.mrf.mxu0
      %v457 = vadd.f32 0.0, %v456
      %v458 = vpop.f32.mrf.mxu0
      %v459 = vpop.f32.mrf.mxu0
      %v460 = vadd.f32 0.0, %v459
      %v461 = vpop.f32.mrf.mxu0
      %462 = vmatprep.mubr.bf16.mxu0 %v382
      %463 = vmatmul.mubr.bf16.gmra.mxu0 %v297
      %v464 = vpop.f32.mrf.mxu0
      %v465 = vadd.f32 0.0, %v464
      %v466 = vpop.f32.mrf.mxu0
      %v467 = vpop.f32.mrf.mxu0
      %v468 = vadd.f32 0.0, %v467
      %v469 = vpop.f32.mrf.mxu0
      %470 = vmatprep.mubr.bf16.mxu0 %v385
      %471 = vmatmul.mubr.bf16.gmra.mxu0 %v299
      %v472 = vpop.f32.mrf.mxu0
      %v473 = vadd.f32 0.0, %v472
      %v474 = vpop.f32.mrf.mxu0
      %v475 = vpop.f32.mrf.mxu0
      %v476 = vadd.f32 0.0, %v475
      %v477 = vpop.f32.mrf.mxu0
      %478 = vmatprep.mubr.bf16.mxu0 %v388
      %479 = vmatmul.mubr.bf16.gmra.mxu0 %v301
      %v480 = vpop.f32.mrf.mxu0
      %v481 = vadd.f32 0.0, %v480
      %v482 = vpop.f32.mrf.mxu0
      %v483 = vpop.f32.mrf.mxu0
      %v484 = vadd.f32 0.0, %v483
      %v485 = vpop.f32.mrf.mxu0
      %486 = vdwg.mxu0
      %v487 = vld [vmem:[%s2] sm:$0x1]
      %v489 = vlaneseq
      %v490 = vshrl.u32 %v489, 7
      %v491 = vsub.s32 0, %v490
      %v492 = vrot.slane %v487, %v491
      %v494 = vmul.f32 %v425, %v492
      %v495 = vmul.f32 %v428, %v492
      %v496 = vmul.f32 %v433, %v492
      %v497 = vmul.f32 %v436, %v492
      %v498 = vmul.f32 %v441, %v492
      %v499 = vmul.f32 %v444, %v492
      %v500 = vmul.f32 %v449, %v492
      %v501 = vmul.f32 %v452, %v492
      %v502 = vmul.f32 %v457, %v492
      %v503 = vmul.f32 %v460, %v492
      %v504 = vmul.f32 %v465, %v492
      %v505 = vmul.f32 %v468, %v492
      %v506 = vmul.f32 %v473, %v492
      %v507 = vmul.f32 %v476, %v492
      %v508 = vmul.f32 %v481, %v492
      %v509 = vmul.f32 %v484, %v492
      %v510 = vld [vmem:[%s3] sm:$0x1]
      %v512 = vlaneseq
      %v513 = vshrl.u32 %v512, 7
      %v514 = vsub.s32 0, %v513
      %v515 = vrot.slane %v510, %v514
      %v517 = vadd.f32 %v494, %v515
      %v518 = vadd.f32 %v495, %v515
      %v519 = vadd.f32 %v496, %v515
      %v520 = vadd.f32 %v497, %v515
      %v521 = vadd.f32 %v498, %v515
      %v522 = vadd.f32 %v499, %v515
      %v523 = vadd.f32 %v500, %v515
      %v524 = vadd.f32 %v501, %v515
      %v525 = vadd.f32 %v502, %v515
      %v526 = vadd.f32 %v503, %v515
      %v527 = vadd.f32 %v504, %v515
      %v528 = vadd.f32 %v505, %v515
      %v529 = vadd.f32 %v506, %v515
      %v530 = vadd.f32 %v507, %v515
      %v531 = vadd.f32 %v508, %v515
      %v532 = vadd.f32 %v509, %v515
      %v533 = vtanh.pop %v517
      %v534 = vtanh.pop %v518
      %v535 = vtanh.pop %v519
      %v536 = vtanh.pop %v520
      %v537 = vtanh.pop %v521
      %v538 = vtanh.pop %v522
      %v539 = vtanh.pop %v523
      %v540 = vtanh.pop %v524
      %v541 = vtanh.pop %v525
      %v542 = vtanh.pop %v526
      %v543 = vtanh.pop %v527
      %v544 = vtanh.pop %v528
      %v545 = vtanh.pop %v529
      %v546 = vtanh.pop %v530
      %v547 = vtanh.pop %v531
      %v548 = vtanh.pop %v532
      %549 = vst [vmem:[%s202] sm:$0xff] %v533
      %550 = vst [vmem:[%s202 + $0x8] sm:$0xff] %v534
      %551 = vst [vmem:[%s202 + $0x10] sm:$0xff] %v535
      %552 = vst [vmem:[%s202 + $0x18] sm:$0xff] %v536
      %553 = vst [vmem:[%s202 + $0x20] sm:$0xff] %v537
      %554 = vst [vmem:[%s202 + $0x28] sm:$0xff] %v538
      %555 = vst [vmem:[%s202 + $0x30] sm:$0xff] %v539
      %556 = vst [vmem:[%s202 + $0x38] sm:$0xff] %v540
      %557 = vst [vmem:[%s202 + $0x40] sm:$0xff] %v541
      %558 = vst [vmem:[%s202 + $0x48] sm:$0xff] %v542
      %559 = vst [vmem:[%s202 + $0x50] sm:$0xff] %v543
      %560 = vst [vmem:[%s202 + $0x58] sm:$0xff] %v544
      %561 = vst [vmem:[%s202 + $0x60] sm:$0xff] %v545
      %562 = vst [vmem:[%s202 + $0x68] sm:$0xff] %v546
      %563 = vst [vmem:[%s202 + $0x70] sm:$0xff] %v547
      %564 = vst [vmem:[%s202 + $0x78] sm:$0xff] %v548
      %s565 = smul.u32 16, %s15
      %p566 = scmp.lt.s32.totalorder %s565, 63
      %s567 = scalar_select %p566, %s565, 63
      %s568 = smul.addr %s567, 8
      %s569 = scalar_lea.vmem %s4, %s568
      // Predicated region
      $region37: #{erfnet_ae_forward.219} parent=35 // pred_check
        %p570 = pneg %p122
      $region38: #{erfnet_ae_forward.219} parent=35 // pred_check_branch
        %572 = sbr.rel (%p570) target = $region40
      $region39: #{erfnet_ae_forward.219} parent=35 // pred_region
        %s573 = smul.u32 16, %s15
      $region40: #{erfnet_ae_forward.219} parent=35 // pred_fallthru
        _
    $region36: #{erfnet_ae_forward.219} parent=5 // pred_fallthru
      _
    %p574 = scmp.le.s32.totalorder 2, %s10
    // Predicated region
    $region41: #{erfnet_ae_forward.219} parent=5 // pred_check
      %p575 = pneg %p574
    $region42: #{erfnet_ae_forward.219} parent=5 // pred_check_branch
      %577 = sbr.rel (%p575) target = $region44
    $region43: #{erfnet_ae_forward.219} parent=5 // pred_region
      %s578 = ssub.s32 %s10, 2
      // Predicated region
      $region45: #{erfnet_ae_forward.219} parent=43 // pred_check
        %p579 = pneg %p128
      $region46: #{erfnet_ae_forward.219} parent=43 // pred_check_branch
        %581 = sbr.rel (%p579) target = $region48
      $region47: #{erfnet_ae_forward.219} parent=43 // pred_region
        %s582 = smul.u32 16, %s16
        %p583 = scmp.lt.s32.totalorder %s582, 63
        %s584 = scalar_select %p583, %s582, 63
        %s585 = smul.addr %s584, 8
        %s586 = scalar_lea.vmem %s4, %s585
      $region48: #{erfnet_ae_forward.219} parent=43 // pred_fallthru
        _
    $region44: #{erfnet_ae_forward.219} parent=5 // pred_fallthru
      _
  $region6: #{erfnet_ae_forward.219} parent=0 // loop_footer
    %s14 = sadd.s32 1, %s10
  $region7: #{erfnet_ae_forward.219} parent=0 // loop_footer_branch
    %9 = sbr.rel target = $region3
  $region8: #{erfnet_ae_forward.219} parent=0 // loop_exit
    _

</llo_original>
